<compile_context>
chip_gen: v5e
topology: v5e:2x2
jax: 0.10.0
libtpu: 0.0.40
codegen_flags: <defaults>
</compile_context>

<pallas_src>
import functools
import numpy as np
import jax
import jax.numpy as jnp
from jax import lax
from jax.experimental import pallas as pl
from jax.experimental.pallas import tpu as pltpu


# ----------------------------- fused Pallas kernel -----------------------------

def _decoder_core_kernel(Wp, xu_ref, sk_ref, ml_ref, mr_ref,
                         w1x_ref, w1s_ref, s1_ref, t1_ref,
                         w2_ref, s2_ref, t2_ref, o_ref):
    """relu(bn2(conv1x1(relu(bn1(conv3x3([x_up ; skip])))))) for one batch image.

    xu_ref / sk_ref : (M, C) flattened (row-major m = h*Wp + w) 2H x 2W planes.
    ml_ref / mr_ref : (M, 1) masks killing the wrapped column for dx = -1 / +1 taps.
    w1x / w1s       : (9, C, Cout) 3x3 taps (k = ky*3 + kx) of the K-split conv1 weight.
    s* / t*         : (1, Cout) folded BatchNorm scale and (conv-bias + BN) shift.
    """
    M = xu_ref.shape[0]
    Cout = o_ref.shape[1]
    P = Wp + 8                      # >= Wp + 1 zero rows on each side handle the H halo

    mask_l = ml_ref[...]
    mask_r = mr_ref[...]

    def conv3x3_accumulate(x_ref, w_ref, acc):
        x = x_ref[...]
        C = x.shape[1]
        zpad = jnp.zeros((P, C), jnp.float32)
        xp = jnp.concatenate([zpad, x, zpad], axis=0)           # (M + 2P, C), VMEM only
        for ky in range(3):
            for kx in range(3):
                start = P + (ky - 1) * Wp + (kx - 1)            # static shift
                sl = xp[start:start + M, :]                     # shifted plane
                if kx == 0:                                     # reads w-1 -> mask col 0
                    sl = sl * mask_l
                elif kx == 2:                                   # reads w+1 -> mask col Wp-1
                    sl = sl * mask_r
                acc = acc + jnp.dot(sl, w_ref[ky * 3 + kx],
                                    preferred_element_type=jnp.float32)
        return acc

    acc = jnp.zeros((M, Cout), jnp.float32)
    acc = conv3x3_accumulate(xu_ref, w1x_ref, acc)              # conv1, x_up half of K
    acc = conv3x3_accumulate(sk_ref, w1s_ref, acc)              # conv1, skip half of K

    h = jnp.maximum(acc * s1_ref[...] + t1_ref[...], 0.0)       # bias+BN1 folded, ReLU
    y = jnp.dot(h, w2_ref[...], preferred_element_type=jnp.float32)   # 1x1 conv2
    o_ref[...] = jnp.maximum(y * s2_ref[...] + t2_ref[...], 0.0)      # bias+BN2 folded, ReLU


def decoder_core(xu_flat, sk_flat, mask_l, mask_r, p, batch, M_b, Wp):
    Cin = xu_flat.shape[1]
    Cs = sk_flat.shape[1]
    Cout = p['w2'].shape[1]

    flops = 2 * batch * M_b * (9 * (Cin + Cs) * Cout + Cout * Cout)
    bytes_accessed = 4 * (batch * M_b * (Cin + Cs + Cout)
                          + 9 * (Cin + Cs) * Cout + Cout * Cout
                          + 4 * Cout + 2 * M_b)

    kern = functools.partial(_decoder_core_kernel, Wp)
    return pl.pallas_call(
        kern,
        out_shape=jax.ShapeDtypeStruct((batch * M_b, Cout), jnp.float32),
        grid=(batch,),
        in_specs=[
            pl.BlockSpec((M_b, Cin), lambda i: (i, 0)),
            pl.BlockSpec((M_b, Cs), lambda i: (i, 0)),
            pl.BlockSpec((M_b, 1), lambda i: (0, 0)),
            pl.BlockSpec((M_b, 1), lambda i: (0, 0)),
            pl.BlockSpec((9, Cin, Cout), lambda i: (0, 0, 0)),
            pl.BlockSpec((9, Cs, Cout), lambda i: (0, 0, 0)),
            pl.BlockSpec((1, Cout), lambda i: (0, 0)),
            pl.BlockSpec((1, Cout), lambda i: (0, 0)),
            pl.BlockSpec((Cout, Cout), lambda i: (0, 0)),
            pl.BlockSpec((1, Cout), lambda i: (0, 0)),
            pl.BlockSpec((1, Cout), lambda i: (0, 0)),
        ],
        out_specs=pl.BlockSpec((M_b, Cout), lambda i: (i, 0)),
        compiler_params=pltpu.CompilerParams(dimension_semantics=("parallel",)),
        cost_estimate=pl.CostEstimate(flops=flops, transcendentals=0,
                                      bytes_accessed=bytes_accessed),
    )(xu_flat, sk_flat, mask_l, mask_r,
      p['w1x'], p['w1s'], p['s1'], p['t1'], p['w2'], p['s2'], p['t2'])


# ------------------------------- XLA glue ---------------------------------------

def upsample2x_bilinear_nhwc(x):
    """2x bilinear upsample, align_corners=False (nn.Upsample default), separable."""
    B, H, W, C = x.shape
    prev = jnp.concatenate([x[:, :1], x[:, :-1]], axis=1)
    nxt = jnp.concatenate([x[:, 1:], x[:, -1:]], axis=1)
    even = 0.25 * prev + 0.75 * x
    odd = 0.75 * x + 0.25 * nxt
    xh = jnp.stack([even, odd], axis=2).reshape(B, 2 * H, W, C)
    prevw = jnp.concatenate([xh[:, :, :1], xh[:, :, :-1]], axis=2)
    nxtw = jnp.concatenate([xh[:, :, 1:], xh[:, :, -1:]], axis=2)
    evenw = 0.25 * prevw + 0.75 * xh
    oddw = 0.75 * xh + 0.25 * nxtw
    return jnp.stack([evenw, oddw], axis=3).reshape(B, 2 * H, 2 * W, C)


def decoder_block_forward(x_nchw, skip_nchw, p):
    B, Cin, H, W = x_nchw.shape
    Cs = skip_nchw.shape[1]
    Hp, Wp = 2 * H, 2 * W
    M_b = Hp * Wp
    Cout = p['w2'].shape[1]

    x = jnp.transpose(x_nchw, (0, 2, 3, 1)).astype(jnp.float32)        # NCHW -> NHWC
    skip = jnp.transpose(skip_nchw, (0, 2, 3, 1)).astype(jnp.float32)

    xu = upsample2x_bilinear_nhwc(x)                                    # (B, Hp, Wp, Cin)
    xu_flat = xu.reshape(B * M_b, Cin)
    sk_flat = skip.reshape(B * M_b, Cs)

    wcol = jnp.arange(M_b, dtype=jnp.int32) % Wp
    mask_l = (wcol != 0).astype(jnp.float32).reshape(M_b, 1)
    mask_r = (wcol != Wp - 1).astype(jnp.float32).reshape(M_b, 1)

    out_flat = decoder_core(xu_flat, sk_flat, mask_l, mask_r, p, B, M_b, Wp)
    return jnp.transpose(out_flat.reshape(B, Hp, Wp, Cout), (0, 3, 1, 2))


# ----------------------------- parameter setup ----------------------------------

def _fold_bn(key, c, conv_bias):
    kg, kb, km, kv = jax.random.split(key, 4)
    gamma = 1.0 + 0.1 * jax.random.normal(kg, (c,), jnp.float32)
    beta = 0.1 * jax.random.normal(kb, (c,), jnp.float32)
    mean = 0.05 * jax.random.normal(km, (c,), jnp.float32)
    var = 1.0 + 0.1 * jax.random.uniform(kv, (c,), jnp.float32)
    scale = gamma * jax.lax.rsqrt(var + 1e-5)
    shift = beta + (conv_bias - mean) * scale          # conv bias folded into BN shift
    return scale.reshape(1, c), shift.reshape(1, c)


def init_params(key, in_ch, skip_ch, out_ch):
    k = jax.random.split(key, 7)
    fan1 = 9 * (in_ch + skip_ch)
    w1x = jax.random.normal(k[0], (9, in_ch, out_ch), jnp.float32) / np.sqrt(fan1)
    w1s = jax.random.normal(k[1], (9, skip_ch, out_ch), jnp.float32) / np.sqrt(fan1)
    b1 = 0.1 * jax.random.normal(k[2], (out_ch,), jnp.float32)
    s1, t1 = _fold_bn(k[3], out_ch, b1)
    w2 = jax.random.normal(k[4], (out_ch, out_ch), jnp.float32) / np.sqrt(out_ch)
    b2 = 0.1 * jax.random.normal(k[5], (out_ch,), jnp.float32)
    s2, t2 = _fold_bn(k[6], out_ch, b2)
    return dict(w1x=w1x, w1s=w1s, s1=s1, t1=t1, w2=w2, s2=s2, t2=t2)


# ----------------------- pure-XLA reference (sanity check) -----------------------

def reference_forward(x_nchw, skip_nchw, p):
    Cout = p['w2'].shape[1]
    x = jnp.transpose(x_nchw, (0, 2, 3, 1)).astype(jnp.float32)
    skip = jnp.transpose(skip_nchw, (0, 2, 3, 1)).astype(jnp.float32)
    xu = upsample2x_bilinear_nhwc(x)
    z = jnp.concatenate([xu, skip], axis=-1)
    w1 = jnp.concatenate([p['w1x'], p['w1s']], axis=1)            # (9, Cin+Cs, Cout)
    w1 = w1.reshape(3, 3, w1.shape[1], Cout)                      # HWIO
    y = lax.conv_general_dilated(z, w1, window_strides=(1, 1), padding='SAME',
                                 dimension_numbers=('NHWC', 'HWIO', 'NHWC'),
                                 precision=lax.Precision.HIGHEST)
    y = jnp.maximum(y * p['s1'][0] + p['t1'][0], 0.0)
    y = jnp.einsum('bhwc,cd->bhwd', y, p['w2'], precision=lax.Precision.HIGHEST)
    y = jnp.maximum(y * p['s2'][0] + p['t2'][0], 0.0)
    return jnp.transpose(y, (0, 3, 1, 2))


# ------------------------------------ main ---------------------------------------

if __name__ == "__main__":
    B, H, W = 2, 8, 8
    in_ch, skip_ch, out_ch = 32, 16, 32

    key = jax.random.PRNGKey(0)
    kx, ks, kp = jax.random.split(key, 3)
    x = jax.random.normal(kx, (B, in_ch, H, W), jnp.float32)
    skip = jax.random.normal(ks, (B, skip_ch, 2 * H, 2 * W), jnp.float32)
    params = init_params(kp, in_ch, skip_ch, out_ch)

    fwd = jax.jit(lambda a, b: decoder_block_forward(a, b, params))
    out = fwd(x, skip)
    jax.block_until_ready(out)

    assert out.shape == (B, out_ch, 2 * H, 2 * W), out.shape
    assert bool(jnp.all(jnp.isfinite(out)))

    ref = jax.jit(lambda a, b: reference_forward(a, b, params))(x, skip)
    err = float(jnp.max(jnp.abs(out - ref)))
    assert err < 5e-2, f"max |pallas - reference| = {err}"

    print("KERNEL_OK")
</pallas_src>

<mosaic_0001>
module attributes {stable_mosaic.version = 11 : i64} {
  func.func @_decoder_core_kernel(%arg0: i32, %arg1: memref<256x32xf32, #tpu.memory_space<vmem>>, %arg2: memref<256x16xf32, #tpu.memory_space<vmem>>, %arg3: memref<256x1xf32, #tpu.memory_space<vmem>>, %arg4: memref<256x1xf32, #tpu.memory_space<vmem>>, %arg5: memref<9x32x32xf32, #tpu.memory_space<vmem>>, %arg6: memref<9x16x32xf32, #tpu.memory_space<vmem>>, %arg7: memref<1x32xf32, #tpu.memory_space<vmem>>, %arg8: memref<1x32xf32, #tpu.memory_space<vmem>>, %arg9: memref<32x32xf32, #tpu.memory_space<vmem>>, %arg10: memref<1x32xf32, #tpu.memory_space<vmem>>, %arg11: memref<1x32xf32, #tpu.memory_space<vmem>>, %arg12: memref<256x32xf32, #tpu.memory_space<vmem>>) attributes {dimension_semantics = [#tpu.dimension_semantics<parallel>], iteration_bounds = array<i64: 2>, scalar_prefetch = 0 : i64, scratch_operands = 0 : i64, tpu.core_type = #tpu.core_type<tc>, window_params = [{transform_indices = @transform_0, window_bounds = array<i64: 256, 32>}, {transform_indices = @transform_1, window_bounds = array<i64: 256, 16>}, {pipeline_mode = #tpu.pipeline_mode<synchronous>, transform_indices = @transform_2, window_bounds = array<i64: 256, 1>}, {pipeline_mode = #tpu.pipeline_mode<synchronous>, transform_indices = @transform_3, window_bounds = array<i64: 256, 1>}, {pipeline_mode = #tpu.pipeline_mode<synchronous>, transform_indices = @transform_4, window_bounds = array<i64: 9, 32, 32>}, {pipeline_mode = #tpu.pipeline_mode<synchronous>, transform_indices = @transform_5, window_bounds = array<i64: 9, 16, 32>}, {pipeline_mode = #tpu.pipeline_mode<synchronous>, transform_indices = @transform_6, window_bounds = array<i64: 1, 32>}, {pipeline_mode = #tpu.pipeline_mode<synchronous>, transform_indices = @transform_7, window_bounds = array<i64: 1, 32>}, {pipeline_mode = #tpu.pipeline_mode<synchronous>, transform_indices = @transform_8, window_bounds = array<i64: 32, 32>}, {pipeline_mode = #tpu.pipeline_mode<synchronous>, transform_indices = @transform_9, window_bounds = array<i64: 1, 32>}, {pipeline_mode = #tpu.pipeline_mode<synchronous>, transform_indices = @transform_10, window_bounds = array<i64: 1, 32>}, {transform_indices = @transform_11, window_bounds = array<i64: 256, 32>}]} {
    %c0 = arith.constant 0 : index
    %c0_0 = arith.constant 0 : index
    %0 = vector.load %arg3[%c0, %c0_0] : memref<256x1xf32, #tpu.memory_space<vmem>>, vector<256x1xf32>
    %c0_1 = arith.constant 0 : index
    %c0_2 = arith.constant 0 : index
    %1 = vector.load %arg4[%c0_1, %c0_2] : memref<256x1xf32, #tpu.memory_space<vmem>>, vector<256x1xf32>
    %cst = arith.constant 0.000000e+00 : f32
    %2 = vector.broadcast %cst : f32 to vector<256x32xf32>
    %c0_3 = arith.constant 0 : index
    %c0_4 = arith.constant 0 : index
    %3 = vector.load %arg1[%c0_3, %c0_4] : memref<256x32xf32, #tpu.memory_space<vmem>>, vector<256x32xf32>
    %cst_5 = arith.constant 0.000000e+00 : f32
    %4 = vector.broadcast %cst_5 : f32 to vector<24x32xf32>
    %5 = tpu.concatenate %4, %3, %4 in 0 : vector<24x32xf32>, vector<256x32xf32>, vector<24x32xf32> -> vector<304x32xf32>
    %6 = vector.extract_strided_slice %5 {offsets = [7, 0], sizes = [256, 32], strides = [1, 1]} : vector<304x32xf32> to vector<256x32xf32>
    %7 = vector.broadcast %0 : vector<256x1xf32> to vector<256x32xf32>
    %8 = arith.mulf %6, %7 : vector<256x32xf32>
    %c0_6 = arith.constant 0 : index
    %c0_7 = arith.constant 0 : index
    %c0_8 = arith.constant 0 : index
    %9 = vector.load %arg5[%c0_6, %c0_7, %c0_8] : memref<9x32x32xf32, #tpu.memory_space<vmem>>, vector<1x32x32xf32>
    %10 = vector.shape_cast %9 : vector<1x32x32xf32> to vector<32x32xf32>
    %cst_9 = arith.constant dense<0.000000e+00> : vector<256x32xf32>
    %11 = tpu.matmul %8, %10, %cst_9 {dimension_numbers = #tpu.dot_dimension_numbers<[1], [0], [0], [1], [0, 0, 1, 1], [], []>} : vector<256x32xf32>, vector<32x32xf32>, vector<256x32xf32> -> vector<256x32xf32>
    %12 = arith.addf %2, %11 : vector<256x32xf32>
    %13 = vector.extract_strided_slice %5 {offsets = [8, 0], sizes = [256, 32], strides = [1, 1]} : vector<304x32xf32> to vector<256x32xf32>
    %c1 = arith.constant 1 : index
    %c0_10 = arith.constant 0 : index
    %c0_11 = arith.constant 0 : index
    %14 = vector.load %arg5[%c1, %c0_10, %c0_11] : memref<9x32x32xf32, #tpu.memory_space<vmem>>, vector<1x32x32xf32>
    %15 = vector.shape_cast %14 : vector<1x32x32xf32> to vector<32x32xf32>
    %cst_12 = arith.constant dense<0.000000e+00> : vector<256x32xf32>
    %16 = tpu.matmul %13, %15, %cst_12 {dimension_numbers = #tpu.dot_dimension_numbers<[1], [0], [0], [1], [0, 0, 1, 1], [], []>} : vector<256x32xf32>, vector<32x32xf32>, vector<256x32xf32> -> vector<256x32xf32>
    %17 = arith.addf %12, %16 : vector<256x32xf32>
    %18 = vector.extract_strided_slice %5 {offsets = [9, 0], sizes = [256, 32], strides = [1, 1]} : vector<304x32xf32> to vector<256x32xf32>
    %19 = vector.broadcast %1 : vector<256x1xf32> to vector<256x32xf32>
    %20 = arith.mulf %18, %19 : vector<256x32xf32>
    %c2 = arith.constant 2 : index
    %c0_13 = arith.constant 0 : index
    %c0_14 = arith.constant 0 : index
    %21 = vector.load %arg5[%c2, %c0_13, %c0_14] : memref<9x32x32xf32, #tpu.memory_space<vmem>>, vector<1x32x32xf32>
    %22 = vector.shape_cast %21 : vector<1x32x32xf32> to vector<32x32xf32>
    %cst_15 = arith.constant dense<0.000000e+00> : vector<256x32xf32>
    %23 = tpu.matmul %20, %22, %cst_15 {dimension_numbers = #tpu.dot_dimension_numbers<[1], [0], [0], [1], [0, 0, 1, 1], [], []>} : vector<256x32xf32>, vector<32x32xf32>, vector<256x32xf32> -> vector<256x32xf32>
    %24 = arith.addf %17, %23 : vector<256x32xf32>
    %25 = vector.extract_strided_slice %5 {offsets = [23, 0], sizes = [256, 32], strides = [1, 1]} : vector<304x32xf32> to vector<256x32xf32>
    %26 = vector.broadcast %0 : vector<256x1xf32> to vector<256x32xf32>
    %27 = arith.mulf %25, %26 : vector<256x32xf32>
    %c3 = arith.constant 3 : index
    %c0_16 = arith.constant 0 : index
    %c0_17 = arith.constant 0 : index
    %28 = vector.load %arg5[%c3, %c0_16, %c0_17] : memref<9x32x32xf32, #tpu.memory_space<vmem>>, vector<1x32x32xf32>
    %29 = vector.shape_cast %28 : vector<1x32x32xf32> to vector<32x32xf32>
    %cst_18 = arith.constant dense<0.000000e+00> : vector<256x32xf32>
    %30 = tpu.matmul %27, %29, %cst_18 {dimension_numbers = #tpu.dot_dimension_numbers<[1], [0], [0], [1], [0, 0, 1, 1], [], []>} : vector<256x32xf32>, vector<32x32xf32>, vector<256x32xf32> -> vector<256x32xf32>
    %31 = arith.addf %24, %30 : vector<256x32xf32>
    %32 = vector.extract_strided_slice %5 {offsets = [24, 0], sizes = [256, 32], strides = [1, 1]} : vector<304x32xf32> to vector<256x32xf32>
    %c4 = arith.constant 4 : index
    %c0_19 = arith.constant 0 : index
    %c0_20 = arith.constant 0 : index
    %33 = vector.load %arg5[%c4, %c0_19, %c0_20] : memref<9x32x32xf32, #tpu.memory_space<vmem>>, vector<1x32x32xf32>
    %34 = vector.shape_cast %33 : vector<1x32x32xf32> to vector<32x32xf32>
    %cst_21 = arith.constant dense<0.000000e+00> : vector<256x32xf32>
    %35 = tpu.matmul %32, %34, %cst_21 {dimension_numbers = #tpu.dot_dimension_numbers<[1], [0], [0], [1], [0, 0, 1, 1], [], []>} : vector<256x32xf32>, vector<32x32xf32>, vector<256x32xf32> -> vector<256x32xf32>
    %36 = arith.addf %31, %35 : vector<256x32xf32>
    %37 = vector.extract_strided_slice %5 {offsets = [25, 0], sizes = [256, 32], strides = [1, 1]} : vector<304x32xf32> to vector<256x32xf32>
    %38 = vector.broadcast %1 : vector<256x1xf32> to vector<256x32xf32>
    %39 = arith.mulf %37, %38 : vector<256x32xf32>
    %c5 = arith.constant 5 : index
    %c0_22 = arith.constant 0 : index
    %c0_23 = arith.constant 0 : index
    %40 = vector.load %arg5[%c5, %c0_22, %c0_23] : memref<9x32x32xf32, #tpu.memory_space<vmem>>, vector<1x32x32xf32>
    %41 = vector.shape_cast %40 : vector<1x32x32xf32> to vector<32x32xf32>
    %cst_24 = arith.constant dense<0.000000e+00> : vector<256x32xf32>
    %42 = tpu.matmul %39, %41, %cst_24 {dimension_numbers = #tpu.dot_dimension_numbers<[1], [0], [0], [1], [0, 0, 1, 1], [], []>} : vector<256x32xf32>, vector<32x32xf32>, vector<256x32xf32> -> vector<256x32xf32>
    %43 = arith.addf %36, %42 : vector<256x32xf32>
    %44 = vector.extract_strided_slice %5 {offsets = [39, 0], sizes = [256, 32], strides = [1, 1]} : vector<304x32xf32> to vector<256x32xf32>
    %45 = vector.broadcast %0 : vector<256x1xf32> to vector<256x32xf32>
    %46 = arith.mulf %44, %45 : vector<256x32xf32>
    %c6 = arith.constant 6 : index
    %c0_25 = arith.constant 0 : index
    %c0_26 = arith.constant 0 : index
    %47 = vector.load %arg5[%c6, %c0_25, %c0_26] : memref<9x32x32xf32, #tpu.memory_space<vmem>>, vector<1x32x32xf32>
    %48 = vector.shape_cast %47 : vector<1x32x32xf32> to vector<32x32xf32>
    %cst_27 = arith.constant dense<0.000000e+00> : vector<256x32xf32>
    %49 = tpu.matmul %46, %48, %cst_27 {dimension_numbers = #tpu.dot_dimension_numbers<[1], [0], [0], [1], [0, 0, 1, 1], [], []>} : vector<256x32xf32>, vector<32x32xf32>, vector<256x32xf32> -> vector<256x32xf32>
    %50 = arith.addf %43, %49 : vector<256x32xf32>
    %51 = vector.extract_strided_slice %5 {offsets = [40, 0], sizes = [256, 32], strides = [1, 1]} : vector<304x32xf32> to vector<256x32xf32>
    %c7 = arith.constant 7 : index
    %c0_28 = arith.constant 0 : index
    %c0_29 = arith.constant 0 : index
    %52 = vector.load %arg5[%c7, %c0_28, %c0_29] : memref<9x32x32xf32, #tpu.memory_space<vmem>>, vector<1x32x32xf32>
    %53 = vector.shape_cast %52 : vector<1x32x32xf32> to vector<32x32xf32>
    %cst_30 = arith.constant dense<0.000000e+00> : vector<256x32xf32>
    %54 = tpu.matmul %51, %53, %cst_30 {dimension_numbers = #tpu.dot_dimension_numbers<[1], [0], [0], [1], [0, 0, 1, 1], [], []>} : vector<256x32xf32>, vector<32x32xf32>, vector<256x32xf32> -> vector<256x32xf32>
    %55 = arith.addf %50, %54 : vector<256x32xf32>
    %56 = vector.extract_strided_slice %5 {offsets = [41, 0], sizes = [256, 32], strides = [1, 1]} : vector<304x32xf32> to vector<256x32xf32>
    %57 = vector.broadcast %1 : vector<256x1xf32> to vector<256x32xf32>
    %58 = arith.mulf %56, %57 : vector<256x32xf32>
    %c8 = arith.constant 8 : index
    %c0_31 = arith.constant 0 : index
    %c0_32 = arith.constant 0 : index
    %59 = vector.load %arg5[%c8, %c0_31, %c0_32] : memref<9x32x32xf32, #tpu.memory_space<vmem>>, vector<1x32x32xf32>
    %60 = vector.shape_cast %59 : vector<1x32x32xf32> to vector<32x32xf32>
    %cst_33 = arith.constant dense<0.000000e+00> : vector<256x32xf32>
    %61 = tpu.matmul %58, %60, %cst_33 {dimension_numbers = #tpu.dot_dimension_numbers<[1], [0], [0], [1], [0, 0, 1, 1], [], []>} : vector<256x32xf32>, vector<32x32xf32>, vector<256x32xf32> -> vector<256x32xf32>
    %62 = arith.addf %55, %61 : vector<256x32xf32>
    %c0_34 = arith.constant 0 : index
    %c0_35 = arith.constant 0 : index
    %63 = vector.load %arg2[%c0_34, %c0_35] : memref<256x16xf32, #tpu.memory_space<vmem>>, vector<256x16xf32>
    %cst_36 = arith.constant 0.000000e+00 : f32
    %64 = vector.broadcast %cst_36 : f32 to vector<24x16xf32>
    %65 = tpu.concatenate %64, %63, %64 in 0 : vector<24x16xf32>, vector<256x16xf32>, vector<24x16xf32> -> vector<304x16xf32>
    %66 = vector.extract_strided_slice %65 {offsets = [7, 0], sizes = [256, 16], strides = [1, 1]} : vector<304x16xf32> to vector<256x16xf32>
    %67 = vector.broadcast %0 : vector<256x1xf32> to vector<256x16xf32>
    %68 = arith.mulf %66, %67 : vector<256x16xf32>
    %c0_37 = arith.constant 0 : index
    %c0_38 = arith.constant 0 : index
    %c0_39 = arith.constant 0 : index
    %69 = vector.load %arg6[%c0_37, %c0_38, %c0_39] : memref<9x16x32xf32, #tpu.memory_space<vmem>>, vector<1x16x32xf32>
    %70 = vector.shape_cast %69 : vector<1x16x32xf32> to vector<16x32xf32>
    %cst_40 = arith.constant dense<0.000000e+00> : vector<256x32xf32>
    %71 = tpu.matmul %68, %70, %cst_40 {dimension_numbers = #tpu.dot_dimension_numbers<[1], [0], [0], [1], [0, 0, 1, 1], [], []>} : vector<256x16xf32>, vector<16x32xf32>, vector<256x32xf32> -> vector<256x32xf32>
    %72 = arith.addf %62, %71 : vector<256x32xf32>
    %73 = vector.extract_strided_slice %65 {offsets = [8, 0], sizes = [256, 16], strides = [1, 1]} : vector<304x16xf32> to vector<256x16xf32>
    %c1_41 = arith.constant 1 : index
    %c0_42 = arith.constant 0 : index
    %c0_43 = arith.constant 0 : index
    %74 = vector.load %arg6[%c1_41, %c0_42, %c0_43] : memref<9x16x32xf32, #tpu.memory_space<vmem>>, vector<1x16x32xf32>
    %75 = vector.shape_cast %74 : vector<1x16x32xf32> to vector<16x32xf32>
    %cst_44 = arith.constant dense<0.000000e+00> : vector<256x32xf32>
    %76 = tpu.matmul %73, %75, %cst_44 {dimension_numbers = #tpu.dot_dimension_numbers<[1], [0], [0], [1], [0, 0, 1, 1], [], []>} : vector<256x16xf32>, vector<16x32xf32>, vector<256x32xf32> -> vector<256x32xf32>
    %77 = arith.addf %72, %76 : vector<256x32xf32>
    %78 = vector.extract_strided_slice %65 {offsets = [9, 0], sizes = [256, 16], strides = [1, 1]} : vector<304x16xf32> to vector<256x16xf32>
    %79 = vector.broadcast %1 : vector<256x1xf32> to vector<256x16xf32>
    %80 = arith.mulf %78, %79 : vector<256x16xf32>
    %c2_45 = arith.constant 2 : index
    %c0_46 = arith.constant 0 : index
    %c0_47 = arith.constant 0 : index
    %81 = vector.load %arg6[%c2_45, %c0_46, %c0_47] : memref<9x16x32xf32, #tpu.memory_space<vmem>>, vector<1x16x32xf32>
    %82 = vector.shape_cast %81 : vector<1x16x32xf32> to vector<16x32xf32>
    %cst_48 = arith.constant dense<0.000000e+00> : vector<256x32xf32>
    %83 = tpu.matmul %80, %82, %cst_48 {dimension_numbers = #tpu.dot_dimension_numbers<[1], [0], [0], [1], [0, 0, 1, 1], [], []>} : vector<256x16xf32>, vector<16x32xf32>, vector<256x32xf32> -> vector<256x32xf32>
    %84 = arith.addf %77, %83 : vector<256x32xf32>
    %85 = vector.extract_strided_slice %65 {offsets = [23, 0], sizes = [256, 16], strides = [1, 1]} : vector<304x16xf32> to vector<256x16xf32>
    %86 = vector.broadcast %0 : vector<256x1xf32> to vector<256x16xf32>
    %87 = arith.mulf %85, %86 : vector<256x16xf32>
    %c3_49 = arith.constant 3 : index
    %c0_50 = arith.constant 0 : index
    %c0_51 = arith.constant 0 : index
    %88 = vector.load %arg6[%c3_49, %c0_50, %c0_51] : memref<9x16x32xf32, #tpu.memory_space<vmem>>, vector<1x16x32xf32>
    %89 = vector.shape_cast %88 : vector<1x16x32xf32> to vector<16x32xf32>
    %cst_52 = arith.constant dense<0.000000e+00> : vector<256x32xf32>
    %90 = tpu.matmul %87, %89, %cst_52 {dimension_numbers = #tpu.dot_dimension_numbers<[1], [0], [0], [1], [0, 0, 1, 1], [], []>} : vector<256x16xf32>, vector<16x32xf32>, vector<256x32xf32> -> vector<256x32xf32>
    %91 = arith.addf %84, %90 : vector<256x32xf32>
    %92 = vector.extract_strided_slice %65 {offsets = [24, 0], sizes = [256, 16], strides = [1, 1]} : vector<304x16xf32> to vector<256x16xf32>
    %c4_53 = arith.constant 4 : index
    %c0_54 = arith.constant 0 : index
    %c0_55 = arith.constant 0 : index
    %93 = vector.load %arg6[%c4_53, %c0_54, %c0_55] : memref<9x16x32xf32, #tpu.memory_space<vmem>>, vector<1x16x32xf32>
    %94 = vector.shape_cast %93 : vector<1x16x32xf32> to vector<16x32xf32>
    %cst_56 = arith.constant dense<0.000000e+00> : vector<256x32xf32>
    %95 = tpu.matmul %92, %94, %cst_56 {dimension_numbers = #tpu.dot_dimension_numbers<[1], [0], [0], [1], [0, 0, 1, 1], [], []>} : vector<256x16xf32>, vector<16x32xf32>, vector<256x32xf32> -> vector<256x32xf32>
    %96 = arith.addf %91, %95 : vector<256x32xf32>
    %97 = vector.extract_strided_slice %65 {offsets = [25, 0], sizes = [256, 16], strides = [1, 1]} : vector<304x16xf32> to vector<256x16xf32>
    %98 = vector.broadcast %1 : vector<256x1xf32> to vector<256x16xf32>
    %99 = arith.mulf %97, %98 : vector<256x16xf32>
    %c5_57 = arith.constant 5 : index
    %c0_58 = arith.constant 0 : index
    %c0_59 = arith.constant 0 : index
    %100 = vector.load %arg6[%c5_57, %c0_58, %c0_59] : memref<9x16x32xf32, #tpu.memory_space<vmem>>, vector<1x16x32xf32>
    %101 = vector.shape_cast %100 : vector<1x16x32xf32> to vector<16x32xf32>
    %cst_60 = arith.constant dense<0.000000e+00> : vector<256x32xf32>
    %102 = tpu.matmul %99, %101, %cst_60 {dimension_numbers = #tpu.dot_dimension_numbers<[1], [0], [0], [1], [0, 0, 1, 1], [], []>} : vector<256x16xf32>, vector<16x32xf32>, vector<256x32xf32> -> vector<256x32xf32>
    %103 = arith.addf %96, %102 : vector<256x32xf32>
    %104 = vector.extract_strided_slice %65 {offsets = [39, 0], sizes = [256, 16], strides = [1, 1]} : vector<304x16xf32> to vector<256x16xf32>
    %105 = vector.broadcast %0 : vector<256x1xf32> to vector<256x16xf32>
    %106 = arith.mulf %104, %105 : vector<256x16xf32>
    %c6_61 = arith.constant 6 : index
    %c0_62 = arith.constant 0 : index
    %c0_63 = arith.constant 0 : index
    %107 = vector.load %arg6[%c6_61, %c0_62, %c0_63] : memref<9x16x32xf32, #tpu.memory_space<vmem>>, vector<1x16x32xf32>
    %108 = vector.shape_cast %107 : vector<1x16x32xf32> to vector<16x32xf32>
    %cst_64 = arith.constant dense<0.000000e+00> : vector<256x32xf32>
    %109 = tpu.matmul %106, %108, %cst_64 {dimension_numbers = #tpu.dot_dimension_numbers<[1], [0], [0], [1], [0, 0, 1, 1], [], []>} : vector<256x16xf32>, vector<16x32xf32>, vector<256x32xf32> -> vector<256x32xf32>
    %110 = arith.addf %103, %109 : vector<256x32xf32>
    %111 = vector.extract_strided_slice %65 {offsets = [40, 0], sizes = [256, 16], strides = [1, 1]} : vector<304x16xf32> to vector<256x16xf32>
    %c7_65 = arith.constant 7 : index
    %c0_66 = arith.constant 0 : index
    %c0_67 = arith.constant 0 : index
    %112 = vector.load %arg6[%c7_65, %c0_66, %c0_67] : memref<9x16x32xf32, #tpu.memory_space<vmem>>, vector<1x16x32xf32>
    %113 = vector.shape_cast %112 : vector<1x16x32xf32> to vector<16x32xf32>
    %cst_68 = arith.constant dense<0.000000e+00> : vector<256x32xf32>
    %114 = tpu.matmul %111, %113, %cst_68 {dimension_numbers = #tpu.dot_dimension_numbers<[1], [0], [0], [1], [0, 0, 1, 1], [], []>} : vector<256x16xf32>, vector<16x32xf32>, vector<256x32xf32> -> vector<256x32xf32>
    %115 = arith.addf %110, %114 : vector<256x32xf32>
    %116 = vector.extract_strided_slice %65 {offsets = [41, 0], sizes = [256, 16], strides = [1, 1]} : vector<304x16xf32> to vector<256x16xf32>
    %117 = vector.broadcast %1 : vector<256x1xf32> to vector<256x16xf32>
    %118 = arith.mulf %116, %117 : vector<256x16xf32>
    %c8_69 = arith.constant 8 : index
    %c0_70 = arith.constant 0 : index
    %c0_71 = arith.constant 0 : index
    %119 = vector.load %arg6[%c8_69, %c0_70, %c0_71] : memref<9x16x32xf32, #tpu.memory_space<vmem>>, vector<1x16x32xf32>
    %120 = vector.shape_cast %119 : vector<1x16x32xf32> to vector<16x32xf32>
    %cst_72 = arith.constant dense<0.000000e+00> : vector<256x32xf32>
    %121 = tpu.matmul %118, %120, %cst_72 {dimension_numbers = #tpu.dot_dimension_numbers<[1], [0], [0], [1], [0, 0, 1, 1], [], []>} : vector<256x16xf32>, vector<16x32xf32>, vector<256x32xf32> -> vector<256x32xf32>
    %122 = arith.addf %115, %121 : vector<256x32xf32>
    %c0_73 = arith.constant 0 : index
    %c0_74 = arith.constant 0 : index
    %123 = vector.load %arg7[%c0_73, %c0_74] : memref<1x32xf32, #tpu.memory_space<vmem>>, vector<1x32xf32>
    %124 = vector.broadcast %123 : vector<1x32xf32> to vector<256x32xf32>
    %125 = arith.mulf %122, %124 : vector<256x32xf32>
    %c0_75 = arith.constant 0 : index
    %c0_76 = arith.constant 0 : index
    %126 = vector.load %arg8[%c0_75, %c0_76] : memref<1x32xf32, #tpu.memory_space<vmem>>, vector<1x32xf32>
    %127 = vector.broadcast %126 : vector<1x32xf32> to vector<256x32xf32>
    %128 = arith.addf %125, %127 : vector<256x32xf32>
    %cst_77 = arith.constant 0.000000e+00 : f32
    %129 = vector.broadcast %cst_77 : f32 to vector<256x32xf32>
    %130 = arith.maximumf %128, %129 : vector<256x32xf32>
    %c0_78 = arith.constant 0 : index
    %c0_79 = arith.constant 0 : index
    %131 = vector.load %arg9[%c0_78, %c0_79] : memref<32x32xf32, #tpu.memory_space<vmem>>, vector<32x32xf32>
    %cst_80 = arith.constant dense<0.000000e+00> : vector<256x32xf32>
    %132 = tpu.matmul %130, %131, %cst_80 {dimension_numbers = #tpu.dot_dimension_numbers<[1], [0], [0], [1], [0, 0, 1, 1], [], []>} : vector<256x32xf32>, vector<32x32xf32>, vector<256x32xf32> -> vector<256x32xf32>
    %c0_81 = arith.constant 0 : index
    %c0_82 = arith.constant 0 : index
    %133 = vector.load %arg10[%c0_81, %c0_82] : memref<1x32xf32, #tpu.memory_space<vmem>>, vector<1x32xf32>
    %134 = vector.broadcast %133 : vector<1x32xf32> to vector<256x32xf32>
    %135 = arith.mulf %132, %134 : vector<256x32xf32>
    %c0_83 = arith.constant 0 : index
    %c0_84 = arith.constant 0 : index
    %136 = vector.load %arg11[%c0_83, %c0_84] : memref<1x32xf32, #tpu.memory_space<vmem>>, vector<1x32xf32>
    %137 = vector.broadcast %136 : vector<1x32xf32> to vector<256x32xf32>
    %138 = arith.addf %135, %137 : vector<256x32xf32>
    %cst_85 = arith.constant 0.000000e+00 : f32
    %139 = vector.broadcast %cst_85 : f32 to vector<256x32xf32>
    %140 = arith.maximumf %138, %139 : vector<256x32xf32>
    %c0_86 = arith.constant 0 : index
    %c0_87 = arith.constant 0 : index
    %141 = vector.load %arg12[%c0_86, %c0_87] : memref<256x32xf32, #tpu.memory_space<vmem>>, vector<256x32xf32>
    tpu.vector_store %arg12[%c0_86, %c0_87], %140 {strides = array<i32>} : memref<256x32xf32, #tpu.memory_space<vmem>>, vector<256x32xf32>,
    return
  }
  func.func @transform_0(%arg0: i32) -> (i32, i32) {
    %c0_i32 = arith.constant 0 : i32
    %c0_i32_0 = arith.constant 0 : i32
    return %arg0, %c0_i32 : i32, i32
  }
  func.func @transform_1(%arg0: i32) -> (i32, i32) {
    %c0_i32 = arith.constant 0 : i32
    %c0_i32_0 = arith.constant 0 : i32
    return %arg0, %c0_i32 : i32, i32
  }
  func.func @transform_2(%arg0: i32) -> (i32, i32) {
    %c0_i32 = arith.constant 0 : i32
    %c0_i32_0 = arith.constant 0 : i32
    %c0_i32_1 = arith.constant 0 : i32
    return %c0_i32, %c0_i32_0 : i32, i32
  }
  func.func @transform_3(%arg0: i32) -> (i32, i32) {
    %c0_i32 = arith.constant 0 : i32
    %c0_i32_0 = arith.constant 0 : i32
    %c0_i32_1 = arith.constant 0 : i32
    return %c0_i32, %c0_i32_0 : i32, i32
  }
  func.func @transform_4(%arg0: i32) -> (i32, i32, i32) {
    %c0_i32 = arith.constant 0 : i32
    %c0_i32_0 = arith.constant 0 : i32
    %c0_i32_1 = arith.constant 0 : i32
    %c0_i32_2 = arith.constant 0 : i32
    return %c0_i32, %c0_i32_0, %c0_i32_1 : i32, i32, i32
  }
  func.func @transform_5(%arg0: i32) -> (i32, i32, i32) {
    %c0_i32 = arith.constant 0 : i32
    %c0_i32_0 = arith.constant 0 : i32
    %c0_i32_1 = arith.constant 0 : i32
    %c0_i32_2 = arith.constant 0 : i32
    return %c0_i32, %c0_i32_0, %c0_i32_1 : i32, i32, i32
  }
  func.func @transform_6(%arg0: i32) -> (i32, i32) {
    %c0_i32 = arith.constant 0 : i32
    %c0_i32_0 = arith.constant 0 : i32
    %c0_i32_1 = arith.constant 0 : i32
    return %c0_i32, %c0_i32_0 : i32, i32
  }
  func.func @transform_7(%arg0: i32) -> (i32, i32) {
    %c0_i32 = arith.constant 0 : i32
    %c0_i32_0 = arith.constant 0 : i32
    %c0_i32_1 = arith.constant 0 : i32
    return %c0_i32, %c0_i32_0 : i32, i32
  }
  func.func @transform_8(%arg0: i32) -> (i32, i32) {
    %c0_i32 = arith.constant 0 : i32
    %c0_i32_0 = arith.constant 0 : i32
    %c0_i32_1 = arith.constant 0 : i32
    return %c0_i32, %c0_i32_0 : i32, i32
  }
  func.func @transform_9(%arg0: i32) -> (i32, i32) {
    %c0_i32 = arith.constant 0 : i32
    %c0_i32_0 = arith.constant 0 : i32
    %c0_i32_1 = arith.constant 0 : i32
    return %c0_i32, %c0_i32_0 : i32, i32
  }
  func.func @transform_10(%arg0: i32) -> (i32, i32) {
    %c0_i32 = arith.constant 0 : i32
    %c0_i32_0 = arith.constant 0 : i32
    %c0_i32_1 = arith.constant 0 : i32
    return %c0_i32, %c0_i32_0 : i32, i32
  }
  func.func @transform_11(%arg0: i32) -> (i32, i32) {
    %c0_i32 = arith.constant 0 : i32
    %c0_i32_0 = arith.constant 0 : i32
    return %arg0, %c0_i32 : i32, i32
  }
}

</mosaic_0001>

<llo_original>
// kernel: _lambda_.1
$region0: #{_lambda_.1}
  #allocation0 [shape = 'u32[]', space=smem, size = 0x4, offset = 0x4, fixed_abs, tag = 'smem constant byte address 0x4 - core index']
  #allocation1 [shape = 'u32[72,128]{1,0:T(1,128)}', space=vmem, size = 0x9000, scoped, tag = 'internal scratch']
  %s0 = inlined_call_operand.vmem [shape: f32[512,32], index: 0, kind: input, shape index: {}]
  %s1 = inlined_call_operand.vmem [shape: f32[512,16], index: 1, kind: input, shape index: {}]
  %s2 = inlined_call_operand.vmem [shape: f32[256,1], index: 2, kind: input, shape index: {}]
  %s3 = inlined_call_operand.vmem [shape: f32[256,1], index: 3, kind: input, shape index: {}]
  %s4 = inlined_call_operand.vmem [shape: f32[9,32,32], index: 4, kind: input, shape index: {}]
  %s5 = inlined_call_operand.vmem [shape: f32[9,16,32], index: 5, kind: input, shape index: {}]
  %s6 = inlined_call_operand.vmem [shape: f32[1,32], index: 6, kind: input, shape index: {}]
  %s7 = inlined_call_operand.vmem [shape: f32[1,32], index: 7, kind: input, shape index: {}]
  %s8 = inlined_call_operand.vmem [shape: f32[32,32], index: 8, kind: input, shape index: {}]
  %s9 = inlined_call_operand.vmem [shape: f32[1,32], index: 9, kind: input, shape index: {}]
  %s10 = inlined_call_operand.vmem [shape: f32[1,32], index: 10, kind: input, shape index: {}]
  %s11 = inlined_call_operand.hbm [shape: f32[512,32], index: 11, kind: output, shape index: {}]
  %s12 = sld [smem:[#allocation0]]
  $region77: #{_lambda_.1} parent=0
    _
  %s14 = ssub.s32 1, %s12
  %s15 = scalar_select 0, %s14, %s12
  $region1: #{_lambda_.1} parent=0
    #allocation2 [shape = 'u8[262144]{0}', space=vmem, size = 0x40000, scoped, tag = 'output window, operand 0']
    #allocation3 [shape = 's32[2]{0}', space=sflag, size = 0x8, scoped, tag = 'scoped memory for _lambda_.1']
    %16 = vsyncpa [#allocation3], 0
    %s17 = scalar_lea.sflag [#allocation3], 1
    %18 = vsyncpa %s17, 0
    loop: start=0, step=1, limit=4
    $region2: #{_lambda_.1} parent=1 // loop_pre_header
      _
    $region3: #{_lambda_.1} parent=1 // loop_header
      %s20 = sphi 0, %s24
      %p21 = scmp.ge.s32.totalorder %s20, 4
      %s30 = sphi 0, %s32
      %s33 = sphi 0, %s30
      %s34 = sphi 0, %s33
      %s50 = sphi 0, %s34
      %s56 = sphi 0, %s58
      %s59 = sphi 0, %s56
      %s60 = sphi 0, %s59
      %s76 = sphi 0, %s60
      %s80 = sphi 0, %s80
      %s82 = sphi 0, %s80
      %s83 = sphi 0, %s82
      %s97 = sphi 0, %s83
      %s101 = sphi 0, %s101
      %s103 = sphi 0, %s101
      %s104 = sphi 0, %s103
      %s118 = sphi 0, %s104
      %s122 = sphi 0, %s122
      %s124 = sphi 0, %s122
      %s125 = sphi 0, %s124
      %s139 = sphi 0, %s125
      %s143 = sphi 0, %s143
      %s145 = sphi 0, %s143
      %s146 = sphi 0, %s145
      %s160 = sphi 0, %s146
      %s164 = sphi 0, %s164
      %s166 = sphi 0, %s164
      %s167 = sphi 0, %s166
      %s181 = sphi 0, %s167
      %s185 = sphi 0, %s185
      %s187 = sphi 0, %s185
      %s188 = sphi 0, %s187
      %s202 = sphi 0, %s188
      %s206 = sphi 0, %s206
      %s208 = sphi 0, %s206
      %s209 = sphi 0, %s208
      %s223 = sphi 0, %s209
      %s227 = sphi 0, %s227
      %s229 = sphi 0, %s227
      %s230 = sphi 0, %s229
      %s244 = sphi 0, %s230
      %s248 = sphi 0, %s248
      %s250 = sphi 0, %s248
      %s251 = sphi 0, %s250
      %s265 = sphi 0, %s251
      %s271 = sphi 0, %s273
      %s274 = sphi 0, %s271
      %s275 = sphi 0, %s274
      %s291 = sphi 0, %s275
    $region4: #{_lambda_.1} parent=1 // loop_header_branch
      %23 = sbr.rel (%p21) target = $region8
    $region5: #{_lambda_.1} parent=1 // loop_body
      %s25 = ssub.s32 %s20, 1
      %s26 = ssub.s32 %s20, 2
      %s27 = sadd.s32 %s20, 1
      %s28 = ssub.s32 %s20, %s27
      %p29 = scmp.eq.s32.totalorder %s28, 0
      %s31 = sadd.s32 %s30, 1
      %s32 = scalar_select %p29, %s30, %s31
      %p35 = pneg %p29
      %p36 = scmp.eq.s32.totalorder %s20, 1
      %p37 = por %p35, %p36
      %p38 = scmp.ne.s32.totalorder %s30, %s33
      %p39 = scmp.eq.s32.totalorder %s20, 0
      %p40 = por %p38, %p39
      %p41 = scmp.ne.s32.totalorder %s30, %s33
      %p42 = scmp.eq.s32.totalorder %s25, 1
      %p43 = por %p41, %p42
      %p44 = scmp.ne.s32.totalorder %s33, %s34
      %p45 = scmp.eq.s32.totalorder %s25, 0
      %p46 = por %p44, %p45
      %p47 = scmp.ne.s32.totalorder %s33, %s34
      %p48 = scmp.eq.s32.totalorder %s26, 1
      %p49 = por %p47, %p48
      %p51 = scmp.ne.s32.totalorder %s34, %s50
      %p52 = scmp.eq.s32.totalorder %s26, 0
      %p53 = por %p51, %p52
      %s54 = ssub.s32 %s20, %s27
      %p55 = scmp.eq.s32.totalorder %s54, 0
      %s57 = sadd.s32 %s56, 1
      %s58 = scalar_select %p55, %s56, %s57
      %p61 = pneg %p55
      %p62 = scmp.eq.s32.totalorder %s20, 1
      %p63 = por %p61, %p62
      %p64 = scmp.ne.s32.totalorder %s56, %s59
      %p65 = scmp.eq.s32.totalorder %s20, 0
      %p66 = por %p64, %p65
      %p67 = scmp.ne.s32.totalorder %s56, %s59
      %p68 = scmp.eq.s32.totalorder %s25, 1
      %p69 = por %p67, %p68
      %p70 = scmp.ne.s32.totalorder %s59, %s60
      %p71 = scmp.eq.s32.totalorder %s25, 0
      %p72 = por %p70, %p71
      %p73 = scmp.ne.s32.totalorder %s59, %s60
      %p74 = scmp.eq.s32.totalorder %s26, 1
      %p75 = por %p73, %p74
      %p77 = scmp.ne.s32.totalorder %s60, %s76
      %p78 = scmp.eq.s32.totalorder %s26, 0
      %p79 = por %p77, %p78
      %s81 = sadd.s32 %s80, 1
      %p84 = scmp.eq.s32.totalorder %s20, 1
      %p85 = scmp.ne.s32.totalorder %s80, %s82
      %p86 = scmp.eq.s32.totalorder %s20, 0
      %p87 = por %p85, %p86
      %p88 = scmp.ne.s32.totalorder %s80, %s82
      %p89 = scmp.eq.s32.totalorder %s25, 1
      %p90 = por %p88, %p89
      %p91 = scmp.ne.s32.totalorder %s82, %s83
      %p92 = scmp.eq.s32.totalorder %s25, 0
      %p93 = por %p91, %p92
      %p94 = scmp.ne.s32.totalorder %s82, %s83
      %p95 = scmp.eq.s32.totalorder %s26, 1
      %p96 = por %p94, %p95
      %p98 = scmp.ne.s32.totalorder %s83, %s97
      %p99 = scmp.eq.s32.totalorder %s26, 0
      %p100 = por %p98, %p99
      %s102 = sadd.s32 %s101, 1
      %p105 = scmp.eq.s32.totalorder %s20, 1
      %p106 = scmp.ne.s32.totalorder %s101, %s103
      %p107 = scmp.eq.s32.totalorder %s20, 0
      %p108 = por %p106, %p107
      %p109 = scmp.ne.s32.totalorder %s101, %s103
      %p110 = scmp.eq.s32.totalorder %s25, 1
      %p111 = por %p109, %p110
      %p112 = scmp.ne.s32.totalorder %s103, %s104
      %p113 = scmp.eq.s32.totalorder %s25, 0
      %p114 = por %p112, %p113
      %p115 = scmp.ne.s32.totalorder %s103, %s104
      %p116 = scmp.eq.s32.totalorder %s26, 1
      %p117 = por %p115, %p116
      %p119 = scmp.ne.s32.totalorder %s104, %s118
      %p120 = scmp.eq.s32.totalorder %s26, 0
      %p121 = por %p119, %p120
      %s123 = sadd.s32 %s122, 1
      %p126 = scmp.eq.s32.totalorder %s20, 1
      %p127 = scmp.ne.s32.totalorder %s122, %s124
      %p128 = scmp.eq.s32.totalorder %s20, 0
      %p129 = por %p127, %p128
      %p130 = scmp.ne.s32.totalorder %s122, %s124
      %p131 = scmp.eq.s32.totalorder %s25, 1
      %p132 = por %p130, %p131
      %p133 = scmp.ne.s32.totalorder %s124, %s125
      %p134 = scmp.eq.s32.totalorder %s25, 0
      %p135 = por %p133, %p134
      %p136 = scmp.ne.s32.totalorder %s124, %s125
      %p137 = scmp.eq.s32.totalorder %s26, 1
      %p138 = por %p136, %p137
      %p140 = scmp.ne.s32.totalorder %s125, %s139
      %p141 = scmp.eq.s32.totalorder %s26, 0
      %p142 = por %p140, %p141
      %s144 = sadd.s32 %s143, 1
      %p147 = scmp.eq.s32.totalorder %s20, 1
      %p148 = scmp.ne.s32.totalorder %s143, %s145
      %p149 = scmp.eq.s32.totalorder %s20, 0
      %p150 = por %p148, %p149
      %p151 = scmp.ne.s32.totalorder %s143, %s145
      %p152 = scmp.eq.s32.totalorder %s25, 1
      %p153 = por %p151, %p152
      %p154 = scmp.ne.s32.totalorder %s145, %s146
      %p155 = scmp.eq.s32.totalorder %s25, 0
      %p156 = por %p154, %p155
      %p157 = scmp.ne.s32.totalorder %s145, %s146
      %p158 = scmp.eq.s32.totalorder %s26, 1
      %p159 = por %p157, %p158
      %p161 = scmp.ne.s32.totalorder %s146, %s160
      %p162 = scmp.eq.s32.totalorder %s26, 0
      %p163 = por %p161, %p162
      %s165 = sadd.s32 %s164, 1
      %p168 = scmp.eq.s32.totalorder %s20, 1
      %p169 = scmp.ne.s32.totalorder %s164, %s166
      %p170 = scmp.eq.s32.totalorder %s20, 0
      %p171 = por %p169, %p170
      %p172 = scmp.ne.s32.totalorder %s164, %s166
      %p173 = scmp.eq.s32.totalorder %s25, 1
      %p174 = por %p172, %p173
      %p175 = scmp.ne.s32.totalorder %s166, %s167
      %p176 = scmp.eq.s32.totalorder %s25, 0
      %p177 = por %p175, %p176
      %p178 = scmp.ne.s32.totalorder %s166, %s167
      %p179 = scmp.eq.s32.totalorder %s26, 1
      %p180 = por %p178, %p179
      %p182 = scmp.ne.s32.totalorder %s167, %s181
      %p183 = scmp.eq.s32.totalorder %s26, 0
      %p184 = por %p182, %p183
      %s186 = sadd.s32 %s185, 1
      %p189 = scmp.eq.s32.totalorder %s20, 1
      %p190 = scmp.ne.s32.totalorder %s185, %s187
      %p191 = scmp.eq.s32.totalorder %s20, 0
      %p192 = por %p190, %p191
      %p193 = scmp.ne.s32.totalorder %s185, %s187
      %p194 = scmp.eq.s32.totalorder %s25, 1
      %p195 = por %p193, %p194
      %p196 = scmp.ne.s32.totalorder %s187, %s188
      %p197 = scmp.eq.s32.totalorder %s25, 0
      %p198 = por %p196, %p197
      %p199 = scmp.ne.s32.totalorder %s187, %s188
      %p200 = scmp.eq.s32.totalorder %s26, 1
      %p201 = por %p199, %p200
      %p203 = scmp.ne.s32.totalorder %s188, %s202
      %p204 = scmp.eq.s32.totalorder %s26, 0
      %p205 = por %p203, %p204
      %s207 = sadd.s32 %s206, 1
      %p210 = scmp.eq.s32.totalorder %s20, 1
      %p211 = scmp.ne.s32.totalorder %s206, %s208
      %p212 = scmp.eq.s32.totalorder %s20, 0
      %p213 = por %p211, %p212
      %p214 = scmp.ne.s32.totalorder %s206, %s208
      %p215 = scmp.eq.s32.totalorder %s25, 1
      %p216 = por %p214, %p215
      %p217 = scmp.ne.s32.totalorder %s208, %s209
      %p218 = scmp.eq.s32.totalorder %s25, 0
      %p219 = por %p217, %p218
      %p220 = scmp.ne.s32.totalorder %s208, %s209
      %p221 = scmp.eq.s32.totalorder %s26, 1
      %p222 = por %p220, %p221
      %p224 = scmp.ne.s32.totalorder %s209, %s223
      %p225 = scmp.eq.s32.totalorder %s26, 0
      %p226 = por %p224, %p225
      %s228 = sadd.s32 %s227, 1
      %p231 = scmp.eq.s32.totalorder %s20, 1
      %p232 = scmp.ne.s32.totalorder %s227, %s229
      %p233 = scmp.eq.s32.totalorder %s20, 0
      %p234 = por %p232, %p233
      %p235 = scmp.ne.s32.totalorder %s227, %s229
      %p236 = scmp.eq.s32.totalorder %s25, 1
      %p237 = por %p235, %p236
      %p238 = scmp.ne.s32.totalorder %s229, %s230
      %p239 = scmp.eq.s32.totalorder %s25, 0
      %p240 = por %p238, %p239
      %p241 = scmp.ne.s32.totalorder %s229, %s230
      %p242 = scmp.eq.s32.totalorder %s26, 1
      %p243 = por %p241, %p242
      %p245 = scmp.ne.s32.totalorder %s230, %s244
      %p246 = scmp.eq.s32.totalorder %s26, 0
      %p247 = por %p245, %p246
      %s249 = sadd.s32 %s248, 1
      %p252 = scmp.eq.s32.totalorder %s20, 1
      %p253 = scmp.ne.s32.totalorder %s248, %s250
      %p254 = scmp.eq.s32.totalorder %s20, 0
      %p255 = por %p253, %p254
      %p256 = scmp.ne.s32.totalorder %s248, %s250
      %p257 = scmp.eq.s32.totalorder %s25, 1
      %p258 = por %p256, %p257
      %p259 = scmp.ne.s32.totalorder %s250, %s251
      %p260 = scmp.eq.s32.totalorder %s25, 0
      %p261 = por %p259, %p260
      %p262 = scmp.ne.s32.totalorder %s250, %s251
      %p263 = scmp.eq.s32.totalorder %s26, 1
      %p264 = por %p262, %p263
      %p266 = scmp.ne.s32.totalorder %s251, %s265
      %p267 = scmp.eq.s32.totalorder %s26, 0
      %p268 = por %p266, %p267
      %s269 = ssub.s32 %s20, %s27
      %p270 = scmp.eq.s32.totalorder %s269, 0
      %s272 = sadd.s32 %s271, 1
      %s273 = scalar_select %p270, %s271, %s272
      %p276 = pneg %p270
      %p277 = scmp.eq.s32.totalorder %s20, 1
      %p278 = por %p276, %p277
      %p279 = scmp.ne.s32.totalorder %s271, %s274
      %p280 = scmp.eq.s32.totalorder %s20, 0
      %p281 = por %p279, %p280
      %p282 = scmp.ne.s32.totalorder %s271, %s274
      %p283 = scmp.eq.s32.totalorder %s25, 1
      %p284 = por %p282, %p283
      %p285 = scmp.ne.s32.totalorder %s274, %s275
      %p286 = scmp.eq.s32.totalorder %s25, 0
      %p287 = por %p285, %p286
      %p288 = scmp.ne.s32.totalorder %s274, %s275
      %p289 = scmp.eq.s32.totalorder %s26, 1
      %p290 = por %p288, %p289
      %p292 = scmp.ne.s32.totalorder %s275, %s291
      %p293 = scmp.eq.s32.totalorder %s26, 0
      %p294 = por %p292, %p293
      %p295 = scmp.le.s32.totalorder 1, %s20
      %p296 = scmp.lt.s32.totalorder %s20, 3
      %p297 = pnand %p295, %p296
      %p298 = pneg %p297
      // Predicated region
      $region9: #{_lambda_.1} parent=5 // pred_check
        _
      $region10: #{_lambda_.1} parent=5 // pred_check_branch
        %300 = sbr.rel (%p297) target = $region12
      $region11: #{_lambda_.1} parent=5 // pred_region
        %s301 = ssub.s32 %s20, 1
        // Predicated region
        $region13: #{_lambda_.1} parent=11 // pred_check
          %p302 = pneg %p93
        $region14: #{_lambda_.1} parent=11 // pred_check_branch
          %304 = sbr.rel (%p302) target = $region16
        $region15: #{_lambda_.1} parent=11 // pred_region
          _
        $region16: #{_lambda_.1} parent=11 // pred_fallthru
          _
        // Predicated region
        $region17: #{_lambda_.1} parent=11 // pred_check
          %p305 = pneg %p114
        $region18: #{_lambda_.1} parent=11 // pred_check_branch
          %307 = sbr.rel (%p305) target = $region20
        $region19: #{_lambda_.1} parent=11 // pred_region
          _
        $region20: #{_lambda_.1} parent=11 // pred_fallthru
          _
        // Predicated region
        $region21: #{_lambda_.1} parent=11 // pred_check
          %p308 = pneg %p135
        $region22: #{_lambda_.1} parent=11 // pred_check_branch
          %310 = sbr.rel (%p308) target = $region24
        $region23: #{_lambda_.1} parent=11 // pred_region
          _
        $region24: #{_lambda_.1} parent=11 // pred_fallthru
          _
        // Predicated region
        $region25: #{_lambda_.1} parent=11 // pred_check
          %p311 = pneg %p156
        $region26: #{_lambda_.1} parent=11 // pred_check_branch
          %313 = sbr.rel (%p311) target = $region28
        $region27: #{_lambda_.1} parent=11 // pred_region
          _
        $region28: #{_lambda_.1} parent=11 // pred_fallthru
          _
        // Predicated region
        $region29: #{_lambda_.1} parent=11 // pred_check
          %p314 = pneg %p177
        $region30: #{_lambda_.1} parent=11 // pred_check_branch
          %316 = sbr.rel (%p314) target = $region32
        $region31: #{_lambda_.1} parent=11 // pred_region
          _
        $region32: #{_lambda_.1} parent=11 // pred_fallthru
          _
        // Predicated region
        $region33: #{_lambda_.1} parent=11 // pred_check
          %p317 = pneg %p198
        $region34: #{_lambda_.1} parent=11 // pred_check_branch
          %319 = sbr.rel (%p317) target = $region36
        $region35: #{_lambda_.1} parent=11 // pred_region
          _
        $region36: #{_lambda_.1} parent=11 // pred_fallthru
          _
        // Predicated region
        $region37: #{_lambda_.1} parent=11 // pred_check
          %p320 = pneg %p219
        $region38: #{_lambda_.1} parent=11 // pred_check_branch
          %322 = sbr.rel (%p320) target = $region40
        $region39: #{_lambda_.1} parent=11 // pred_region
          _
        $region40: #{_lambda_.1} parent=11 // pred_fallthru
          _
        // Predicated region
        $region41: #{_lambda_.1} parent=11 // pred_check
          %p323 = pneg %p240
        $region42: #{_lambda_.1} parent=11 // pred_check_branch
          %325 = sbr.rel (%p323) target = $region44
        $region43: #{_lambda_.1} parent=11 // pred_region
          _
        $region44: #{_lambda_.1} parent=11 // pred_fallthru
          _
        // Predicated region
        $region45: #{_lambda_.1} parent=11 // pred_check
          %p326 = pneg %p261
        $region46: #{_lambda_.1} parent=11 // pred_check_branch
          %328 = sbr.rel (%p326) target = $region48
        $region47: #{_lambda_.1} parent=11 // pred_region
          _
        $region48: #{_lambda_.1} parent=11 // pred_fallthru
          _
      $region12: #{_lambda_.1} parent=5 // pred_fallthru
        _
      %p329 = scmp.lt.s32.totalorder %s20, 2
      // Predicated region
      $region49: #{_lambda_.1} parent=5 // pred_check
        %p330 = pneg %p329
      $region50: #{_lambda_.1} parent=5 // pred_check_branch
        %332 = sbr.rel (%p330) target = $region52
      $region51: #{_lambda_.1} parent=5 // pred_region
        // Predicated region
        $region53: #{_lambda_.1} parent=51 // pred_check
          %p333 = pneg %p40
        $region54: #{_lambda_.1} parent=51 // pred_check_branch
          %335 = sbr.rel (%p333) target = $region56
        $region55: #{_lambda_.1} parent=51 // pred_region
          %s336 = smul.u32 32, %s20
          %p337 = scmp.lt.s32.totalorder %s336, 63
          %s338 = scalar_select %p337, %s336, 63
          %s339 = smul.addr %s338, 8
          %s340 = scalar_lea.vmem %s0, %s339
          %s341 = smul.u32 32, %s20
        $region56: #{_lambda_.1} parent=51 // pred_fallthru
          _
        // Predicated region
        $region57: #{_lambda_.1} parent=51 // pred_check
          %p342 = pneg %p66
        $region58: #{_lambda_.1} parent=51 // pred_check_branch
          %344 = sbr.rel (%p342) target = $region60
        $region59: #{_lambda_.1} parent=51 // pred_region
          %s345 = smul.u32 32, %s20
          %p346 = scmp.lt.s32.totalorder %s345, 63
          %s347 = scalar_select %p346, %s345, 63
          %s348 = smul.addr %s347, 8
          %s349 = scalar_lea.vmem %s1, %s348
          %s350 = smul.u32 32, %s20
        $region60: #{_lambda_.1} parent=51 // pred_fallthru
          _
      $region52: #{_lambda_.1} parent=5 // pred_fallthru
        _
      %p351 = scmp.le.s32.totalorder 1, %s20
      %p352 = scmp.lt.s32.totalorder %s20, 3
      %p353 = pnand %p351, %p352
      %p354 = pneg %p353
      // Predicated region
      $region61: #{_lambda_.1} parent=5 // pred_check
        _
      $region62: #{_lambda_.1} parent=5 // pred_check_branch
        %356 = sbr.rel (%p353) target = $region64
      $region63: #{_lambda_.1} parent=5 // pred_region
        %s357 = ssub.s32 %s20, 1
        %s358 = smul.u32 32, %s25
        %p359 = scmp.lt.s32.totalorder %s358, 63
        %s360 = scalar_select %p359, %s358, 63
        %s361 = smul.addr %s360, 8
        %s362 = scalar_lea.vmem %s0, %s361
        %p363 = pneg %p46
        %p364 = pneg %p43
        %s365 = smul.u32 32, %s25
        %p366 = scmp.lt.s32.totalorder %s365, 63
        %s367 = scalar_select %p366, %s365, 63
        %s368 = smul.addr %s367, 8
        %s369 = scalar_lea.vmem %s1, %s368
        %p370 = pneg %p72
        %p371 = pneg %p69
        %p372 = pneg %p93
        %p373 = pneg %p90
        %p374 = pneg %p114
        %p375 = pneg %p111
        %p376 = pneg %p135
        %p377 = pneg %p132
        %p378 = pneg %p156
        %p379 = pneg %p153
        %p380 = pneg %p177
        %p381 = pneg %p174
        %p382 = pneg %p198
        %p383 = pneg %p195
        %p384 = pneg %p219
        %p385 = pneg %p216
        %p386 = pneg %p240
        %p387 = pneg %p237
        %p388 = pneg %p261
        %p389 = pneg %p258
        %p390 = pneg %p287
        %p391 = pneg %p284
        %s392 = sand.u32 %s274, 1
        %s393 = scalar_lea.sflag [#allocation3], %s392
        %s394 = sand.u32 %s274, 1
        %s395 = smul.addr %s394, 256
        %s396 = scalar_lea.vmem [#allocation2], %s395
        %s397 = smul.u32 32, %s25
        %p398 = scmp.lt.s32.totalorder %s397, 63
        %s399 = scalar_select %p398, %s397, 63
        %s400 = smul.addr %s399, 8
        %s401 = scalar_lea.vmem %s0, %s400
        %s402 = smul.u32 32, %s25
        %s403 = smul.u32 32, %s25
        %p404 = scmp.lt.s32.totalorder %s403, 63
        %s405 = scalar_select %p404, %s403, 63
        %s406 = smul.addr %s405, 8
        %s407 = scalar_lea.vmem %s1, %s406
        %s408 = smul.u32 32, %s25
        %s409 = smul.u32 32, %s25
        %v410 = vld [vmem:[%s2] sm:$0xff]
        %v411 = vld [vmem:[%s2 + $0x8] sm:$0xff]
        %v412 = vld [vmem:[%s2 + $0x10] sm:$0xff]
        %v413 = vld [vmem:[%s2 + $0x18] sm:$0xff]
        %v414 = vld [vmem:[%s2 + $0x20] sm:$0xff]
        %v415 = vld [vmem:[%s2 + $0x28] sm:$0xff]
        %v416 = vld [vmem:[%s2 + $0x30] sm:$0xff]
        %v417 = vld [vmem:[%s2 + $0x38] sm:$0xff]
        %v418 = vld [vmem:[%s2 + $0x40] sm:$0xff]
        %v419 = vld [vmem:[%s2 + $0x48] sm:$0xff]
        %v420 = vld [vmem:[%s2 + $0x50] sm:$0xff]
        %v421 = vld [vmem:[%s2 + $0x58] sm:$0xff]
        %v422 = vld [vmem:[%s2 + $0x60] sm:$0xff]
        %v423 = vld [vmem:[%s2 + $0x68] sm:$0xff]
        %v424 = vld [vmem:[%s2 + $0x70] sm:$0xff]
        %v425 = vld [vmem:[%s2 + $0x78] sm:$0xff]
        %v426 = vld [vmem:[%s2 + $0x80] sm:$0xff]
        %v427 = vld [vmem:[%s2 + $0x88] sm:$0xff]
        %v428 = vld [vmem:[%s2 + $0x90] sm:$0xff]
        %v429 = vld [vmem:[%s2 + $0x98] sm:$0xff]
        %v430 = vld [vmem:[%s2 + $0xa0] sm:$0xff]
        %v431 = vld [vmem:[%s2 + $0xa8] sm:$0xff]
        %v432 = vld [vmem:[%s2 + $0xb0] sm:$0xff]
        %v433 = vld [vmem:[%s2 + $0xb8] sm:$0xff]
        %v434 = vld [vmem:[%s2 + $0xc0] sm:$0xff]
        %v435 = vld [vmem:[%s2 + $0xc8] sm:$0xff]
        %v436 = vld [vmem:[%s2 + $0xd0] sm:$0xff]
        %v437 = vld [vmem:[%s2 + $0xd8] sm:$0xff]
        %v438 = vld [vmem:[%s2 + $0xe0] sm:$0xff]
        %v439 = vld [vmem:[%s2 + $0xe8] sm:$0xff]
        %v440 = vld [vmem:[%s2 + $0xf0] sm:$0xff]
        %v441 = vld [vmem:[%s2 + $0xf8] sm:$0xff]
        %v442 = vld [vmem:[%s3] sm:$0xff]
        %v443 = vld [vmem:[%s3 + $0x8] sm:$0xff]
        %v444 = vld [vmem:[%s3 + $0x10] sm:$0xff]
        %v445 = vld [vmem:[%s3 + $0x18] sm:$0xff]
        %v446 = vld [vmem:[%s3 + $0x20] sm:$0xff]
        %v447 = vld [vmem:[%s3 + $0x28] sm:$0xff]
        %v448 = vld [vmem:[%s3 + $0x30] sm:$0xff]
        %v449 = vld [vmem:[%s3 + $0x38] sm:$0xff]
        %v450 = vld [vmem:[%s3 + $0x40] sm:$0xff]
        %v451 = vld [vmem:[%s3 + $0x48] sm:$0xff]
        %v452 = vld [vmem:[%s3 + $0x50] sm:$0xff]
        %v453 = vld [vmem:[%s3 + $0x58] sm:$0xff]
        %v454 = vld [vmem:[%s3 + $0x60] sm:$0xff]
        %v455 = vld [vmem:[%s3 + $0x68] sm:$0xff]
        %v456 = vld [vmem:[%s3 + $0x70] sm:$0xff]
        %v457 = vld [vmem:[%s3 + $0x78] sm:$0xff]
        %v458 = vld [vmem:[%s3 + $0x80] sm:$0xff]
        %v459 = vld [vmem:[%s3 + $0x88] sm:$0xff]
        %v460 = vld [vmem:[%s3 + $0x90] sm:$0xff]
        %v461 = vld [vmem:[%s3 + $0x98] sm:$0xff]
        %v462 = vld [vmem:[%s3 + $0xa0] sm:$0xff]
        %v463 = vld [vmem:[%s3 + $0xa8] sm:$0xff]
        %v464 = vld [vmem:[%s3 + $0xb0] sm:$0xff]
        %v465 = vld [vmem:[%s3 + $0xb8] sm:$0xff]
        %v466 = vld [vmem:[%s3 + $0xc0] sm:$0xff]
        %v467 = vld [vmem:[%s3 + $0xc8] sm:$0xff]
        %v468 = vld [vmem:[%s3 + $0xd0] sm:$0xff]
        %v469 = vld [vmem:[%s3 + $0xd8] sm:$0xff]
        %v470 = vld [vmem:[%s3 + $0xe0] sm:$0xff]
        %v471 = vld [vmem:[%s3 + $0xe8] sm:$0xff]
        %v472 = vld [vmem:[%s3 + $0xf0] sm:$0xff]
        %v473 = vld [vmem:[%s3 + $0xf8] sm:$0xff]
        %v474 = vld [vmem:[%s401] sm:$0xff]
        %v475 = vld [vmem:[%s401 + $0x8] sm:$0xff]
        %v476 = vld [vmem:[%s401 + $0x10] sm:$0xff]
        %v477 = vld [vmem:[%s401 + $0x18] sm:$0xff]
        %v478 = vld [vmem:[%s401 + $0x20] sm:$0xff]
        %v479 = vld [vmem:[%s401 + $0x28] sm:$0xff]
        %v480 = vld [vmem:[%s401 + $0x30] sm:$0xff]
        %v481 = vld [vmem:[%s401 + $0x38] sm:$0xff]
        %v482 = vld [vmem:[%s401 + $0x40] sm:$0xff]
        %v483 = vld [vmem:[%s401 + $0x48] sm:$0xff]
        %v484 = vld [vmem:[%s401 + $0x50] sm:$0xff]
        %v485 = vld [vmem:[%s401 + $0x58] sm:$0xff]
        %v486 = vld [vmem:[%s401 + $0x60] sm:$0xff]
        %v487 = vld [vmem:[%s401 + $0x68] sm:$0xff]
        %v488 = vld [vmem:[%s401 + $0x70] sm:$0xff]
        %v489 = vld [vmem:[%s401 + $0x78] sm:$0xff]
        %v490 = vld [vmem:[%s401 + $0x80] sm:$0xff]
        %v491 = vld [vmem:[%s401 + $0x88] sm:$0xff]
        %v492 = vld [vmem:[%s401 + $0x90] sm:$0xff]
        %v493 = vld [vmem:[%s401 + $0x98] sm:$0xff]
        %v494 = vld [vmem:[%s401 + $0xa0] sm:$0xff]
        %v495 = vld [vmem:[%s401 + $0xa8] sm:$0xff]
        %v496 = vld [vmem:[%s401 + $0xb0] sm:$0xff]
        %v497 = vld [vmem:[%s401 + $0xb8] sm:$0xff]
        %v498 = vld [vmem:[%s401 + $0xc0] sm:$0xff]
        %v499 = vld [vmem:[%s401 + $0xc8] sm:$0xff]
        %v500 = vld [vmem:[%s401 + $0xd0] sm:$0xff]
        %v501 = vld [vmem:[%s401 + $0xd8] sm:$0xff]
        %v502 = vld [vmem:[%s401 + $0xe0] sm:$0xff]
        %v503 = vld [vmem:[%s401 + $0xe8] sm:$0xff]
        %v504 = vld [vmem:[%s401 + $0xf0] sm:$0xff]
        %v505 = vld [vmem:[%s401 + $0xf8] sm:$0xff]
        %507 = vset.pattern.permute.xlu0 0
        %508 = vperm.xlu0 %507, %v410
        %v509 = vpop.permute.xlu0 %508
        %511 = vset.pattern.permute.xlu0 0
        %512 = vperm.xlu0 %511, %v411
        %v513 = vpop.permute.xlu0 %512
        %515 = vset.pattern.permute.xlu0 0
        %516 = vperm.xlu0 %515, %v412
        %v517 = vpop.permute.xlu0 %516
        %519 = vset.pattern.permute.xlu0 0
        %520 = vperm.xlu0 %519, %v413
        %v521 = vpop.permute.xlu0 %520
        %523 = vset.pattern.permute.xlu0 0
        %524 = vperm.xlu0 %523, %v414
        %v525 = vpop.permute.xlu0 %524
        %527 = vset.pattern.permute.xlu0 0
        %528 = vperm.xlu0 %527, %v415
        %v529 = vpop.permute.xlu0 %528
        %531 = vset.pattern.permute.xlu0 0
        %532 = vperm.xlu0 %531, %v416
        %v533 = vpop.permute.xlu0 %532
        %535 = vset.pattern.permute.xlu0 0
        %536 = vperm.xlu0 %535, %v417
        %v537 = vpop.permute.xlu0 %536
        %539 = vset.pattern.permute.xlu0 0
        %540 = vperm.xlu0 %539, %v418
        %v541 = vpop.permute.xlu0 %540
        %543 = vset.pattern.permute.xlu0 0
        %544 = vperm.xlu0 %543, %v419
        %v545 = vpop.permute.xlu0 %544
        %547 = vset.pattern.permute.xlu0 0
        %548 = vperm.xlu0 %547, %v420
        %v549 = vpop.permute.xlu0 %548
        %551 = vset.pattern.permute.xlu0 0
        %552 = vperm.xlu0 %551, %v421
        %v553 = vpop.permute.xlu0 %552
        %555 = vset.pattern.permute.xlu0 0
        %556 = vperm.xlu0 %555, %v422
        %v557 = vpop.permute.xlu0 %556
        %559 = vset.pattern.permute.xlu0 0
        %560 = vperm.xlu0 %559, %v423
        %v561 = vpop.permute.xlu0 %560
        %563 = vset.pattern.permute.xlu0 0
        %564 = vperm.xlu0 %563, %v424
        %v565 = vpop.permute.xlu0 %564
        %567 = vset.pattern.permute.xlu0 0
        %568 = vperm.xlu0 %567, %v425
        %v569 = vpop.permute.xlu0 %568
        %571 = vset.pattern.permute.xlu0 0
        %572 = vperm.xlu0 %571, %v426
        %v573 = vpop.permute.xlu0 %572
        %575 = vset.pattern.permute.xlu0 0
        %576 = vperm.xlu0 %575, %v427
        %v577 = vpop.permute.xlu0 %576
        %579 = vset.pattern.permute.xlu0 0
        %580 = vperm.xlu0 %579, %v428
        %v581 = vpop.permute.xlu0 %580
        %583 = vset.pattern.permute.xlu0 0
        %584 = vperm.xlu0 %583, %v429
        %v585 = vpop.permute.xlu0 %584
        %587 = vset.pattern.permute.xlu0 0
        %588 = vperm.xlu0 %587, %v430
        %v589 = vpop.permute.xlu0 %588
        %591 = vset.pattern.permute.xlu0 0
        %592 = vperm.xlu0 %591, %v431
        %v593 = vpop.permute.xlu0 %592
        %595 = vset.pattern.permute.xlu0 0
        %596 = vperm.xlu0 %595, %v432
        %v597 = vpop.permute.xlu0 %596
        %599 = vset.pattern.permute.xlu0 0
        %600 = vperm.xlu0 %599, %v433
        %v601 = vpop.permute.xlu0 %600
        %603 = vset.pattern.permute.xlu0 0
        %604 = vperm.xlu0 %603, %v434
        %v605 = vpop.permute.xlu0 %604
        %607 = vset.pattern.permute.xlu0 0
        %608 = vperm.xlu0 %607, %v435
        %v609 = vpop.permute.xlu0 %608
        %611 = vset.pattern.permute.xlu0 0
        %612 = vperm.xlu0 %611, %v436
        %v613 = vpop.permute.xlu0 %612
        %615 = vset.pattern.permute.xlu0 0
        %616 = vperm.xlu0 %615, %v437
        %v617 = vpop.permute.xlu0 %616
        %619 = vset.pattern.permute.xlu0 0
        %620 = vperm.xlu0 %619, %v438
        %v621 = vpop.permute.xlu0 %620
        %623 = vset.pattern.permute.xlu0 0
        %624 = vperm.xlu0 %623, %v439
        %v625 = vpop.permute.xlu0 %624
        %627 = vset.pattern.permute.xlu0 0
        %628 = vperm.xlu0 %627, %v440
        %v629 = vpop.permute.xlu0 %628
        %631 = vset.pattern.permute.xlu0 0
        %632 = vperm.xlu0 %631, %v441
        %v633 = vpop.permute.xlu0 %632
        %vm634 = vcmask 1046528
        %v635 = vrot.slane %v509, 1
        %v636 = vrot.slane %v513, 1
        %v637 = vsel %vm634, %v635, %v636
        %v638 = vrot.slane %v517, 1
        %v639 = vsel %vm634, %v636, %v638
        %v640 = vrot.slane %v521, 1
        %v641 = vsel %vm634, %v638, %v640
        %v642 = vrot.slane %v525, 1
        %v643 = vsel %vm634, %v640, %v642
        %v644 = vrot.slane %v529, 1
        %v645 = vsel %vm634, %v642, %v644
        %v646 = vrot.slane %v533, 1
        %v647 = vsel %vm634, %v644, %v646
        %v648 = vrot.slane %v537, 1
        %v649 = vsel %vm634, %v646, %v648
        %v650 = vrot.slane %v541, 1
        %v651 = vsel %vm634, %v648, %v650
        %v652 = vrot.slane %v545, 1
        %v653 = vsel %vm634, %v650, %v652
        %v654 = vrot.slane %v549, 1
        %v655 = vsel %vm634, %v652, %v654
        %v656 = vrot.slane %v553, 1
        %v657 = vsel %vm634, %v654, %v656
        %v658 = vrot.slane %v557, 1
        %v659 = vsel %vm634, %v656, %v658
        %v660 = vrot.slane %v561, 1
        %v661 = vsel %vm634, %v658, %v660
        %v662 = vrot.slane %v565, 1
        %v663 = vsel %vm634, %v660, %v662
        %v664 = vrot.slane %v569, 1
        %v665 = vsel %vm634, %v662, %v664
        %v666 = vrot.slane %v573, 1
        %v667 = vsel %vm634, %v664, %v666
        %v668 = vrot.slane %v577, 1
        %v669 = vsel %vm634, %v666, %v668
        %v670 = vrot.slane %v581, 1
        %v671 = vsel %vm634, %v668, %v670
        %v672 = vrot.slane %v585, 1
        %v673 = vsel %vm634, %v670, %v672
        %v674 = vrot.slane %v589, 1
        %v675 = vsel %vm634, %v672, %v674
        %v676 = vrot.slane %v593, 1
        %v677 = vsel %vm634, %v674, %v676
        %v678 = vrot.slane %v597, 1
        %v679 = vsel %vm634, %v676, %v678
        %v680 = vrot.slane %v601, 1
        %v681 = vsel %vm634, %v678, %v680
        %v682 = vrot.slane %v605, 1
        %v683 = vsel %vm634, %v680, %v682
        %v684 = vrot.slane %v609, 1
        %v685 = vsel %vm634, %v682, %v684
        %v686 = vrot.slane %v613, 1
        %v687 = vsel %vm634, %v684, %v686
        %v688 = vrot.slane %v617, 1
        %v689 = vsel %vm634, %v686, %v688
        %v690 = vrot.slane %v621, 1
        %v691 = vsel %vm634, %v688, %v690
        %v692 = vrot.slane %v625, 1
        %v693 = vsel %vm634, %v690, %v692
        %v694 = vrot.slane %v629, 1
        %v695 = vsel %vm634, %v692, %v694
        %v696 = vrot.slane %v633, 1
        %v697 = vsel %vm634, %v694, %v696
        %v731 = vmul.f32 %v635, 0.0
        %v732 = vmul.f32 %v637, 0.0
        %v733 = vmul.f32 %v639, 0.0
        %v734 = vmul.f32 %v474, %v641
        %v735 = vmul.f32 %v475, %v643
        %v736 = vmul.f32 %v476, %v645
        %v737 = vmul.f32 %v477, %v647
        %v738 = vmul.f32 %v478, %v649
        %v739 = vmul.f32 %v479, %v651
        %v740 = vmul.f32 %v480, %v653
        %v741 = vmul.f32 %v481, %v655
        %v742 = vmul.f32 %v482, %v657
        %v743 = vmul.f32 %v483, %v659
        %v744 = vmul.f32 %v484, %v661
        %v745 = vmul.f32 %v485, %v663
        %v746 = vmul.f32 %v486, %v665
        %v747 = vmul.f32 %v487, %v667
        %v748 = vmul.f32 %v488, %v669
        %v749 = vmul.f32 %v489, %v671
        %v750 = vmul.f32 %v490, %v673
        %v751 = vmul.f32 %v491, %v675
        %v752 = vmul.f32 %v492, %v677
        %v753 = vmul.f32 %v493, %v679
        %v754 = vmul.f32 %v494, %v681
        %v755 = vmul.f32 %v495, %v683
        %v756 = vmul.f32 %v496, %v685
        %v757 = vmul.f32 %v497, %v687
        %v758 = vmul.f32 %v498, %v689
        %v759 = vmul.f32 %v499, %v691
        %v760 = vmul.f32 %v500, %v693
        %v761 = vmul.f32 %v501, %v695
        %v762 = vmul.f32 %v502, %v697
        %v763 = vmul.f32 %v503, %v696
        %v764 = vld [vmem:[%s4] sm:$0xff]
        %v765 = vld [vmem:[%s4 + $0x8] sm:$0xff]
        %v766 = vld [vmem:[%s4 + $0x10] sm:$0xff]
        %v767 = vld [vmem:[%s4 + $0x18] sm:$0xff]
        %s768 = scalar_lea.vmem %s4, 32
        %v769 = vld [vmem:[%s768] sm:$0xff]
        %v770 = vld [vmem:[%s768 + $0x8] sm:$0xff]
        %v771 = vld [vmem:[%s768 + $0x10] sm:$0xff]
        %v772 = vld [vmem:[%s768 + $0x18] sm:$0xff]
        %vm773 = vcmask 261120
        %v775 = vsel %vm773, 0.0, 0
        %v778 = vsel %vm773, %v474, 0
        %v781 = vsel %vm773, %v475, 0
        %v784 = vsel %vm773, %v476, 0
        %v787 = vsel %vm773, %v477, 0
        %v790 = vsel %vm773, %v478, 0
        %v793 = vsel %vm773, %v479, 0
        %v796 = vsel %vm773, %v480, 0
        %v799 = vsel %vm773, %v481, 0
        %v802 = vsel %vm773, %v482, 0
        %v805 = vsel %vm773, %v483, 0
        %v808 = vsel %vm773, %v484, 0
        %v811 = vsel %vm773, %v485, 0
        %v814 = vsel %vm773, %v486, 0
        %v817 = vsel %vm773, %v487, 0
        %v820 = vsel %vm773, %v488, 0
        %v823 = vsel %vm773, %v489, 0
        %v826 = vsel %vm773, %v490, 0
        %v829 = vsel %vm773, %v491, 0
        %v832 = vsel %vm773, %v492, 0
        %v835 = vsel %vm773, %v493, 0
        %v838 = vsel %vm773, %v494, 0
        %v841 = vsel %vm773, %v495, 0
        %v844 = vsel %vm773, %v496, 0
        %v847 = vsel %vm773, %v497, 0
        %v850 = vsel %vm773, %v498, 0
        %v853 = vsel %vm773, %v499, 0
        %v856 = vsel %vm773, %v500, 0
        %v859 = vsel %vm773, %v501, 0
        %v862 = vsel %vm773, %v502, 0
        %v865 = vsel %vm773, %v503, 0
        %867 = vmatpush.msra.mxu0 0.0
        %868 = vmatpush.msra.mxu0 0.0
        %869 = vmatpush.msra.mxu0 0.0
        %870 = vmatpush.msra.mxu0 0.0
        %871 = vmatpush.msra.mxu0 0.0
        %872 = vmatpush.msra.mxu0 0.0
        %873 = vmatpush.msra.mxu0 0.0
        %874 = vmatpush.msra.mxu0 0.0
        %875 = vmatpush.msra.mxu0 0.0
        %876 = vmatpush.msra.mxu0 0.0
        %877 = vmatpush.msra.mxu0 0.0
        %878 = vmatpush.msra.mxu0 0.0
        %879 = vmatpush.msra.mxu0 %v772
        %880 = vmatpush.msra.mxu0 %v771
        %881 = vmatpush.msra.mxu0 %v770
        %882 = vmatpush.msra.mxu0 %v769
        %883 = vmatmul.f32.gmra.mxu0 %v775
        %v884 = vpop.f32.mrf.mxu0
        %v885 = vadd.f32 0.0, %v884
        %886 = vmatmul.f32.gmra.mxu0 %v775
        %v887 = vpop.f32.mrf.mxu0
        %v888 = vadd.f32 0.0, %v887
        %889 = vmatmul.f32.gmra.mxu0 %v778
        %v890 = vpop.f32.mrf.mxu0
        %v891 = vadd.f32 0.0, %v890
        %892 = vmatmul.f32.gmra.mxu0 %v781
        %v893 = vpop.f32.mrf.mxu0
        %v894 = vadd.f32 0.0, %v893
        %895 = vmatmul.f32.gmra.mxu0 %v784
        %v896 = vpop.f32.mrf.mxu0
        %v897 = vadd.f32 0.0, %v896
        %898 = vmatmul.f32.gmra.mxu0 %v787
        %v899 = vpop.f32.mrf.mxu0
        %v900 = vadd.f32 0.0, %v899
        %901 = vmatmul.f32.gmra.mxu0 %v790
        %v902 = vpop.f32.mrf.mxu0
        %v903 = vadd.f32 0.0, %v902
        %904 = vmatmul.f32.gmra.mxu0 %v793
        %v905 = vpop.f32.mrf.mxu0
        %v906 = vadd.f32 0.0, %v905
        %907 = vmatmul.f32.gmra.mxu0 %v796
        %v908 = vpop.f32.mrf.mxu0
        %v909 = vadd.f32 0.0, %v908
        %910 = vmatmul.f32.gmra.mxu0 %v799
        %v911 = vpop.f32.mrf.mxu0
        %v912 = vadd.f32 0.0, %v911
        %913 = vmatmul.f32.gmra.mxu0 %v802
        %v914 = vpop.f32.mrf.mxu0
        %v915 = vadd.f32 0.0, %v914
        %916 = vmatmul.f32.gmra.mxu0 %v805
        %v917 = vpop.f32.mrf.mxu0
        %v918 = vadd.f32 0.0, %v917
        %919 = vmatmul.f32.gmra.mxu0 %v808
        %v920 = vpop.f32.mrf.mxu0
        %v921 = vadd.f32 0.0, %v920
        %922 = vmatmul.f32.gmra.mxu0 %v811
        %v923 = vpop.f32.mrf.mxu0
        %v924 = vadd.f32 0.0, %v923
        %925 = vmatmul.f32.gmra.mxu0 %v814
        %v926 = vpop.f32.mrf.mxu0
        %v927 = vadd.f32 0.0, %v926
        %928 = vmatmul.f32.gmra.mxu0 %v817
        %v929 = vpop.f32.mrf.mxu0
        %v930 = vadd.f32 0.0, %v929
        %931 = vmatmul.f32.gmra.mxu0 %v820
        %v932 = vpop.f32.mrf.mxu0
        %v933 = vadd.f32 0.0, %v932
        %934 = vmatmul.f32.gmra.mxu0 %v823
        %v935 = vpop.f32.mrf.mxu0
        %v936 = vadd.f32 0.0, %v935
        %937 = vmatmul.f32.gmra.mxu0 %v826
        %v938 = vpop.f32.mrf.mxu0
        %v939 = vadd.f32 0.0, %v938
        %940 = vmatmul.f32.gmra.mxu0 %v829
        %v941 = vpop.f32.mrf.mxu0
        %v942 = vadd.f32 0.0, %v941
        %943 = vmatmul.f32.gmra.mxu0 %v832
        %v944 = vpop.f32.mrf.mxu0
        %v945 = vadd.f32 0.0, %v944
        %946 = vmatmul.f32.gmra.mxu0 %v835
        %v947 = vpop.f32.mrf.mxu0
        %v948 = vadd.f32 0.0, %v947
        %949 = vmatmul.f32.gmra.mxu0 %v838
        %v950 = vpop.f32.mrf.mxu0
        %v951 = vadd.f32 0.0, %v950
        %952 = vmatmul.f32.gmra.mxu0 %v841
        %v953 = vpop.f32.mrf.mxu0
        %v954 = vadd.f32 0.0, %v953
        %955 = vmatmul.f32.gmra.mxu0 %v844
        %v956 = vpop.f32.mrf.mxu0
        %v957 = vadd.f32 0.0, %v956
        %958 = vmatmul.f32.gmra.mxu0 %v847
        %v959 = vpop.f32.mrf.mxu0
        %v960 = vadd.f32 0.0, %v959
        %961 = vmatmul.f32.gmra.mxu0 %v850
        %v962 = vpop.f32.mrf.mxu0
        %v963 = vadd.f32 0.0, %v962
        %964 = vmatmul.f32.gmra.mxu0 %v853
        %v965 = vpop.f32.mrf.mxu0
        %v966 = vadd.f32 0.0, %v965
        %967 = vmatmul.f32.gmra.mxu0 %v856
        %v968 = vpop.f32.mrf.mxu0
        %v969 = vadd.f32 0.0, %v968
        %970 = vmatmul.f32.gmra.mxu0 %v859
        %v971 = vpop.f32.mrf.mxu0
        %v972 = vadd.f32 0.0, %v971
        %973 = vmatmul.f32.gmra.mxu0 %v862
        %v974 = vpop.f32.mrf.mxu0
        %v975 = vadd.f32 0.0, %v974
        %976 = vmatmul.f32.gmra.mxu0 %v865
        %v977 = vpop.f32.mrf.mxu0
        %v978 = vadd.f32 0.0, %v977
        %979 = vdwg.mxu0
        %vm1013 = vcmask 1040384
        %v1014 = vrot.slane %v731, 7
        %v1015 = vrot.slane %v732, 7
        %v1016 = vsel %vm1013, %v1014, %v1015
        %v1017 = vrot.slane %v733, 7
        %v1018 = vsel %vm1013, %v1015, %v1017
        %v1019 = vrot.slane %v734, 7
        %v1020 = vsel %vm1013, %v1017, %v1019
        %v1021 = vrot.slane %v735, 7
        %v1022 = vsel %vm1013, %v1019, %v1021
        %v1023 = vrot.slane %v736, 7
        %v1024 = vsel %vm1013, %v1021, %v1023
        %v1025 = vrot.slane %v737, 7
        %v1026 = vsel %vm1013, %v1023, %v1025
        %v1027 = vrot.slane %v738, 7
        %v1028 = vsel %vm1013, %v1025, %v1027
        %v1029 = vrot.slane %v739, 7
        %v1030 = vsel %vm1013, %v1027, %v1029
        %v1031 = vrot.slane %v740, 7
        %v1032 = vsel %vm1013, %v1029, %v1031
        %v1033 = vrot.slane %v741, 7
        %v1034 = vsel %vm1013, %v1031, %v1033
        %v1035 = vrot.slane %v742, 7
        %v1036 = vsel %vm1013, %v1033, %v1035
        %v1037 = vrot.slane %v743, 7
        %v1038 = vsel %vm1013, %v1035, %v1037
        %v1039 = vrot.slane %v744, 7
        %v1040 = vsel %vm1013, %v1037, %v1039
        %v1041 = vrot.slane %v745, 7
        %v1042 = vsel %vm1013, %v1039, %v1041
        %v1043 = vrot.slane %v746, 7
        %v1044 = vsel %vm1013, %v1041, %v1043
        %v1045 = vrot.slane %v747, 7
        %v1046 = vsel %vm1013, %v1043, %v1045
        %v1047 = vrot.slane %v748, 7
        %v1048 = vsel %vm1013, %v1045, %v1047
        %v1049 = vrot.slane %v749, 7
        %v1050 = vsel %vm1013, %v1047, %v1049
        %v1051 = vrot.slane %v750, 7
        %v1052 = vsel %vm1013, %v1049, %v1051
        %v1053 = vrot.slane %v751, 7
        %v1054 = vsel %vm1013, %v1051, %v1053
        %v1055 = vrot.slane %v752, 7
        %v1056 = vsel %vm1013, %v1053, %v1055
        %v1057 = vrot.slane %v753, 7
        %v1058 = vsel %vm1013, %v1055, %v1057
        %v1059 = vrot.slane %v754, 7
        %v1060 = vsel %vm1013, %v1057, %v1059
        %v1061 = vrot.slane %v755, 7
        %v1062 = vsel %vm1013, %v1059, %v1061
        %v1063 = vrot.slane %v756, 7
        %v1064 = vsel %vm1013, %v1061, %v1063
        %v1065 = vrot.slane %v757, 7
        %v1066 = vsel %vm1013, %v1063, %v1065
        %v1067 = vrot.slane %v758, 7
        %v1068 = vsel %vm1013, %v1065, %v1067
        %v1069 = vrot.slane %v759, 7
        %v1070 = vsel %vm1013, %v1067, %v1069
        %v1071 = vrot.slane %v760, 7
        %v1072 = vsel %vm1013, %v1069, %v1071
        %v1073 = vrot.slane %v761, 7
        %v1074 = vsel %vm1013, %v1071, %v1073
        %v1075 = vrot.slane %v762, 7
        %v1076 = vsel %vm1013, %v1073, %v1075
        %v1077 = vrot.slane %v763, 7
        %v1078 = vsel %vm1013, %v1075, %v1077
        %v1079 = vsel %vm773, %v1016, 0
        %v1081 = vsel %vm773, %v1018, 0
        %v1083 = vsel %vm773, %v1020, 0
        %v1085 = vsel %vm773, %v1022, 0
        %v1087 = vsel %vm773, %v1024, 0
        %v1089 = vsel %vm773, %v1026, 0
        %v1091 = vsel %vm773, %v1028, 0
        %v1093 = vsel %vm773, %v1030, 0
        %v1095 = vsel %vm773, %v1032, 0
        %v1097 = vsel %vm773, %v1034, 0
        %v1099 = vsel %vm773, %v1036, 0
        %v1101 = vsel %vm773, %v1038, 0
        %v1103 = vsel %vm773, %v1040, 0
        %v1105 = vsel %vm773, %v1042, 0
        %v1107 = vsel %vm773, %v1044, 0
        %v1109 = vsel %vm773, %v1046, 0
        %v1111 = vsel %vm773, %v1048, 0
        %v1113 = vsel %vm773, %v1050, 0
        %v1115 = vsel %vm773, %v1052, 0
        %v1117 = vsel %vm773, %v1054, 0
        %v1119 = vsel %vm773, %v1056, 0
        %v1121 = vsel %vm773, %v1058, 0
        %v1123 = vsel %vm773, %v1060, 0
        %v1125 = vsel %vm773, %v1062, 0
        %v1127 = vsel %vm773, %v1064, 0
        %v1129 = vsel %vm773, %v1066, 0
        %v1131 = vsel %vm773, %v1068, 0
        %v1133 = vsel %vm773, %v1070, 0
        %v1135 = vsel %vm773, %v1072, 0
        %v1137 = vsel %vm773, %v1074, 0
        %v1139 = vsel %vm773, %v1076, 0
        %v1141 = vsel %vm773, %v1078, 0
        %1143 = vmatpush.msra.mxu0 0.0
        %1144 = vmatpush.msra.mxu0 0.0
        %1145 = vmatpush.msra.mxu0 0.0
        %1146 = vmatpush.msra.mxu0 0.0
        %1147 = vmatpush.msra.mxu0 0.0
        %1148 = vmatpush.msra.mxu0 0.0
        %1149 = vmatpush.msra.mxu0 0.0
        %1150 = vmatpush.msra.mxu0 0.0
        %1151 = vmatpush.msra.mxu0 0.0
        %1152 = vmatpush.msra.mxu0 0.0
        %1153 = vmatpush.msra.mxu0 0.0
        %1154 = vmatpush.msra.mxu0 0.0
        %1155 = vmatpush.msra.mxu0 %v767
        %1156 = vmatpush.msra.mxu0 %v766
        %1157 = vmatpush.msra.mxu0 %v765
        %1158 = vmatpush.msra.mxu0 %v764
        %1159 = vmatmul.f32.gmra.mxu0 %v1079
        %v1160 = vpop.f32.mrf.mxu0
        %v1161 = vadd.f32 %v885, %v1160
        %1162 = vmatmul.f32.gmra.mxu0 %v1081
        %v1163 = vpop.f32.mrf.mxu0
        %v1164 = vadd.f32 %v888, %v1163
        %1165 = vmatmul.f32.gmra.mxu0 %v1083
        %v1166 = vpop.f32.mrf.mxu0
        %v1167 = vadd.f32 %v891, %v1166
        %1168 = vmatmul.f32.gmra.mxu0 %v1085
        %v1169 = vpop.f32.mrf.mxu0
        %v1170 = vadd.f32 %v894, %v1169
        %1171 = vmatmul.f32.gmra.mxu0 %v1087
        %v1172 = vpop.f32.mrf.mxu0
        %v1173 = vadd.f32 %v897, %v1172
        %1174 = vmatmul.f32.gmra.mxu0 %v1089
        %v1175 = vpop.f32.mrf.mxu0
        %v1176 = vadd.f32 %v900, %v1175
        %1177 = vmatmul.f32.gmra.mxu0 %v1091
        %v1178 = vpop.f32.mrf.mxu0
        %v1179 = vadd.f32 %v903, %v1178
        %1180 = vmatmul.f32.gmra.mxu0 %v1093
        %v1181 = vpop.f32.mrf.mxu0
        %v1182 = vadd.f32 %v906, %v1181
        %1183 = vmatmul.f32.gmra.mxu0 %v1095
        %v1184 = vpop.f32.mrf.mxu0
        %v1185 = vadd.f32 %v909, %v1184
        %1186 = vmatmul.f32.gmra.mxu0 %v1097
        %v1187 = vpop.f32.mrf.mxu0
        %v1188 = vadd.f32 %v912, %v1187
        %1189 = vmatmul.f32.gmra.mxu0 %v1099
        %v1190 = vpop.f32.mrf.mxu0
        %v1191 = vadd.f32 %v915, %v1190
        %1192 = vmatmul.f32.gmra.mxu0 %v1101
        %v1193 = vpop.f32.mrf.mxu0
        %v1194 = vadd.f32 %v918, %v1193
        %1195 = vmatmul.f32.gmra.mxu0 %v1103
        %v1196 = vpop.f32.mrf.mxu0
        %v1197 = vadd.f32 %v921, %v1196
        %1198 = vmatmul.f32.gmra.mxu0 %v1105
        %v1199 = vpop.f32.mrf.mxu0
        %v1200 = vadd.f32 %v924, %v1199
        %1201 = vmatmul.f32.gmra.mxu0 %v1107
        %v1202 = vpop.f32.mrf.mxu0
        %v1203 = vadd.f32 %v927, %v1202
        %1204 = vmatmul.f32.gmra.mxu0 %v1109
        %v1205 = vpop.f32.mrf.mxu0
        %v1206 = vadd.f32 %v930, %v1205
        %1207 = vmatmul.f32.gmra.mxu0 %v1111
        %v1208 = vpop.f32.mrf.mxu0
        %v1209 = vadd.f32 %v933, %v1208
        %1210 = vmatmul.f32.gmra.mxu0 %v1113
        %v1211 = vpop.f32.mrf.mxu0
        %v1212 = vadd.f32 %v936, %v1211
        %1213 = vmatmul.f32.gmra.mxu0 %v1115
        %v1214 = vpop.f32.mrf.mxu0
        %v1215 = vadd.f32 %v939, %v1214
        %1216 = vmatmul.f32.gmra.mxu0 %v1117
        %v1217 = vpop.f32.mrf.mxu0
        %v1218 = vadd.f32 %v942, %v1217
        %1219 = vmatmul.f32.gmra.mxu0 %v1119
        %v1220 = vpop.f32.mrf.mxu0
        %v1221 = vadd.f32 %v945, %v1220
        %1222 = vmatmul.f32.gmra.mxu0 %v1121
        %v1223 = vpop.f32.mrf.mxu0
        %v1224 = vadd.f32 %v948, %v1223
        %1225 = vmatmul.f32.gmra.mxu0 %v1123
        %v1226 = vpop.f32.mrf.mxu0
        %v1227 = vadd.f32 %v951, %v1226
        %1228 = vmatmul.f32.gmra.mxu0 %v1125
        %v1229 = vpop.f32.mrf.mxu0
        %v1230 = vadd.f32 %v954, %v1229
        %1231 = vmatmul.f32.gmra.mxu0 %v1127
        %v1232 = vpop.f32.mrf.mxu0
        %v1233 = vadd.f32 %v957, %v1232
        %1234 = vmatmul.f32.gmra.mxu0 %v1129
        %v1235 = vpop.f32.mrf.mxu0
        %v1236 = vadd.f32 %v960, %v1235
        %1237 = vmatmul.f32.gmra.mxu0 %v1131
        %v1238 = vpop.f32.mrf.mxu0
        %v1239 = vadd.f32 %v963, %v1238
        %1240 = vmatmul.f32.gmra.mxu0 %v1133
        %v1241 = vpop.f32.mrf.mxu0
        %v1242 = vadd.f32 %v966, %v1241
        %1243 = vmatmul.f32.gmra.mxu0 %v1135
        %v1244 = vpop.f32.mrf.mxu0
        %v1245 = vadd.f32 %v969, %v1244
        %1246 = vmatmul.f32.gmra.mxu0 %v1137
        %v1247 = vpop.f32.mrf.mxu0
        %v1248 = vadd.f32 %v972, %v1247
        %1249 = vmatmul.f32.gmra.mxu0 %v1139
        %v1250 = vpop.f32.mrf.mxu0
        %v1251 = vadd.f32 %v975, %v1250
        %1252 = vmatmul.f32.gmra.mxu0 %v1141
        %v1253 = vpop.f32.mrf.mxu0
        %v1254 = vadd.f32 %v978, %v1253
        %1255 = vdwg.mxu0
        %1257 = vset.pattern.permute.xlu0 0
        %1258 = vperm.xlu0 %1257, %v442
        %v1259 = vpop.permute.xlu0 %1258
        %1261 = vset.pattern.permute.xlu0 0
        %1262 = vperm.xlu0 %1261, %v443
        %v1263 = vpop.permute.xlu0 %1262
        %1265 = vset.pattern.permute.xlu0 0
        %1266 = vperm.xlu0 %1265, %v444
        %v1267 = vpop.permute.xlu0 %1266
        %1269 = vset.pattern.permute.xlu0 0
        %1270 = vperm.xlu0 %1269, %v445
        %v1271 = vpop.permute.xlu0 %1270
        %1273 = vset.pattern.permute.xlu0 0
        %1274 = vperm.xlu0 %1273, %v446
        %v1275 = vpop.permute.xlu0 %1274
        %1277 = vset.pattern.permute.xlu0 0
        %1278 = vperm.xlu0 %1277, %v447
        %v1279 = vpop.permute.xlu0 %1278
        %1281 = vset.pattern.permute.xlu0 0
        %1282 = vperm.xlu0 %1281, %v448
        %v1283 = vpop.permute.xlu0 %1282
        %1285 = vset.pattern.permute.xlu0 0
        %1286 = vperm.xlu0 %1285, %v449
        %v1287 = vpop.permute.xlu0 %1286
        %1289 = vset.pattern.permute.xlu0 0
        %1290 = vperm.xlu0 %1289, %v450
        %v1291 = vpop.permute.xlu0 %1290
        %1293 = vset.pattern.permute.xlu0 0
        %1294 = vperm.xlu0 %1293, %v451
        %v1295 = vpop.permute.xlu0 %1294
        %1297 = vset.pattern.permute.xlu0 0
        %1298 = vperm.xlu0 %1297, %v452
        %v1299 = vpop.permute.xlu0 %1298
        %1301 = vset.pattern.permute.xlu0 0
        %1302 = vperm.xlu0 %1301, %v453
        %v1303 = vpop.permute.xlu0 %1302
        %1305 = vset.pattern.permute.xlu0 0
        %1306 = vperm.xlu0 %1305, %v454
        %v1307 = vpop.permute.xlu0 %1306
        %1309 = vset.pattern.permute.xlu0 0
        %1310 = vperm.xlu0 %1309, %v455
        %v1311 = vpop.permute.xlu0 %1310
        %1313 = vset.pattern.permute.xlu0 0
        %1314 = vperm.xlu0 %1313, %v456
        %v1315 = vpop.permute.xlu0 %1314
        %1317 = vset.pattern.permute.xlu0 0
        %1318 = vperm.xlu0 %1317, %v457
        %v1319 = vpop.permute.xlu0 %1318
        %1321 = vset.pattern.permute.xlu0 0
        %1322 = vperm.xlu0 %1321, %v458
        %v1323 = vpop.permute.xlu0 %1322
        %1325 = vset.pattern.permute.xlu0 0
        %1326 = vperm.xlu0 %1325, %v459
        %v1327 = vpop.permute.xlu0 %1326
        %1329 = vset.pattern.permute.xlu0 0
        %1330 = vperm.xlu0 %1329, %v460
        %v1331 = vpop.permute.xlu0 %1330
        %1333 = vset.pattern.permute.xlu0 0
        %1334 = vperm.xlu0 %1333, %v461
        %v1335 = vpop.permute.xlu0 %1334
        %1337 = vset.pattern.permute.xlu0 0
        %1338 = vperm.xlu0 %1337, %v462
        %v1339 = vpop.permute.xlu0 %1338
        %1341 = vset.pattern.permute.xlu0 0
        %1342 = vperm.xlu0 %1341, %v463
        %v1343 = vpop.permute.xlu0 %1342
        %1345 = vset.pattern.permute.xlu0 0
        %1346 = vperm.xlu0 %1345, %v464
        %v1347 = vpop.permute.xlu0 %1346
        %1349 = vset.pattern.permute.xlu0 0
        %1350 = vperm.xlu0 %1349, %v465
        %v1351 = vpop.permute.xlu0 %1350
        %1353 = vset.pattern.permute.xlu0 0
        %1354 = vperm.xlu0 %1353, %v466
        %v1355 = vpop.permute.xlu0 %1354
        %1357 = vset.pattern.permute.xlu0 0
        %1358 = vperm.xlu0 %1357, %v467
        %v1359 = vpop.permute.xlu0 %1358
        %1361 = vset.pattern.permute.xlu0 0
        %1362 = vperm.xlu0 %1361, %v468
        %v1363 = vpop.permute.xlu0 %1362
        %1365 = vset.pattern.permute.xlu0 0
        %1366 = vperm.xlu0 %1365, %v469
        %v1367 = vpop.permute.xlu0 %1366
        %1369 = vset.pattern.permute.xlu0 0
        %1370 = vperm.xlu0 %1369, %v470
        %v1371 = vpop.permute.xlu0 %1370
        %1373 = vset.pattern.permute.xlu0 0
        %1374 = vperm.xlu0 %1373, %v471
        %v1375 = vpop.permute.xlu0 %1374
        %1377 = vset.pattern.permute.xlu0 0
        %1378 = vperm.xlu0 %1377, %v472
        %v1379 = vpop.permute.xlu0 %1378
        %1381 = vset.pattern.permute.xlu0 0
        %1382 = vperm.xlu0 %1381, %v473
        %v1383 = vpop.permute.xlu0 %1382
        %v1384 = vrot.slane %v1259, 7
        %v1385 = vrot.slane %v1263, 7
        %v1386 = vsel %vm1013, %v1384, %v1385
        %v1387 = vrot.slane %v1267, 7
        %v1388 = vsel %vm1013, %v1385, %v1387
        %v1389 = vrot.slane %v1271, 7
        %v1390 = vsel %vm1013, %v1387, %v1389
        %v1391 = vrot.slane %v1275, 7
        %v1392 = vsel %vm1013, %v1389, %v1391
        %v1393 = vrot.slane %v1279, 7
        %v1394 = vsel %vm1013, %v1391, %v1393
        %v1395 = vrot.slane %v1283, 7
        %v1396 = vsel %vm1013, %v1393, %v1395
        %v1397 = vrot.slane %v1287, 7
        %v1398 = vsel %vm1013, %v1395, %v1397
        %v1399 = vrot.slane %v1291, 7
        %v1400 = vsel %vm1013, %v1397, %v1399
        %v1401 = vrot.slane %v1295, 7
        %v1402 = vsel %vm1013, %v1399, %v1401
        %v1403 = vrot.slane %v1299, 7
        %v1404 = vsel %vm1013, %v1401, %v1403
        %v1405 = vrot.slane %v1303, 7
        %v1406 = vsel %vm1013, %v1403, %v1405
        %v1407 = vrot.slane %v1307, 7
        %v1408 = vsel %vm1013, %v1405, %v1407
        %v1409 = vrot.slane %v1311, 7
        %v1410 = vsel %vm1013, %v1407, %v1409
        %v1411 = vrot.slane %v1315, 7
        %v1412 = vsel %vm1013, %v1409, %v1411
        %v1413 = vrot.slane %v1319, 7
        %v1414 = vsel %vm1013, %v1411, %v1413
        %v1415 = vrot.slane %v1323, 7
        %v1416 = vsel %vm1013, %v1413, %v1415
        %v1417 = vrot.slane %v1327, 7
        %v1418 = vsel %vm1013, %v1415, %v1417
        %v1419 = vrot.slane %v1331, 7
        %v1420 = vsel %vm1013, %v1417, %v1419
        %v1421 = vrot.slane %v1335, 7
        %v1422 = vsel %vm1013, %v1419, %v1421
        %v1423 = vrot.slane %v1339, 7
        %v1424 = vsel %vm1013, %v1421, %v1423
        %v1425 = vrot.slane %v1343, 7
        %v1426 = vsel %vm1013, %v1423, %v1425
        %v1427 = vrot.slane %v1347, 7
        %v1428 = vsel %vm1013, %v1425, %v1427
        %v1429 = vrot.slane %v1351, 7
        %v1430 = vsel %vm1013, %v1427, %v1429
        %v1431 = vrot.slane %v1355, 7
        %v1432 = vsel %vm1013, %v1429, %v1431
        %v1433 = vrot.slane %v1359, 7
        %v1434 = vsel %vm1013, %v1431, %v1433
        %v1435 = vrot.slane %v1363, 7
        %v1436 = vsel %vm1013, %v1433, %v1435
        %v1437 = vrot.slane %v1367, 7
        %v1438 = vsel %vm1013, %v1435, %v1437
        %v1439 = vrot.slane %v1371, 7
        %v1440 = vsel %vm1013, %v1437, %v1439
        %v1441 = vrot.slane %v1375, 7
        %v1442 = vsel %vm1013, %v1439, %v1441
        %v1443 = vrot.slane %v1379, 7
        %v1444 = vsel %vm1013, %v1441, %v1443
        %v1445 = vrot.slane %v1383, 7
        %v1446 = vsel %vm1013, %v1443, %v1445
        %v1480 = vmul.f32 %v1384, 0.0
        %v1481 = vmul.f32 %v1386, 0.0
        %v1482 = vmul.f32 %v474, %v1388
        %v1483 = vmul.f32 %v475, %v1390
        %v1484 = vmul.f32 %v476, %v1392
        %v1485 = vmul.f32 %v477, %v1394
        %v1486 = vmul.f32 %v478, %v1396
        %v1487 = vmul.f32 %v479, %v1398
        %v1488 = vmul.f32 %v480, %v1400
        %v1489 = vmul.f32 %v481, %v1402
        %v1490 = vmul.f32 %v482, %v1404
        %v1491 = vmul.f32 %v483, %v1406
        %v1492 = vmul.f32 %v484, %v1408
        %v1493 = vmul.f32 %v485, %v1410
        %v1494 = vmul.f32 %v486, %v1412
        %v1495 = vmul.f32 %v487, %v1414
        %v1496 = vmul.f32 %v488, %v1416
        %v1497 = vmul.f32 %v489, %v1418
        %v1498 = vmul.f32 %v490, %v1420
        %v1499 = vmul.f32 %v491, %v1422
        %v1500 = vmul.f32 %v492, %v1424
        %v1501 = vmul.f32 %v493, %v1426
        %v1502 = vmul.f32 %v494, %v1428
        %v1503 = vmul.f32 %v495, %v1430
        %v1504 = vmul.f32 %v496, %v1432
        %v1505 = vmul.f32 %v497, %v1434
        %v1506 = vmul.f32 %v498, %v1436
        %v1507 = vmul.f32 %v499, %v1438
        %v1508 = vmul.f32 %v500, %v1440
        %v1509 = vmul.f32 %v501, %v1442
        %v1510 = vmul.f32 %v502, %v1444
        %v1511 = vmul.f32 %v503, %v1446
        %v1512 = vmul.f32 %v504, %v1445
        %s1513 = scalar_lea.vmem %s4, 64
        %v1514 = vld [vmem:[%s1513] sm:$0xff]
        %v1515 = vld [vmem:[%s1513 + $0x8] sm:$0xff]
        %v1516 = vld [vmem:[%s1513 + $0x10] sm:$0xff]
        %v1517 = vld [vmem:[%s1513 + $0x18] sm:$0xff]
        %v1551 = vrot.slane %v1480, 1
        %v1552 = vrot.slane %v1481, 1
        %v1553 = vsel %vm634, %v1551, %v1552
        %v1554 = vrot.slane %v1482, 1
        %v1555 = vsel %vm634, %v1552, %v1554
        %v1556 = vrot.slane %v1483, 1
        %v1557 = vsel %vm634, %v1554, %v1556
        %v1558 = vrot.slane %v1484, 1
        %v1559 = vsel %vm634, %v1556, %v1558
        %v1560 = vrot.slane %v1485, 1
        %v1561 = vsel %vm634, %v1558, %v1560
        %v1562 = vrot.slane %v1486, 1
        %v1563 = vsel %vm634, %v1560, %v1562
        %v1564 = vrot.slane %v1487, 1
        %v1565 = vsel %vm634, %v1562, %v1564
        %v1566 = vrot.slane %v1488, 1
        %v1567 = vsel %vm634, %v1564, %v1566
        %v1568 = vrot.slane %v1489, 1
        %v1569 = vsel %vm634, %v1566, %v1568
        %v1570 = vrot.slane %v1490, 1
        %v1571 = vsel %vm634, %v1568, %v1570
        %v1572 = vrot.slane %v1491, 1
        %v1573 = vsel %vm634, %v1570, %v1572
        %v1574 = vrot.slane %v1492, 1
        %v1575 = vsel %vm634, %v1572, %v1574
        %v1576 = vrot.slane %v1493, 1
        %v1577 = vsel %vm634, %v1574, %v1576
        %v1578 = vrot.slane %v1494, 1
        %v1579 = vsel %vm634, %v1576, %v1578
        %v1580 = vrot.slane %v1495, 1
        %v1581 = vsel %vm634, %v1578, %v1580
        %v1582 = vrot.slane %v1496, 1
        %v1583 = vsel %vm634, %v1580, %v1582
        %v1584 = vrot.slane %v1497, 1
        %v1585 = vsel %vm634, %v1582, %v1584
        %v1586 = vrot.slane %v1498, 1
        %v1587 = vsel %vm634, %v1584, %v1586
        %v1588 = vrot.slane %v1499, 1
        %v1589 = vsel %vm634, %v1586, %v1588
        %v1590 = vrot.slane %v1500, 1
        %v1591 = vsel %vm634, %v1588, %v1590
        %v1592 = vrot.slane %v1501, 1
        %v1593 = vsel %vm634, %v1590, %v1592
        %v1594 = vrot.slane %v1502, 1
        %v1595 = vsel %vm634, %v1592, %v1594
        %v1596 = vrot.slane %v1503, 1
        %v1597 = vsel %vm634, %v1594, %v1596
        %v1598 = vrot.slane %v1504, 1
        %v1599 = vsel %vm634, %v1596, %v1598
        %v1600 = vrot.slane %v1505, 1
        %v1601 = vsel %vm634, %v1598, %v1600
        %v1602 = vrot.slane %v1506, 1
        %v1603 = vsel %vm634, %v1600, %v1602
        %v1604 = vrot.slane %v1507, 1
        %v1605 = vsel %vm634, %v1602, %v1604
        %v1606 = vrot.slane %v1508, 1
        %v1607 = vsel %vm634, %v1604, %v1606
        %v1608 = vrot.slane %v1509, 1
        %v1609 = vsel %vm634, %v1606, %v1608
        %v1610 = vrot.slane %v1510, 1
        %v1611 = vsel %vm634, %v1608, %v1610
        %v1612 = vrot.slane %v1511, 1
        %v1613 = vsel %vm634, %v1610, %v1612
        %v1614 = vrot.slane %v1512, 1
        %v1615 = vsel %vm634, %v1612, %v1614
        %v1616 = vsel %vm773, %v1553, 0
        %v1618 = vsel %vm773, %v1555, 0
        %v1620 = vsel %vm773, %v1557, 0
        %v1622 = vsel %vm773, %v1559, 0
        %v1624 = vsel %vm773, %v1561, 0
        %v1626 = vsel %vm773, %v1563, 0
        %v1628 = vsel %vm773, %v1565, 0
        %v1630 = vsel %vm773, %v1567, 0
        %v1632 = vsel %vm773, %v1569, 0
        %v1634 = vsel %vm773, %v1571, 0
        %v1636 = vsel %vm773, %v1573, 0
        %v1638 = vsel %vm773, %v1575, 0
        %v1640 = vsel %vm773, %v1577, 0
        %v1642 = vsel %vm773, %v1579, 0
        %v1644 = vsel %vm773, %v1581, 0
        %v1646 = vsel %vm773, %v1583, 0
        %v1648 = vsel %vm773, %v1585, 0
        %v1650 = vsel %vm773, %v1587, 0
        %v1652 = vsel %vm773, %v1589, 0
        %v1654 = vsel %vm773, %v1591, 0
        %v1656 = vsel %vm773, %v1593, 0
        %v1658 = vsel %vm773, %v1595, 0
        %v1660 = vsel %vm773, %v1597, 0
        %v1662 = vsel %vm773, %v1599, 0
        %v1664 = vsel %vm773, %v1601, 0
        %v1666 = vsel %vm773, %v1603, 0
        %v1668 = vsel %vm773, %v1605, 0
        %v1670 = vsel %vm773, %v1607, 0
        %v1672 = vsel %vm773, %v1609, 0
        %v1674 = vsel %vm773, %v1611, 0
        %v1676 = vsel %vm773, %v1613, 0
        %v1678 = vsel %vm773, %v1615, 0
        %1680 = vmatpush.msra.mxu0 0.0
        %1681 = vmatpush.msra.mxu0 0.0
        %1682 = vmatpush.msra.mxu0 0.0
        %1683 = vmatpush.msra.mxu0 0.0
        %1684 = vmatpush.msra.mxu0 0.0
        %1685 = vmatpush.msra.mxu0 0.0
        %1686 = vmatpush.msra.mxu0 0.0
        %1687 = vmatpush.msra.mxu0 0.0
        %1688 = vmatpush.msra.mxu0 0.0
        %1689 = vmatpush.msra.mxu0 0.0
        %1690 = vmatpush.msra.mxu0 0.0
        %1691 = vmatpush.msra.mxu0 0.0
        %1692 = vmatpush.msra.mxu0 %v1517
        %1693 = vmatpush.msra.mxu0 %v1516
        %1694 = vmatpush.msra.mxu0 %v1515
        %1695 = vmatpush.msra.mxu0 %v1514
        %1696 = vmatmul.f32.gmra.mxu0 %v1616
        %v1697 = vpop.f32.mrf.mxu0
        %v1698 = vadd.f32 0.0, %v1697
        %1699 = vmatmul.f32.gmra.mxu0 %v1618
        %v1700 = vpop.f32.mrf.mxu0
        %v1701 = vadd.f32 0.0, %v1700
        %1702 = vmatmul.f32.gmra.mxu0 %v1620
        %v1703 = vpop.f32.mrf.mxu0
        %v1704 = vadd.f32 0.0, %v1703
        %1705 = vmatmul.f32.gmra.mxu0 %v1622
        %v1706 = vpop.f32.mrf.mxu0
        %v1707 = vadd.f32 0.0, %v1706
        %1708 = vmatmul.f32.gmra.mxu0 %v1624
        %v1709 = vpop.f32.mrf.mxu0
        %v1710 = vadd.f32 0.0, %v1709
        %1711 = vmatmul.f32.gmra.mxu0 %v1626
        %v1712 = vpop.f32.mrf.mxu0
        %v1713 = vadd.f32 0.0, %v1712
        %1714 = vmatmul.f32.gmra.mxu0 %v1628
        %v1715 = vpop.f32.mrf.mxu0
        %v1716 = vadd.f32 0.0, %v1715
        %1717 = vmatmul.f32.gmra.mxu0 %v1630
        %v1718 = vpop.f32.mrf.mxu0
        %v1719 = vadd.f32 0.0, %v1718
        %1720 = vmatmul.f32.gmra.mxu0 %v1632
        %v1721 = vpop.f32.mrf.mxu0
        %v1722 = vadd.f32 0.0, %v1721
        %1723 = vmatmul.f32.gmra.mxu0 %v1634
        %v1724 = vpop.f32.mrf.mxu0
        %v1725 = vadd.f32 0.0, %v1724
        %1726 = vmatmul.f32.gmra.mxu0 %v1636
        %v1727 = vpop.f32.mrf.mxu0
        %v1728 = vadd.f32 0.0, %v1727
        %1729 = vmatmul.f32.gmra.mxu0 %v1638
        %v1730 = vpop.f32.mrf.mxu0
        %v1731 = vadd.f32 0.0, %v1730
        %1732 = vmatmul.f32.gmra.mxu0 %v1640
        %v1733 = vpop.f32.mrf.mxu0
        %v1734 = vadd.f32 0.0, %v1733
        %1735 = vmatmul.f32.gmra.mxu0 %v1642
        %v1736 = vpop.f32.mrf.mxu0
        %v1737 = vadd.f32 0.0, %v1736
        %1738 = vmatmul.f32.gmra.mxu0 %v1644
        %v1739 = vpop.f32.mrf.mxu0
        %v1740 = vadd.f32 0.0, %v1739
        %1741 = vmatmul.f32.gmra.mxu0 %v1646
        %v1742 = vpop.f32.mrf.mxu0
        %v1743 = vadd.f32 0.0, %v1742
        %1744 = vmatmul.f32.gmra.mxu0 %v1648
        %v1745 = vpop.f32.mrf.mxu0
        %v1746 = vadd.f32 0.0, %v1745
        %1747 = vmatmul.f32.gmra.mxu0 %v1650
        %v1748 = vpop.f32.mrf.mxu0
        %v1749 = vadd.f32 0.0, %v1748
        %1750 = vmatmul.f32.gmra.mxu0 %v1652
        %v1751 = vpop.f32.mrf.mxu0
        %v1752 = vadd.f32 0.0, %v1751
        %1753 = vmatmul.f32.gmra.mxu0 %v1654
        %v1754 = vpop.f32.mrf.mxu0
        %v1755 = vadd.f32 0.0, %v1754
        %1756 = vmatmul.f32.gmra.mxu0 %v1656
        %v1757 = vpop.f32.mrf.mxu0
        %v1758 = vadd.f32 0.0, %v1757
        %1759 = vmatmul.f32.gmra.mxu0 %v1658
        %v1760 = vpop.f32.mrf.mxu0
        %v1761 = vadd.f32 0.0, %v1760
        %1762 = vmatmul.f32.gmra.mxu0 %v1660
        %v1763 = vpop.f32.mrf.mxu0
        %v1764 = vadd.f32 0.0, %v1763
        %1765 = vmatmul.f32.gmra.mxu0 %v1662
        %v1766 = vpop.f32.mrf.mxu0
        %v1767 = vadd.f32 0.0, %v1766
        %1768 = vmatmul.f32.gmra.mxu0 %v1664
        %v1769 = vpop.f32.mrf.mxu0
        %v1770 = vadd.f32 0.0, %v1769
        %1771 = vmatmul.f32.gmra.mxu0 %v1666
        %v1772 = vpop.f32.mrf.mxu0
        %v1773 = vadd.f32 0.0, %v1772
        %1774 = vmatmul.f32.gmra.mxu0 %v1668
        %v1775 = vpop.f32.mrf.mxu0
        %v1776 = vadd.f32 0.0, %v1775
        %1777 = vmatmul.f32.gmra.mxu0 %v1670
        %v1778 = vpop.f32.mrf.mxu0
        %v1779 = vadd.f32 0.0, %v1778
        %1780 = vmatmul.f32.gmra.mxu0 %v1672
        %v1781 = vpop.f32.mrf.mxu0
        %v1782 = vadd.f32 0.0, %v1781
        %1783 = vmatmul.f32.gmra.mxu0 %v1674
        %v1784 = vpop.f32.mrf.mxu0
        %v1785 = vadd.f32 0.0, %v1784
        %1786 = vmatmul.f32.gmra.mxu0 %v1676
        %v1787 = vpop.f32.mrf.mxu0
        %v1788 = vadd.f32 0.0, %v1787
        %1789 = vmatmul.f32.gmra.mxu0 %v1678
        %v1790 = vpop.f32.mrf.mxu0
        %v1791 = vadd.f32 0.0, %v1790
        %1792 = vdwg.mxu0
        %v1793 = vadd.f32 %v1161, %v1698
        %v1794 = vadd.f32 %v1164, %v1701
        %v1795 = vadd.f32 %v1167, %v1704
        %v1796 = vadd.f32 %v1170, %v1707
        %v1797 = vadd.f32 %v1173, %v1710
        %v1798 = vadd.f32 %v1176, %v1713
        %v1799 = vadd.f32 %v1179, %v1716
        %v1800 = vadd.f32 %v1182, %v1719
        %v1801 = vadd.f32 %v1185, %v1722
        %v1802 = vadd.f32 %v1188, %v1725
        %v1803 = vadd.f32 %v1191, %v1728
        %v1804 = vadd.f32 %v1194, %v1731
        %v1805 = vadd.f32 %v1197, %v1734
        %v1806 = vadd.f32 %v1200, %v1737
        %v1807 = vadd.f32 %v1203, %v1740
        %v1808 = vadd.f32 %v1206, %v1743
        %v1809 = vadd.f32 %v1209, %v1746
        %v1810 = vadd.f32 %v1212, %v1749
        %v1811 = vadd.f32 %v1215, %v1752
        %v1812 = vadd.f32 %v1218, %v1755
        %v1813 = vadd.f32 %v1221, %v1758
        %v1814 = vadd.f32 %v1224, %v1761
        %v1815 = vadd.f32 %v1227, %v1764
        %v1816 = vadd.f32 %v1230, %v1767
        %v1817 = vadd.f32 %v1233, %v1770
        %v1818 = vadd.f32 %v1236, %v1773
        %v1819 = vadd.f32 %v1239, %v1776
        %v1820 = vadd.f32 %v1242, %v1779
        %v1821 = vadd.f32 %v1245, %v1782
        %v1822 = vadd.f32 %v1248, %v1785
        %v1823 = vadd.f32 %v1251, %v1788
        %v1824 = vadd.f32 %v1254, %v1791
        %v1825 = vmul.f32 %v474, %v637
        %v1826 = vmul.f32 %v475, %v639
        %v1827 = vmul.f32 %v476, %v641
        %v1828 = vmul.f32 %v477, %v643
        %v1829 = vmul.f32 %v478, %v645
        %v1830 = vmul.f32 %v479, %v647
        %v1831 = vmul.f32 %v480, %v649
        %v1832 = vmul.f32 %v481, %v651
        %v1833 = vmul.f32 %v482, %v653
        %v1834 = vmul.f32 %v483, %v655
        %v1835 = vmul.f32 %v484, %v657
        %v1836 = vmul.f32 %v485, %v659
        %v1837 = vmul.f32 %v486, %v661
        %v1838 = vmul.f32 %v487, %v663
        %v1839 = vmul.f32 %v488, %v665
        %v1840 = vmul.f32 %v489, %v667
        %v1841 = vmul.f32 %v490, %v669
        %v1842 = vmul.f32 %v491, %v671
        %v1843 = vmul.f32 %v492, %v673
        %v1844 = vmul.f32 %v493, %v675
        %v1845 = vmul.f32 %v494, %v677
        %v1846 = vmul.f32 %v495, %v679
        %v1847 = vmul.f32 %v496, %v681
        %v1848 = vmul.f32 %v497, %v683
        %v1849 = vmul.f32 %v498, %v685
        %v1850 = vmul.f32 %v499, %v687
        %v1851 = vmul.f32 %v500, %v689
        %v1852 = vmul.f32 %v501, %v691
        %v1853 = vmul.f32 %v502, %v693
        %v1854 = vmul.f32 %v503, %v695
        %v1855 = vmul.f32 %v504, %v697
        %v1856 = vmul.f32 %v505, %v696
        %s1857 = scalar_lea.vmem %s4, 96
        %v1858 = vld [vmem:[%s1857] sm:$0xff]
        %v1859 = vld [vmem:[%s1857 + $0x8] sm:$0xff]
        %v1860 = vld [vmem:[%s1857 + $0x10] sm:$0xff]
        %v1861 = vld [vmem:[%s1857 + $0x18] sm:$0xff]
        %v1894 = vrot.slane %v1825, 7
        %v1895 = vsel %vm1013, %v1014, %v1894
        %v1896 = vrot.slane %v1826, 7
        %v1897 = vsel %vm1013, %v1894, %v1896
        %v1898 = vrot.slane %v1827, 7
        %v1899 = vsel %vm1013, %v1896, %v1898
        %v1900 = vrot.slane %v1828, 7
        %v1901 = vsel %vm1013, %v1898, %v1900
        %v1902 = vrot.slane %v1829, 7
        %v1903 = vsel %vm1013, %v1900, %v1902
        %v1904 = vrot.slane %v1830, 7
        %v1905 = vsel %vm1013, %v1902, %v1904
        %v1906 = vrot.slane %v1831, 7
        %v1907 = vsel %vm1013, %v1904, %v1906
        %v1908 = vrot.slane %v1832, 7
        %v1909 = vsel %vm1013, %v1906, %v1908
        %v1910 = vrot.slane %v1833, 7
        %v1911 = vsel %vm1013, %v1908, %v1910
        %v1912 = vrot.slane %v1834, 7
        %v1913 = vsel %vm1013, %v1910, %v1912
        %v1914 = vrot.slane %v1835, 7
        %v1915 = vsel %vm1013, %v1912, %v1914
        %v1916 = vrot.slane %v1836, 7
        %v1917 = vsel %vm1013, %v1914, %v1916
        %v1918 = vrot.slane %v1837, 7
        %v1919 = vsel %vm1013, %v1916, %v1918
        %v1920 = vrot.slane %v1838, 7
        %v1921 = vsel %vm1013, %v1918, %v1920
        %v1922 = vrot.slane %v1839, 7
        %v1923 = vsel %vm1013, %v1920, %v1922
        %v1924 = vrot.slane %v1840, 7
        %v1925 = vsel %vm1013, %v1922, %v1924
        %v1926 = vrot.slane %v1841, 7
        %v1927 = vsel %vm1013, %v1924, %v1926
        %v1928 = vrot.slane %v1842, 7
        %v1929 = vsel %vm1013, %v1926, %v1928
        %v1930 = vrot.slane %v1843, 7
        %v1931 = vsel %vm1013, %v1928, %v1930
        %v1932 = vrot.slane %v1844, 7
        %v1933 = vsel %vm1013, %v1930, %v1932
        %v1934 = vrot.slane %v1845, 7
        %v1935 = vsel %vm1013, %v1932, %v1934
        %v1936 = vrot.slane %v1846, 7
        %v1937 = vsel %vm1013, %v1934, %v1936
        %v1938 = vrot.slane %v1847, 7
        %v1939 = vsel %vm1013, %v1936, %v1938
        %v1940 = vrot.slane %v1848, 7
        %v1941 = vsel %vm1013, %v1938, %v1940
        %v1942 = vrot.slane %v1849, 7
        %v1943 = vsel %vm1013, %v1940, %v1942
        %v1944 = vrot.slane %v1850, 7
        %v1945 = vsel %vm1013, %v1942, %v1944
        %v1946 = vrot.slane %v1851, 7
        %v1947 = vsel %vm1013, %v1944, %v1946
        %v1948 = vrot.slane %v1852, 7
        %v1949 = vsel %vm1013, %v1946, %v1948
        %v1950 = vrot.slane %v1853, 7
        %v1951 = vsel %vm1013, %v1948, %v1950
        %v1952 = vrot.slane %v1854, 7
        %v1953 = vsel %vm1013, %v1950, %v1952
        %v1954 = vrot.slane %v1855, 7
        %v1955 = vsel %vm1013, %v1952, %v1954
        %v1956 = vrot.slane %v1856, 7
        %v1957 = vsel %vm1013, %v1954, %v1956
        %v1958 = vsel %vm773, %v1895, 0
        %v1960 = vsel %vm773, %v1897, 0
        %v1962 = vsel %vm773, %v1899, 0
        %v1964 = vsel %vm773, %v1901, 0
        %v1966 = vsel %vm773, %v1903, 0
        %v1968 = vsel %vm773, %v1905, 0
        %v1970 = vsel %vm773, %v1907, 0
        %v1972 = vsel %vm773, %v1909, 0
        %v1974 = vsel %vm773, %v1911, 0
        %v1976 = vsel %vm773, %v1913, 0
        %v1978 = vsel %vm773, %v1915, 0
        %v1980 = vsel %vm773, %v1917, 0
        %v1982 = vsel %vm773, %v1919, 0
        %v1984 = vsel %vm773, %v1921, 0
        %v1986 = vsel %vm773, %v1923, 0
        %v1988 = vsel %vm773, %v1925, 0
        %v1990 = vsel %vm773, %v1927, 0
        %v1992 = vsel %vm773, %v1929, 0
        %v1994 = vsel %vm773, %v1931, 0
        %v1996 = vsel %vm773, %v1933, 0
        %v1998 = vsel %vm773, %v1935, 0
        %v2000 = vsel %vm773, %v1937, 0
        %v2002 = vsel %vm773, %v1939, 0
        %v2004 = vsel %vm773, %v1941, 0
        %v2006 = vsel %vm773, %v1943, 0
        %v2008 = vsel %vm773, %v1945, 0
        %v2010 = vsel %vm773, %v1947, 0
        %v2012 = vsel %vm773, %v1949, 0
        %v2014 = vsel %vm773, %v1951, 0
        %v2016 = vsel %vm773, %v1953, 0
        %v2018 = vsel %vm773, %v1955, 0
        %v2020 = vsel %vm773, %v1957, 0
        %2022 = vmatpush.msra.mxu0 0.0
        %2023 = vmatpush.msra.mxu0 0.0
        %2024 = vmatpush.msra.mxu0 0.0
        %2025 = vmatpush.msra.mxu0 0.0
        %2026 = vmatpush.msra.mxu0 0.0
        %2027 = vmatpush.msra.mxu0 0.0
        %2028 = vmatpush.msra.mxu0 0.0
        %2029 = vmatpush.msra.mxu0 0.0
        %2030 = vmatpush.msra.mxu0 0.0
        %2031 = vmatpush.msra.mxu0 0.0
        %2032 = vmatpush.msra.mxu0 0.0
        %2033 = vmatpush.msra.mxu0 0.0
        %2034 = vmatpush.msra.mxu0 %v1861
        %2035 = vmatpush.msra.mxu0 %v1860
        %2036 = vmatpush.msra.mxu0 %v1859
        %2037 = vmatpush.msra.mxu0 %v1858
        %2038 = vmatmul.f32.gmra.mxu0 %v1958
        %v2039 = vpop.f32.mrf.mxu0
        %v2040 = vadd.f32 0.0, %v2039
        %2041 = vmatmul.f32.gmra.mxu0 %v1960
        %v2042 = vpop.f32.mrf.mxu0
        %v2043 = vadd.f32 0.0, %v2042
        %2044 = vmatmul.f32.gmra.mxu0 %v1962
        %v2045 = vpop.f32.mrf.mxu0
        %v2046 = vadd.f32 0.0, %v2045
        %2047 = vmatmul.f32.gmra.mxu0 %v1964
        %v2048 = vpop.f32.mrf.mxu0
        %v2049 = vadd.f32 0.0, %v2048
        %2050 = vmatmul.f32.gmra.mxu0 %v1966
        %v2051 = vpop.f32.mrf.mxu0
        %v2052 = vadd.f32 0.0, %v2051
        %2053 = vmatmul.f32.gmra.mxu0 %v1968
        %v2054 = vpop.f32.mrf.mxu0
        %v2055 = vadd.f32 0.0, %v2054
        %2056 = vmatmul.f32.gmra.mxu0 %v1970
        %v2057 = vpop.f32.mrf.mxu0
        %v2058 = vadd.f32 0.0, %v2057
        %2059 = vmatmul.f32.gmra.mxu0 %v1972
        %v2060 = vpop.f32.mrf.mxu0
        %v2061 = vadd.f32 0.0, %v2060
        %2062 = vmatmul.f32.gmra.mxu0 %v1974
        %v2063 = vpop.f32.mrf.mxu0
        %v2064 = vadd.f32 0.0, %v2063
        %2065 = vmatmul.f32.gmra.mxu0 %v1976
        %v2066 = vpop.f32.mrf.mxu0
        %v2067 = vadd.f32 0.0, %v2066
        %2068 = vmatmul.f32.gmra.mxu0 %v1978
        %v2069 = vpop.f32.mrf.mxu0
        %v2070 = vadd.f32 0.0, %v2069
        %2071 = vmatmul.f32.gmra.mxu0 %v1980
        %v2072 = vpop.f32.mrf.mxu0
        %v2073 = vadd.f32 0.0, %v2072
        %2074 = vmatmul.f32.gmra.mxu0 %v1982
        %v2075 = vpop.f32.mrf.mxu0
        %v2076 = vadd.f32 0.0, %v2075
        %2077 = vmatmul.f32.gmra.mxu0 %v1984
        %v2078 = vpop.f32.mrf.mxu0
        %v2079 = vadd.f32 0.0, %v2078
        %2080 = vmatmul.f32.gmra.mxu0 %v1986
        %v2081 = vpop.f32.mrf.mxu0
        %v2082 = vadd.f32 0.0, %v2081
        %2083 = vmatmul.f32.gmra.mxu0 %v1988
        %v2084 = vpop.f32.mrf.mxu0
        %v2085 = vadd.f32 0.0, %v2084
        %2086 = vmatmul.f32.gmra.mxu0 %v1990
        %v2087 = vpop.f32.mrf.mxu0
        %v2088 = vadd.f32 0.0, %v2087
        %2089 = vmatmul.f32.gmra.mxu0 %v1992
        %v2090 = vpop.f32.mrf.mxu0
        %v2091 = vadd.f32 0.0, %v2090
        %2092 = vmatmul.f32.gmra.mxu0 %v1994
        %v2093 = vpop.f32.mrf.mxu0
        %v2094 = vadd.f32 0.0, %v2093
        %2095 = vmatmul.f32.gmra.mxu0 %v1996
        %v2096 = vpop.f32.mrf.mxu0
        %v2097 = vadd.f32 0.0, %v2096
        %2098 = vmatmul.f32.gmra.mxu0 %v1998
        %v2099 = vpop.f32.mrf.mxu0
        %v2100 = vadd.f32 0.0, %v2099
        %2101 = vmatmul.f32.gmra.mxu0 %v2000
        %v2102 = vpop.f32.mrf.mxu0
        %v2103 = vadd.f32 0.0, %v2102
        %2104 = vmatmul.f32.gmra.mxu0 %v2002
        %v2105 = vpop.f32.mrf.mxu0
        %v2106 = vadd.f32 0.0, %v2105
        %2107 = vmatmul.f32.gmra.mxu0 %v2004
        %v2108 = vpop.f32.mrf.mxu0
        %v2109 = vadd.f32 0.0, %v2108
        %2110 = vmatmul.f32.gmra.mxu0 %v2006
        %v2111 = vpop.f32.mrf.mxu0
        %v2112 = vadd.f32 0.0, %v2111
        %2113 = vmatmul.f32.gmra.mxu0 %v2008
        %v2114 = vpop.f32.mrf.mxu0
        %v2115 = vadd.f32 0.0, %v2114
        %2116 = vmatmul.f32.gmra.mxu0 %v2010
        %v2117 = vpop.f32.mrf.mxu0
        %v2118 = vadd.f32 0.0, %v2117
        %2119 = vmatmul.f32.gmra.mxu0 %v2012
        %v2120 = vpop.f32.mrf.mxu0
        %v2121 = vadd.f32 0.0, %v2120
        %2122 = vmatmul.f32.gmra.mxu0 %v2014
        %v2123 = vpop.f32.mrf.mxu0
        %v2124 = vadd.f32 0.0, %v2123
        %2125 = vmatmul.f32.gmra.mxu0 %v2016
        %v2126 = vpop.f32.mrf.mxu0
        %v2127 = vadd.f32 0.0, %v2126
        %2128 = vmatmul.f32.gmra.mxu0 %v2018
        %v2129 = vpop.f32.mrf.mxu0
        %v2130 = vadd.f32 0.0, %v2129
        %2131 = vmatmul.f32.gmra.mxu0 %v2020
        %v2132 = vpop.f32.mrf.mxu0
        %v2133 = vadd.f32 0.0, %v2132
        %2134 = vdwg.mxu0
        %v2135 = vadd.f32 %v1793, %v2040
        %v2136 = vadd.f32 %v1794, %v2043
        %v2137 = vadd.f32 %v1795, %v2046
        %v2138 = vadd.f32 %v1796, %v2049
        %v2139 = vadd.f32 %v1797, %v2052
        %v2140 = vadd.f32 %v1798, %v2055
        %v2141 = vadd.f32 %v1799, %v2058
        %v2142 = vadd.f32 %v1800, %v2061
        %v2143 = vadd.f32 %v1801, %v2064
        %v2144 = vadd.f32 %v1802, %v2067
        %v2145 = vadd.f32 %v1803, %v2070
        %v2146 = vadd.f32 %v1804, %v2073
        %v2147 = vadd.f32 %v1805, %v2076
        %v2148 = vadd.f32 %v1806, %v2079
        %v2149 = vadd.f32 %v1807, %v2082
        %v2150 = vadd.f32 %v1808, %v2085
        %v2151 = vadd.f32 %v1809, %v2088
        %v2152 = vadd.f32 %v1810, %v2091
        %v2153 = vadd.f32 %v1811, %v2094
        %v2154 = vadd.f32 %v1812, %v2097
        %v2155 = vadd.f32 %v1813, %v2100
        %v2156 = vadd.f32 %v1814, %v2103
        %v2157 = vadd.f32 %v1815, %v2106
        %v2158 = vadd.f32 %v1816, %v2109
        %v2159 = vadd.f32 %v1817, %v2112
        %v2160 = vadd.f32 %v1818, %v2115
        %v2161 = vadd.f32 %v1819, %v2118
        %v2162 = vadd.f32 %v1820, %v2121
        %v2163 = vadd.f32 %v1821, %v2124
        %v2164 = vadd.f32 %v1822, %v2127
        %v2165 = vadd.f32 %v1823, %v2130
        %v2166 = vadd.f32 %v1824, %v2133
        %s2167 = scalar_lea.vmem %s4, 128
        %v2168 = vld [vmem:[%s2167] sm:$0xff]
        %v2169 = vld [vmem:[%s2167 + $0x8] sm:$0xff]
        %v2170 = vld [vmem:[%s2167 + $0x10] sm:$0xff]
        %v2171 = vld [vmem:[%s2167 + $0x18] sm:$0xff]
        %v2173 = vsel %vm773, %v504, 0
        %v2176 = vsel %vm773, %v505, 0
        %2178 = vmatpush.msra.mxu0 0.0
        %2179 = vmatpush.msra.mxu0 0.0
        %2180 = vmatpush.msra.mxu0 0.0
        %2181 = vmatpush.msra.mxu0 0.0
        %2182 = vmatpush.msra.mxu0 0.0
        %2183 = vmatpush.msra.mxu0 0.0
        %2184 = vmatpush.msra.mxu0 0.0
        %2185 = vmatpush.msra.mxu0 0.0
        %2186 = vmatpush.msra.mxu0 0.0
        %2187 = vmatpush.msra.mxu0 0.0
        %2188 = vmatpush.msra.mxu0 0.0
        %2189 = vmatpush.msra.mxu0 0.0
        %2190 = vmatpush.msra.mxu0 %v2171
        %2191 = vmatpush.msra.mxu0 %v2170
        %2192 = vmatpush.msra.mxu0 %v2169
        %2193 = vmatpush.msra.mxu0 %v2168
        %2194 = vmatmul.f32.gmra.mxu0 %v778
        %v2195 = vpop.f32.mrf.mxu0
        %v2196 = vadd.f32 0.0, %v2195
        %2197 = vmatmul.f32.gmra.mxu0 %v781
        %v2198 = vpop.f32.mrf.mxu0
        %v2199 = vadd.f32 0.0, %v2198
        %2200 = vmatmul.f32.gmra.mxu0 %v784
        %v2201 = vpop.f32.mrf.mxu0
        %v2202 = vadd.f32 0.0, %v2201
        %2203 = vmatmul.f32.gmra.mxu0 %v787
        %v2204 = vpop.f32.mrf.mxu0
        %v2205 = vadd.f32 0.0, %v2204
        %2206 = vmatmul.f32.gmra.mxu0 %v790
        %v2207 = vpop.f32.mrf.mxu0
        %v2208 = vadd.f32 0.0, %v2207
        %2209 = vmatmul.f32.gmra.mxu0 %v793
        %v2210 = vpop.f32.mrf.mxu0
        %v2211 = vadd.f32 0.0, %v2210
        %2212 = vmatmul.f32.gmra.mxu0 %v796
        %v2213 = vpop.f32.mrf.mxu0
        %v2214 = vadd.f32 0.0, %v2213
        %2215 = vmatmul.f32.gmra.mxu0 %v799
        %v2216 = vpop.f32.mrf.mxu0
        %v2217 = vadd.f32 0.0, %v2216
        %2218 = vmatmul.f32.gmra.mxu0 %v802
        %v2219 = vpop.f32.mrf.mxu0
        %v2220 = vadd.f32 0.0, %v2219
        %2221 = vmatmul.f32.gmra.mxu0 %v805
        %v2222 = vpop.f32.mrf.mxu0
        %v2223 = vadd.f32 0.0, %v2222
        %2224 = vmatmul.f32.gmra.mxu0 %v808
        %v2225 = vpop.f32.mrf.mxu0
        %v2226 = vadd.f32 0.0, %v2225
        %2227 = vmatmul.f32.gmra.mxu0 %v811
        %v2228 = vpop.f32.mrf.mxu0
        %v2229 = vadd.f32 0.0, %v2228
        %2230 = vmatmul.f32.gmra.mxu0 %v814
        %v2231 = vpop.f32.mrf.mxu0
        %v2232 = vadd.f32 0.0, %v2231
        %2233 = vmatmul.f32.gmra.mxu0 %v817
        %v2234 = vpop.f32.mrf.mxu0
        %v2235 = vadd.f32 0.0, %v2234
        %2236 = vmatmul.f32.gmra.mxu0 %v820
        %v2237 = vpop.f32.mrf.mxu0
        %v2238 = vadd.f32 0.0, %v2237
        %2239 = vmatmul.f32.gmra.mxu0 %v823
        %v2240 = vpop.f32.mrf.mxu0
        %v2241 = vadd.f32 0.0, %v2240
        %2242 = vmatmul.f32.gmra.mxu0 %v826
        %v2243 = vpop.f32.mrf.mxu0
        %v2244 = vadd.f32 0.0, %v2243
        %2245 = vmatmul.f32.gmra.mxu0 %v829
        %v2246 = vpop.f32.mrf.mxu0
        %v2247 = vadd.f32 0.0, %v2246
        %2248 = vmatmul.f32.gmra.mxu0 %v832
        %v2249 = vpop.f32.mrf.mxu0
        %v2250 = vadd.f32 0.0, %v2249
        %2251 = vmatmul.f32.gmra.mxu0 %v835
        %v2252 = vpop.f32.mrf.mxu0
        %v2253 = vadd.f32 0.0, %v2252
        %2254 = vmatmul.f32.gmra.mxu0 %v838
        %v2255 = vpop.f32.mrf.mxu0
        %v2256 = vadd.f32 0.0, %v2255
        %2257 = vmatmul.f32.gmra.mxu0 %v841
        %v2258 = vpop.f32.mrf.mxu0
        %v2259 = vadd.f32 0.0, %v2258
        %2260 = vmatmul.f32.gmra.mxu0 %v844
        %v2261 = vpop.f32.mrf.mxu0
        %v2262 = vadd.f32 0.0, %v2261
        %2263 = vmatmul.f32.gmra.mxu0 %v847
        %v2264 = vpop.f32.mrf.mxu0
        %v2265 = vadd.f32 0.0, %v2264
        %2266 = vmatmul.f32.gmra.mxu0 %v850
        %v2267 = vpop.f32.mrf.mxu0
        %v2268 = vadd.f32 0.0, %v2267
        %2269 = vmatmul.f32.gmra.mxu0 %v853
        %v2270 = vpop.f32.mrf.mxu0
        %v2271 = vadd.f32 0.0, %v2270
        %2272 = vmatmul.f32.gmra.mxu0 %v856
        %v2273 = vpop.f32.mrf.mxu0
        %v2274 = vadd.f32 0.0, %v2273
        %2275 = vmatmul.f32.gmra.mxu0 %v859
        %v2276 = vpop.f32.mrf.mxu0
        %v2277 = vadd.f32 0.0, %v2276
        %2278 = vmatmul.f32.gmra.mxu0 %v862
        %v2279 = vpop.f32.mrf.mxu0
        %v2280 = vadd.f32 0.0, %v2279
        %2281 = vmatmul.f32.gmra.mxu0 %v865
        %v2282 = vpop.f32.mrf.mxu0
        %v2283 = vadd.f32 0.0, %v2282
        %2284 = vmatmul.f32.gmra.mxu0 %v2173
        %v2285 = vpop.f32.mrf.mxu0
        %v2286 = vadd.f32 0.0, %v2285
        %2287 = vmatmul.f32.gmra.mxu0 %v2176
        %v2288 = vpop.f32.mrf.mxu0
        %v2289 = vadd.f32 0.0, %v2288
        %2290 = vdwg.mxu0
        %v2291 = vadd.f32 %v2135, %v2196
        %v2292 = vadd.f32 %v2136, %v2199
        %v2293 = vadd.f32 %v2137, %v2202
        %v2294 = vadd.f32 %v2138, %v2205
        %v2295 = vadd.f32 %v2139, %v2208
        %v2296 = vadd.f32 %v2140, %v2211
        %v2297 = vadd.f32 %v2141, %v2214
        %v2298 = vadd.f32 %v2142, %v2217
        %v2299 = vadd.f32 %v2143, %v2220
        %v2300 = vadd.f32 %v2144, %v2223
        %v2301 = vadd.f32 %v2145, %v2226
        %v2302 = vadd.f32 %v2146, %v2229
        %v2303 = vadd.f32 %v2147, %v2232
        %v2304 = vadd.f32 %v2148, %v2235
        %v2305 = vadd.f32 %v2149, %v2238
        %v2306 = vadd.f32 %v2150, %v2241
        %v2307 = vadd.f32 %v2151, %v2244
        %v2308 = vadd.f32 %v2152, %v2247
        %v2309 = vadd.f32 %v2153, %v2250
        %v2310 = vadd.f32 %v2154, %v2253
        %v2311 = vadd.f32 %v2155, %v2256
        %v2312 = vadd.f32 %v2156, %v2259
        %v2313 = vadd.f32 %v2157, %v2262
        %v2314 = vadd.f32 %v2158, %v2265
        %v2315 = vadd.f32 %v2159, %v2268
        %v2316 = vadd.f32 %v2160, %v2271
        %v2317 = vadd.f32 %v2161, %v2274
        %v2318 = vadd.f32 %v2162, %v2277
        %v2319 = vadd.f32 %v2163, %v2280
        %v2320 = vadd.f32 %v2164, %v2283
        %v2321 = vadd.f32 %v2165, %v2286
        %v2322 = vadd.f32 %v2166, %v2289
        %v2323 = vmul.f32 %v474, %v1384
        %v2324 = vmul.f32 %v475, %v1386
        %v2325 = vmul.f32 %v476, %v1388
        %v2326 = vmul.f32 %v477, %v1390
        %v2327 = vmul.f32 %v478, %v1392
        %v2328 = vmul.f32 %v479, %v1394
        %v2329 = vmul.f32 %v480, %v1396
        %v2330 = vmul.f32 %v481, %v1398
        %v2331 = vmul.f32 %v482, %v1400
        %v2332 = vmul.f32 %v483, %v1402
        %v2333 = vmul.f32 %v484, %v1404
        %v2334 = vmul.f32 %v485, %v1406
        %v2335 = vmul.f32 %v486, %v1408
        %v2336 = vmul.f32 %v487, %v1410
        %v2337 = vmul.f32 %v488, %v1412
        %v2338 = vmul.f32 %v489, %v1414
        %v2339 = vmul.f32 %v490, %v1416
        %v2340 = vmul.f32 %v491, %v1418
        %v2341 = vmul.f32 %v492, %v1420
        %v2342 = vmul.f32 %v493, %v1422
        %v2343 = vmul.f32 %v494, %v1424
        %v2344 = vmul.f32 %v495, %v1426
        %v2345 = vmul.f32 %v496, %v1428
        %v2346 = vmul.f32 %v497, %v1430
        %v2347 = vmul.f32 %v498, %v1432
        %v2348 = vmul.f32 %v499, %v1434
        %v2349 = vmul.f32 %v500, %v1436
        %v2350 = vmul.f32 %v501, %v1438
        %v2351 = vmul.f32 %v502, %v1440
        %v2352 = vmul.f32 %v503, %v1442
        %v2353 = vmul.f32 %v504, %v1444
        %v2354 = vmul.f32 %v505, %v1446
        %v2355 = vmul.f32 %v1445, 0.0
        %s2356 = scalar_lea.vmem %s4, 160
        %v2357 = vld [vmem:[%s2356] sm:$0xff]
        %v2358 = vld [vmem:[%s2356 + $0x8] sm:$0xff]
        %v2359 = vld [vmem:[%s2356 + $0x10] sm:$0xff]
        %v2360 = vld [vmem:[%s2356 + $0x18] sm:$0xff]
        %v2394 = vrot.slane %v2323, 1
        %v2395 = vrot.slane %v2324, 1
        %v2396 = vsel %vm634, %v2394, %v2395
        %v2397 = vrot.slane %v2325, 1
        %v2398 = vsel %vm634, %v2395, %v2397
        %v2399 = vrot.slane %v2326, 1
        %v2400 = vsel %vm634, %v2397, %v2399
        %v2401 = vrot.slane %v2327, 1
        %v2402 = vsel %vm634, %v2399, %v2401
        %v2403 = vrot.slane %v2328, 1
        %v2404 = vsel %vm634, %v2401, %v2403
        %v2405 = vrot.slane %v2329, 1
        %v2406 = vsel %vm634, %v2403, %v2405
        %v2407 = vrot.slane %v2330, 1
        %v2408 = vsel %vm634, %v2405, %v2407
        %v2409 = vrot.slane %v2331, 1
        %v2410 = vsel %vm634, %v2407, %v2409
        %v2411 = vrot.slane %v2332, 1
        %v2412 = vsel %vm634, %v2409, %v2411
        %v2413 = vrot.slane %v2333, 1
        %v2414 = vsel %vm634, %v2411, %v2413
        %v2415 = vrot.slane %v2334, 1
        %v2416 = vsel %vm634, %v2413, %v2415
        %v2417 = vrot.slane %v2335, 1
        %v2418 = vsel %vm634, %v2415, %v2417
        %v2419 = vrot.slane %v2336, 1
        %v2420 = vsel %vm634, %v2417, %v2419
        %v2421 = vrot.slane %v2337, 1
        %v2422 = vsel %vm634, %v2419, %v2421
        %v2423 = vrot.slane %v2338, 1
        %v2424 = vsel %vm634, %v2421, %v2423
        %v2425 = vrot.slane %v2339, 1
        %v2426 = vsel %vm634, %v2423, %v2425
        %v2427 = vrot.slane %v2340, 1
        %v2428 = vsel %vm634, %v2425, %v2427
        %v2429 = vrot.slane %v2341, 1
        %v2430 = vsel %vm634, %v2427, %v2429
        %v2431 = vrot.slane %v2342, 1
        %v2432 = vsel %vm634, %v2429, %v2431
        %v2433 = vrot.slane %v2343, 1
        %v2434 = vsel %vm634, %v2431, %v2433
        %v2435 = vrot.slane %v2344, 1
        %v2436 = vsel %vm634, %v2433, %v2435
        %v2437 = vrot.slane %v2345, 1
        %v2438 = vsel %vm634, %v2435, %v2437
        %v2439 = vrot.slane %v2346, 1
        %v2440 = vsel %vm634, %v2437, %v2439
        %v2441 = vrot.slane %v2347, 1
        %v2442 = vsel %vm634, %v2439, %v2441
        %v2443 = vrot.slane %v2348, 1
        %v2444 = vsel %vm634, %v2441, %v2443
        %v2445 = vrot.slane %v2349, 1
        %v2446 = vsel %vm634, %v2443, %v2445
        %v2447 = vrot.slane %v2350, 1
        %v2448 = vsel %vm634, %v2445, %v2447
        %v2449 = vrot.slane %v2351, 1
        %v2450 = vsel %vm634, %v2447, %v2449
        %v2451 = vrot.slane %v2352, 1
        %v2452 = vsel %vm634, %v2449, %v2451
        %v2453 = vrot.slane %v2353, 1
        %v2454 = vsel %vm634, %v2451, %v2453
        %v2455 = vrot.slane %v2354, 1
        %v2456 = vsel %vm634, %v2453, %v2455
        %v2457 = vrot.slane %v2355, 1
        %v2458 = vsel %vm634, %v2455, %v2457
        %v2459 = vsel %vm773, %v2396, 0
        %v2461 = vsel %vm773, %v2398, 0
        %v2463 = vsel %vm773, %v2400, 0
        %v2465 = vsel %vm773, %v2402, 0
        %v2467 = vsel %vm773, %v2404, 0
        %v2469 = vsel %vm773, %v2406, 0
        %v2471 = vsel %vm773, %v2408, 0
        %v2473 = vsel %vm773, %v2410, 0
        %v2475 = vsel %vm773, %v2412, 0
        %v2477 = vsel %vm773, %v2414, 0
        %v2479 = vsel %vm773, %v2416, 0
        %v2481 = vsel %vm773, %v2418, 0
        %v2483 = vsel %vm773, %v2420, 0
        %v2485 = vsel %vm773, %v2422, 0
        %v2487 = vsel %vm773, %v2424, 0
        %v2489 = vsel %vm773, %v2426, 0
        %v2491 = vsel %vm773, %v2428, 0
        %v2493 = vsel %vm773, %v2430, 0
        %v2495 = vsel %vm773, %v2432, 0
        %v2497 = vsel %vm773, %v2434, 0
        %v2499 = vsel %vm773, %v2436, 0
        %v2501 = vsel %vm773, %v2438, 0
        %v2503 = vsel %vm773, %v2440, 0
        %v2505 = vsel %vm773, %v2442, 0
        %v2507 = vsel %vm773, %v2444, 0
        %v2509 = vsel %vm773, %v2446, 0
        %v2511 = vsel %vm773, %v2448, 0
        %v2513 = vsel %vm773, %v2450, 0
        %v2515 = vsel %vm773, %v2452, 0
        %v2517 = vsel %vm773, %v2454, 0
        %v2519 = vsel %vm773, %v2456, 0
        %v2521 = vsel %vm773, %v2458, 0
        %2523 = vmatpush.msra.mxu0 0.0
        %2524 = vmatpush.msra.mxu0 0.0
        %2525 = vmatpush.msra.mxu0 0.0
        %2526 = vmatpush.msra.mxu0 0.0
        %2527 = vmatpush.msra.mxu0 0.0
        %2528 = vmatpush.msra.mxu0 0.0
        %2529 = vmatpush.msra.mxu0 0.0
        %2530 = vmatpush.msra.mxu0 0.0
        %2531 = vmatpush.msra.mxu0 0.0
        %2532 = vmatpush.msra.mxu0 0.0
        %2533 = vmatpush.msra.mxu0 0.0
        %2534 = vmatpush.msra.mxu0 0.0
        %2535 = vmatpush.msra.mxu0 %v2360
        %2536 = vmatpush.msra.mxu0 %v2359
        %2537 = vmatpush.msra.mxu0 %v2358
        %2538 = vmatpush.msra.mxu0 %v2357
        %2539 = vmatmul.f32.gmra.mxu0 %v2459
        %v2540 = vpop.f32.mrf.mxu0
        %v2541 = vadd.f32 0.0, %v2540
        %2542 = vmatmul.f32.gmra.mxu0 %v2461
        %v2543 = vpop.f32.mrf.mxu0
        %v2544 = vadd.f32 0.0, %v2543
        %2545 = vmatmul.f32.gmra.mxu0 %v2463
        %v2546 = vpop.f32.mrf.mxu0
        %v2547 = vadd.f32 0.0, %v2546
        %2548 = vmatmul.f32.gmra.mxu0 %v2465
        %v2549 = vpop.f32.mrf.mxu0
        %v2550 = vadd.f32 0.0, %v2549
        %2551 = vmatmul.f32.gmra.mxu0 %v2467
        %v2552 = vpop.f32.mrf.mxu0
        %v2553 = vadd.f32 0.0, %v2552
        %2554 = vmatmul.f32.gmra.mxu0 %v2469
        %v2555 = vpop.f32.mrf.mxu0
        %v2556 = vadd.f32 0.0, %v2555
        %2557 = vmatmul.f32.gmra.mxu0 %v2471
        %v2558 = vpop.f32.mrf.mxu0
        %v2559 = vadd.f32 0.0, %v2558
        %2560 = vmatmul.f32.gmra.mxu0 %v2473
        %v2561 = vpop.f32.mrf.mxu0
        %v2562 = vadd.f32 0.0, %v2561
        %2563 = vmatmul.f32.gmra.mxu0 %v2475
        %v2564 = vpop.f32.mrf.mxu0
        %v2565 = vadd.f32 0.0, %v2564
        %2566 = vmatmul.f32.gmra.mxu0 %v2477
        %v2567 = vpop.f32.mrf.mxu0
        %v2568 = vadd.f32 0.0, %v2567
        %2569 = vmatmul.f32.gmra.mxu0 %v2479
        %v2570 = vpop.f32.mrf.mxu0
        %v2571 = vadd.f32 0.0, %v2570
        %2572 = vmatmul.f32.gmra.mxu0 %v2481
        %v2573 = vpop.f32.mrf.mxu0
        %v2574 = vadd.f32 0.0, %v2573
        %2575 = vmatmul.f32.gmra.mxu0 %v2483
        %v2576 = vpop.f32.mrf.mxu0
        %v2577 = vadd.f32 0.0, %v2576
        %2578 = vmatmul.f32.gmra.mxu0 %v2485
        %v2579 = vpop.f32.mrf.mxu0
        %v2580 = vadd.f32 0.0, %v2579
        %2581 = vmatmul.f32.gmra.mxu0 %v2487
        %v2582 = vpop.f32.mrf.mxu0
        %v2583 = vadd.f32 0.0, %v2582
        %2584 = vmatmul.f32.gmra.mxu0 %v2489
        %v2585 = vpop.f32.mrf.mxu0
        %v2586 = vadd.f32 0.0, %v2585
        %2587 = vmatmul.f32.gmra.mxu0 %v2491
        %v2588 = vpop.f32.mrf.mxu0
        %v2589 = vadd.f32 0.0, %v2588
        %2590 = vmatmul.f32.gmra.mxu0 %v2493
        %v2591 = vpop.f32.mrf.mxu0
        %v2592 = vadd.f32 0.0, %v2591
        %2593 = vmatmul.f32.gmra.mxu0 %v2495
        %v2594 = vpop.f32.mrf.mxu0
        %v2595 = vadd.f32 0.0, %v2594
        %2596 = vmatmul.f32.gmra.mxu0 %v2497
        %v2597 = vpop.f32.mrf.mxu0
        %v2598 = vadd.f32 0.0, %v2597
        %2599 = vmatmul.f32.gmra.mxu0 %v2499
        %v2600 = vpop.f32.mrf.mxu0
        %v2601 = vadd.f32 0.0, %v2600
        %2602 = vmatmul.f32.gmra.mxu0 %v2501
        %v2603 = vpop.f32.mrf.mxu0
        %v2604 = vadd.f32 0.0, %v2603
        %2605 = vmatmul.f32.gmra.mxu0 %v2503
        %v2606 = vpop.f32.mrf.mxu0
        %v2607 = vadd.f32 0.0, %v2606
        %2608 = vmatmul.f32.gmra.mxu0 %v2505
        %v2609 = vpop.f32.mrf.mxu0
        %v2610 = vadd.f32 0.0, %v2609
        %2611 = vmatmul.f32.gmra.mxu0 %v2507
        %v2612 = vpop.f32.mrf.mxu0
        %v2613 = vadd.f32 0.0, %v2612
        %2614 = vmatmul.f32.gmra.mxu0 %v2509
        %v2615 = vpop.f32.mrf.mxu0
        %v2616 = vadd.f32 0.0, %v2615
        %2617 = vmatmul.f32.gmra.mxu0 %v2511
        %v2618 = vpop.f32.mrf.mxu0
        %v2619 = vadd.f32 0.0, %v2618
        %2620 = vmatmul.f32.gmra.mxu0 %v2513
        %v2621 = vpop.f32.mrf.mxu0
        %v2622 = vadd.f32 0.0, %v2621
        %2623 = vmatmul.f32.gmra.mxu0 %v2515
        %v2624 = vpop.f32.mrf.mxu0
        %v2625 = vadd.f32 0.0, %v2624
        %2626 = vmatmul.f32.gmra.mxu0 %v2517
        %v2627 = vpop.f32.mrf.mxu0
        %v2628 = vadd.f32 0.0, %v2627
        %2629 = vmatmul.f32.gmra.mxu0 %v2519
        %v2630 = vpop.f32.mrf.mxu0
        %v2631 = vadd.f32 0.0, %v2630
        %2632 = vmatmul.f32.gmra.mxu0 %v2521
        %v2633 = vpop.f32.mrf.mxu0
        %v2634 = vadd.f32 0.0, %v2633
        %2635 = vdwg.mxu0
        %v2636 = vadd.f32 %v2291, %v2541
        %v2637 = vadd.f32 %v2292, %v2544
        %v2638 = vadd.f32 %v2293, %v2547
        %v2639 = vadd.f32 %v2294, %v2550
        %v2640 = vadd.f32 %v2295, %v2553
        %v2641 = vadd.f32 %v2296, %v2556
        %v2642 = vadd.f32 %v2297, %v2559
        %v2643 = vadd.f32 %v2298, %v2562
        %v2644 = vadd.f32 %v2299, %v2565
        %v2645 = vadd.f32 %v2300, %v2568
        %v2646 = vadd.f32 %v2301, %v2571
        %v2647 = vadd.f32 %v2302, %v2574
        %v2648 = vadd.f32 %v2303, %v2577
        %v2649 = vadd.f32 %v2304, %v2580
        %v2650 = vadd.f32 %v2305, %v2583
        %v2651 = vadd.f32 %v2306, %v2586
        %v2652 = vadd.f32 %v2307, %v2589
        %v2653 = vadd.f32 %v2308, %v2592
        %v2654 = vadd.f32 %v2309, %v2595
        %v2655 = vadd.f32 %v2310, %v2598
        %v2656 = vadd.f32 %v2311, %v2601
        %v2657 = vadd.f32 %v2312, %v2604
        %v2658 = vadd.f32 %v2313, %v2607
        %v2659 = vadd.f32 %v2314, %v2610
        %v2660 = vadd.f32 %v2315, %v2613
        %v2661 = vadd.f32 %v2316, %v2616
        %v2662 = vadd.f32 %v2317, %v2619
        %v2663 = vadd.f32 %v2318, %v2622
        %v2664 = vadd.f32 %v2319, %v2625
        %v2665 = vadd.f32 %v2320, %v2628
        %v2666 = vadd.f32 %v2321, %v2631
        %v2667 = vadd.f32 %v2322, %v2634
        %v2668 = vmul.f32 %v475, %v635
        %v2669 = vmul.f32 %v476, %v637
        %v2670 = vmul.f32 %v477, %v639
        %v2671 = vmul.f32 %v478, %v641
        %v2672 = vmul.f32 %v479, %v643
        %v2673 = vmul.f32 %v480, %v645
        %v2674 = vmul.f32 %v481, %v647
        %v2675 = vmul.f32 %v482, %v649
        %v2676 = vmul.f32 %v483, %v651
        %v2677 = vmul.f32 %v484, %v653
        %v2678 = vmul.f32 %v485, %v655
        %v2679 = vmul.f32 %v486, %v657
        %v2680 = vmul.f32 %v487, %v659
        %v2681 = vmul.f32 %v488, %v661
        %v2682 = vmul.f32 %v489, %v663
        %v2683 = vmul.f32 %v490, %v665
        %v2684 = vmul.f32 %v491, %v667
        %v2685 = vmul.f32 %v492, %v669
        %v2686 = vmul.f32 %v493, %v671
        %v2687 = vmul.f32 %v494, %v673
        %v2688 = vmul.f32 %v495, %v675
        %v2689 = vmul.f32 %v496, %v677
        %v2690 = vmul.f32 %v497, %v679
        %v2691 = vmul.f32 %v498, %v681
        %v2692 = vmul.f32 %v499, %v683
        %v2693 = vmul.f32 %v500, %v685
        %v2694 = vmul.f32 %v501, %v687
        %v2695 = vmul.f32 %v502, %v689
        %v2696 = vmul.f32 %v503, %v691
        %v2697 = vmul.f32 %v504, %v693
        %v2698 = vmul.f32 %v505, %v695
        %v2699 = vmul.f32 %v697, 0.0
        %v2700 = vmul.f32 %v696, 0.0
        %s2701 = scalar_lea.vmem %s4, 192
        %v2702 = vld [vmem:[%s2701] sm:$0xff]
        %v2703 = vld [vmem:[%s2701 + $0x8] sm:$0xff]
        %v2704 = vld [vmem:[%s2701 + $0x10] sm:$0xff]
        %v2705 = vld [vmem:[%s2701 + $0x18] sm:$0xff]
        %v2739 = vrot.slane %v2668, 7
        %v2740 = vrot.slane %v2669, 7
        %v2741 = vsel %vm1013, %v2739, %v2740
        %v2742 = vrot.slane %v2670, 7
        %v2743 = vsel %vm1013, %v2740, %v2742
        %v2744 = vrot.slane %v2671, 7
        %v2745 = vsel %vm1013, %v2742, %v2744
        %v2746 = vrot.slane %v2672, 7
        %v2747 = vsel %vm1013, %v2744, %v2746
        %v2748 = vrot.slane %v2673, 7
        %v2749 = vsel %vm1013, %v2746, %v2748
        %v2750 = vrot.slane %v2674, 7
        %v2751 = vsel %vm1013, %v2748, %v2750
        %v2752 = vrot.slane %v2675, 7
        %v2753 = vsel %vm1013, %v2750, %v2752
        %v2754 = vrot.slane %v2676, 7
        %v2755 = vsel %vm1013, %v2752, %v2754
        %v2756 = vrot.slane %v2677, 7
        %v2757 = vsel %vm1013, %v2754, %v2756
        %v2758 = vrot.slane %v2678, 7
        %v2759 = vsel %vm1013, %v2756, %v2758
        %v2760 = vrot.slane %v2679, 7
        %v2761 = vsel %vm1013, %v2758, %v2760
        %v2762 = vrot.slane %v2680, 7
        %v2763 = vsel %vm1013, %v2760, %v2762
        %v2764 = vrot.slane %v2681, 7
        %v2765 = vsel %vm1013, %v2762, %v2764
        %v2766 = vrot.slane %v2682, 7
        %v2767 = vsel %vm1013, %v2764, %v2766
        %v2768 = vrot.slane %v2683, 7
        %v2769 = vsel %vm1013, %v2766, %v2768
        %v2770 = vrot.slane %v2684, 7
        %v2771 = vsel %vm1013, %v2768, %v2770
        %v2772 = vrot.slane %v2685, 7
        %v2773 = vsel %vm1013, %v2770, %v2772
        %v2774 = vrot.slane %v2686, 7
        %v2775 = vsel %vm1013, %v2772, %v2774
        %v2776 = vrot.slane %v2687, 7
        %v2777 = vsel %vm1013, %v2774, %v2776
        %v2778 = vrot.slane %v2688, 7
        %v2779 = vsel %vm1013, %v2776, %v2778
        %v2780 = vrot.slane %v2689, 7
        %v2781 = vsel %vm1013, %v2778, %v2780
        %v2782 = vrot.slane %v2690, 7
        %v2783 = vsel %vm1013, %v2780, %v2782
        %v2784 = vrot.slane %v2691, 7
        %v2785 = vsel %vm1013, %v2782, %v2784
        %v2786 = vrot.slane %v2692, 7
        %v2787 = vsel %vm1013, %v2784, %v2786
        %v2788 = vrot.slane %v2693, 7
        %v2789 = vsel %vm1013, %v2786, %v2788
        %v2790 = vrot.slane %v2694, 7
        %v2791 = vsel %vm1013, %v2788, %v2790
        %v2792 = vrot.slane %v2695, 7
        %v2793 = vsel %vm1013, %v2790, %v2792
        %v2794 = vrot.slane %v2696, 7
        %v2795 = vsel %vm1013, %v2792, %v2794
        %v2796 = vrot.slane %v2697, 7
        %v2797 = vsel %vm1013, %v2794, %v2796
        %v2798 = vrot.slane %v2698, 7
        %v2799 = vsel %vm1013, %v2796, %v2798
        %v2800 = vrot.slane %v2699, 7
        %v2801 = vsel %vm1013, %v2798, %v2800
        %v2802 = vrot.slane %v2700, 7
        %v2803 = vsel %vm1013, %v2800, %v2802
        %v2804 = vsel %vm773, %v2741, 0
        %v2806 = vsel %vm773, %v2743, 0
        %v2808 = vsel %vm773, %v2745, 0
        %v2810 = vsel %vm773, %v2747, 0
        %v2812 = vsel %vm773, %v2749, 0
        %v2814 = vsel %vm773, %v2751, 0
        %v2816 = vsel %vm773, %v2753, 0
        %v2818 = vsel %vm773, %v2755, 0
        %v2820 = vsel %vm773, %v2757, 0
        %v2822 = vsel %vm773, %v2759, 0
        %v2824 = vsel %vm773, %v2761, 0
        %v2826 = vsel %vm773, %v2763, 0
        %v2828 = vsel %vm773, %v2765, 0
        %v2830 = vsel %vm773, %v2767, 0
        %v2832 = vsel %vm773, %v2769, 0
        %v2834 = vsel %vm773, %v2771, 0
        %v2836 = vsel %vm773, %v2773, 0
        %v2838 = vsel %vm773, %v2775, 0
        %v2840 = vsel %vm773, %v2777, 0
        %v2842 = vsel %vm773, %v2779, 0
        %v2844 = vsel %vm773, %v2781, 0
        %v2846 = vsel %vm773, %v2783, 0
        %v2848 = vsel %vm773, %v2785, 0
        %v2850 = vsel %vm773, %v2787, 0
        %v2852 = vsel %vm773, %v2789, 0
        %v2854 = vsel %vm773, %v2791, 0
        %v2856 = vsel %vm773, %v2793, 0
        %v2858 = vsel %vm773, %v2795, 0
        %v2860 = vsel %vm773, %v2797, 0
        %v2862 = vsel %vm773, %v2799, 0
        %v2864 = vsel %vm773, %v2801, 0
        %v2866 = vsel %vm773, %v2803, 0
        %2868 = vmatpush.msra.mxu0 0.0
        %2869 = vmatpush.msra.mxu0 0.0
        %2870 = vmatpush.msra.mxu0 0.0
        %2871 = vmatpush.msra.mxu0 0.0
        %2872 = vmatpush.msra.mxu0 0.0
        %2873 = vmatpush.msra.mxu0 0.0
        %2874 = vmatpush.msra.mxu0 0.0
        %2875 = vmatpush.msra.mxu0 0.0
        %2876 = vmatpush.msra.mxu0 0.0
        %2877 = vmatpush.msra.mxu0 0.0
        %2878 = vmatpush.msra.mxu0 0.0
        %2879 = vmatpush.msra.mxu0 0.0
        %2880 = vmatpush.msra.mxu0 %v2705
        %2881 = vmatpush.msra.mxu0 %v2704
        %2882 = vmatpush.msra.mxu0 %v2703
        %2883 = vmatpush.msra.mxu0 %v2702
        %2884 = vmatmul.f32.gmra.mxu0 %v2804
        %v2885 = vpop.f32.mrf.mxu0
        %v2886 = vadd.f32 0.0, %v2885
        %2887 = vmatmul.f32.gmra.mxu0 %v2806
        %v2888 = vpop.f32.mrf.mxu0
        %v2889 = vadd.f32 0.0, %v2888
        %2890 = vmatmul.f32.gmra.mxu0 %v2808
        %v2891 = vpop.f32.mrf.mxu0
        %v2892 = vadd.f32 0.0, %v2891
        %2893 = vmatmul.f32.gmra.mxu0 %v2810
        %v2894 = vpop.f32.mrf.mxu0
        %v2895 = vadd.f32 0.0, %v2894
        %2896 = vmatmul.f32.gmra.mxu0 %v2812
        %v2897 = vpop.f32.mrf.mxu0
        %v2898 = vadd.f32 0.0, %v2897
        %2899 = vmatmul.f32.gmra.mxu0 %v2814
        %v2900 = vpop.f32.mrf.mxu0
        %v2901 = vadd.f32 0.0, %v2900
        %2902 = vmatmul.f32.gmra.mxu0 %v2816
        %v2903 = vpop.f32.mrf.mxu0
        %v2904 = vadd.f32 0.0, %v2903
        %2905 = vmatmul.f32.gmra.mxu0 %v2818
        %v2906 = vpop.f32.mrf.mxu0
        %v2907 = vadd.f32 0.0, %v2906
        %2908 = vmatmul.f32.gmra.mxu0 %v2820
        %v2909 = vpop.f32.mrf.mxu0
        %v2910 = vadd.f32 0.0, %v2909
        %2911 = vmatmul.f32.gmra.mxu0 %v2822
        %v2912 = vpop.f32.mrf.mxu0
        %v2913 = vadd.f32 0.0, %v2912
        %2914 = vmatmul.f32.gmra.mxu0 %v2824
        %v2915 = vpop.f32.mrf.mxu0
        %v2916 = vadd.f32 0.0, %v2915
        %2917 = vmatmul.f32.gmra.mxu0 %v2826
        %v2918 = vpop.f32.mrf.mxu0
        %v2919 = vadd.f32 0.0, %v2918
        %2920 = vmatmul.f32.gmra.mxu0 %v2828
        %v2921 = vpop.f32.mrf.mxu0
        %v2922 = vadd.f32 0.0, %v2921
        %2923 = vmatmul.f32.gmra.mxu0 %v2830
        %v2924 = vpop.f32.mrf.mxu0
        %v2925 = vadd.f32 0.0, %v2924
        %2926 = vmatmul.f32.gmra.mxu0 %v2832
        %v2927 = vpop.f32.mrf.mxu0
        %v2928 = vadd.f32 0.0, %v2927
        %2929 = vmatmul.f32.gmra.mxu0 %v2834
        %v2930 = vpop.f32.mrf.mxu0
        %v2931 = vadd.f32 0.0, %v2930
        %2932 = vmatmul.f32.gmra.mxu0 %v2836
        %v2933 = vpop.f32.mrf.mxu0
        %v2934 = vadd.f32 0.0, %v2933
        %2935 = vmatmul.f32.gmra.mxu0 %v2838
        %v2936 = vpop.f32.mrf.mxu0
        %v2937 = vadd.f32 0.0, %v2936
        %2938 = vmatmul.f32.gmra.mxu0 %v2840
        %v2939 = vpop.f32.mrf.mxu0
        %v2940 = vadd.f32 0.0, %v2939
        %2941 = vmatmul.f32.gmra.mxu0 %v2842
        %v2942 = vpop.f32.mrf.mxu0
        %v2943 = vadd.f32 0.0, %v2942
        %2944 = vmatmul.f32.gmra.mxu0 %v2844
        %v2945 = vpop.f32.mrf.mxu0
        %v2946 = vadd.f32 0.0, %v2945
        %2947 = vmatmul.f32.gmra.mxu0 %v2846
        %v2948 = vpop.f32.mrf.mxu0
        %v2949 = vadd.f32 0.0, %v2948
        %2950 = vmatmul.f32.gmra.mxu0 %v2848
        %v2951 = vpop.f32.mrf.mxu0
        %v2952 = vadd.f32 0.0, %v2951
        %2953 = vmatmul.f32.gmra.mxu0 %v2850
        %v2954 = vpop.f32.mrf.mxu0
        %v2955 = vadd.f32 0.0, %v2954
        %2956 = vmatmul.f32.gmra.mxu0 %v2852
        %v2957 = vpop.f32.mrf.mxu0
        %v2958 = vadd.f32 0.0, %v2957
        %2959 = vmatmul.f32.gmra.mxu0 %v2854
        %v2960 = vpop.f32.mrf.mxu0
        %v2961 = vadd.f32 0.0, %v2960
        %2962 = vmatmul.f32.gmra.mxu0 %v2856
        %v2963 = vpop.f32.mrf.mxu0
        %v2964 = vadd.f32 0.0, %v2963
        %2965 = vmatmul.f32.gmra.mxu0 %v2858
        %v2966 = vpop.f32.mrf.mxu0
        %v2967 = vadd.f32 0.0, %v2966
        %2968 = vmatmul.f32.gmra.mxu0 %v2860
        %v2969 = vpop.f32.mrf.mxu0
        %v2970 = vadd.f32 0.0, %v2969
        %2971 = vmatmul.f32.gmra.mxu0 %v2862
        %v2972 = vpop.f32.mrf.mxu0
        %v2973 = vadd.f32 0.0, %v2972
        %2974 = vmatmul.f32.gmra.mxu0 %v2864
        %v2975 = vpop.f32.mrf.mxu0
        %v2976 = vadd.f32 0.0, %v2975
        %2977 = vmatmul.f32.gmra.mxu0 %v2866
        %v2978 = vpop.f32.mrf.mxu0
        %v2979 = vadd.f32 0.0, %v2978
        %2980 = vdwg.mxu0
        %v2981 = vadd.f32 %v2636, %v2886
        %v2982 = vadd.f32 %v2637, %v2889
        %v2983 = vadd.f32 %v2638, %v2892
        %v2984 = vadd.f32 %v2639, %v2895
        %v2985 = vadd.f32 %v2640, %v2898
        %v2986 = vadd.f32 %v2641, %v2901
        %v2987 = vadd.f32 %v2642, %v2904
        %v2988 = vadd.f32 %v2643, %v2907
        %v2989 = vadd.f32 %v2644, %v2910
        %v2990 = vadd.f32 %v2645, %v2913
        %v2991 = vadd.f32 %v2646, %v2916
        %v2992 = vadd.f32 %v2647, %v2919
        %v2993 = vadd.f32 %v2648, %v2922
        %v2994 = vadd.f32 %v2649, %v2925
        %v2995 = vadd.f32 %v2650, %v2928
        %v2996 = vadd.f32 %v2651, %v2931
        %v2997 = vadd.f32 %v2652, %v2934
        %v2998 = vadd.f32 %v2653, %v2937
        %v2999 = vadd.f32 %v2654, %v2940
        %v3000 = vadd.f32 %v2655, %v2943
        %v3001 = vadd.f32 %v2656, %v2946
        %v3002 = vadd.f32 %v2657, %v2949
        %v3003 = vadd.f32 %v2658, %v2952
        %v3004 = vadd.f32 %v2659, %v2955
        %v3005 = vadd.f32 %v2660, %v2958
        %v3006 = vadd.f32 %v2661, %v2961
        %v3007 = vadd.f32 %v2662, %v2964
        %v3008 = vadd.f32 %v2663, %v2967
        %v3009 = vadd.f32 %v2664, %v2970
        %v3010 = vadd.f32 %v2665, %v2973
        %v3011 = vadd.f32 %v2666, %v2976
        %v3012 = vadd.f32 %v2667, %v2979
        %s3013 = scalar_lea.vmem %s4, 224
        %v3014 = vld [vmem:[%s3013] sm:$0xff]
        %v3015 = vld [vmem:[%s3013 + $0x8] sm:$0xff]
        %v3016 = vld [vmem:[%s3013 + $0x10] sm:$0xff]
        %v3017 = vld [vmem:[%s3013 + $0x18] sm:$0xff]
        %3018 = vmatpush.msra.mxu0 0.0
        %3019 = vmatpush.msra.mxu0 0.0
        %3020 = vmatpush.msra.mxu0 0.0
        %3021 = vmatpush.msra.mxu0 0.0
        %3022 = vmatpush.msra.mxu0 0.0
        %3023 = vmatpush.msra.mxu0 0.0
        %3024 = vmatpush.msra.mxu0 0.0
        %3025 = vmatpush.msra.mxu0 0.0
        %3026 = vmatpush.msra.mxu0 0.0
        %3027 = vmatpush.msra.mxu0 0.0
        %3028 = vmatpush.msra.mxu0 0.0
        %3029 = vmatpush.msra.mxu0 0.0
        %3030 = vmatpush.msra.mxu0 %v3017
        %3031 = vmatpush.msra.mxu0 %v3016
        %3032 = vmatpush.msra.mxu0 %v3015
        %3033 = vmatpush.msra.mxu0 %v3014
        %3034 = vmatmul.f32.gmra.mxu0 %v784
        %v3035 = vpop.f32.mrf.mxu0
        %v3036 = vadd.f32 0.0, %v3035
        %3037 = vmatmul.f32.gmra.mxu0 %v787
        %v3038 = vpop.f32.mrf.mxu0
        %v3039 = vadd.f32 0.0, %v3038
        %3040 = vmatmul.f32.gmra.mxu0 %v790
        %v3041 = vpop.f32.mrf.mxu0
        %v3042 = vadd.f32 0.0, %v3041
        %3043 = vmatmul.f32.gmra.mxu0 %v793
        %v3044 = vpop.f32.mrf.mxu0
        %v3045 = vadd.f32 0.0, %v3044
        %3046 = vmatmul.f32.gmra.mxu0 %v796
        %v3047 = vpop.f32.mrf.mxu0
        %v3048 = vadd.f32 0.0, %v3047
        %3049 = vmatmul.f32.gmra.mxu0 %v799
        %v3050 = vpop.f32.mrf.mxu0
        %v3051 = vadd.f32 0.0, %v3050
        %3052 = vmatmul.f32.gmra.mxu0 %v802
        %v3053 = vpop.f32.mrf.mxu0
        %v3054 = vadd.f32 0.0, %v3053
        %3055 = vmatmul.f32.gmra.mxu0 %v805
        %v3056 = vpop.f32.mrf.mxu0
        %v3057 = vadd.f32 0.0, %v3056
        %3058 = vmatmul.f32.gmra.mxu0 %v808
        %v3059 = vpop.f32.mrf.mxu0
        %v3060 = vadd.f32 0.0, %v3059
        %3061 = vmatmul.f32.gmra.mxu0 %v811
        %v3062 = vpop.f32.mrf.mxu0
        %v3063 = vadd.f32 0.0, %v3062
        %3064 = vmatmul.f32.gmra.mxu0 %v814
        %v3065 = vpop.f32.mrf.mxu0
        %v3066 = vadd.f32 0.0, %v3065
        %3067 = vmatmul.f32.gmra.mxu0 %v817
        %v3068 = vpop.f32.mrf.mxu0
        %v3069 = vadd.f32 0.0, %v3068
        %3070 = vmatmul.f32.gmra.mxu0 %v820
        %v3071 = vpop.f32.mrf.mxu0
        %v3072 = vadd.f32 0.0, %v3071
        %3073 = vmatmul.f32.gmra.mxu0 %v823
        %v3074 = vpop.f32.mrf.mxu0
        %v3075 = vadd.f32 0.0, %v3074
        %3076 = vmatmul.f32.gmra.mxu0 %v826
        %v3077 = vpop.f32.mrf.mxu0
        %v3078 = vadd.f32 0.0, %v3077
        %3079 = vmatmul.f32.gmra.mxu0 %v829
        %v3080 = vpop.f32.mrf.mxu0
        %v3081 = vadd.f32 0.0, %v3080
        %3082 = vmatmul.f32.gmra.mxu0 %v832
        %v3083 = vpop.f32.mrf.mxu0
        %v3084 = vadd.f32 0.0, %v3083
        %3085 = vmatmul.f32.gmra.mxu0 %v835
        %v3086 = vpop.f32.mrf.mxu0
        %v3087 = vadd.f32 0.0, %v3086
        %3088 = vmatmul.f32.gmra.mxu0 %v838
        %v3089 = vpop.f32.mrf.mxu0
        %v3090 = vadd.f32 0.0, %v3089
        %3091 = vmatmul.f32.gmra.mxu0 %v841
        %v3092 = vpop.f32.mrf.mxu0
        %v3093 = vadd.f32 0.0, %v3092
        %3094 = vmatmul.f32.gmra.mxu0 %v844
        %v3095 = vpop.f32.mrf.mxu0
        %v3096 = vadd.f32 0.0, %v3095
        %3097 = vmatmul.f32.gmra.mxu0 %v847
        %v3098 = vpop.f32.mrf.mxu0
        %v3099 = vadd.f32 0.0, %v3098
        %3100 = vmatmul.f32.gmra.mxu0 %v850
        %v3101 = vpop.f32.mrf.mxu0
        %v3102 = vadd.f32 0.0, %v3101
        %3103 = vmatmul.f32.gmra.mxu0 %v853
        %v3104 = vpop.f32.mrf.mxu0
        %v3105 = vadd.f32 0.0, %v3104
        %3106 = vmatmul.f32.gmra.mxu0 %v856
        %v3107 = vpop.f32.mrf.mxu0
        %v3108 = vadd.f32 0.0, %v3107
        %3109 = vmatmul.f32.gmra.mxu0 %v859
        %v3110 = vpop.f32.mrf.mxu0
        %v3111 = vadd.f32 0.0, %v3110
        %3112 = vmatmul.f32.gmra.mxu0 %v862
        %v3113 = vpop.f32.mrf.mxu0
        %v3114 = vadd.f32 0.0, %v3113
        %3115 = vmatmul.f32.gmra.mxu0 %v865
        %v3116 = vpop.f32.mrf.mxu0
        %v3117 = vadd.f32 0.0, %v3116
        %3118 = vmatmul.f32.gmra.mxu0 %v2173
        %v3119 = vpop.f32.mrf.mxu0
        %v3120 = vadd.f32 0.0, %v3119
        %3121 = vmatmul.f32.gmra.mxu0 %v2176
        %v3122 = vpop.f32.mrf.mxu0
        %v3123 = vadd.f32 0.0, %v3122
        %3124 = vmatmul.f32.gmra.mxu0 %v775
        %v3125 = vpop.f32.mrf.mxu0
        %v3126 = vadd.f32 0.0, %v3125
        %3127 = vmatmul.f32.gmra.mxu0 %v775
        %v3128 = vpop.f32.mrf.mxu0
        %v3129 = vadd.f32 0.0, %v3128
        %3130 = vdwg.mxu0
        %v3131 = vadd.f32 %v2981, %v3036
        %v3132 = vadd.f32 %v2982, %v3039
        %v3133 = vadd.f32 %v2983, %v3042
        %v3134 = vadd.f32 %v2984, %v3045
        %v3135 = vadd.f32 %v2985, %v3048
        %v3136 = vadd.f32 %v2986, %v3051
        %v3137 = vadd.f32 %v2987, %v3054
        %v3138 = vadd.f32 %v2988, %v3057
        %v3139 = vadd.f32 %v2989, %v3060
        %v3140 = vadd.f32 %v2990, %v3063
        %v3141 = vadd.f32 %v2991, %v3066
        %v3142 = vadd.f32 %v2992, %v3069
        %v3143 = vadd.f32 %v2993, %v3072
        %v3144 = vadd.f32 %v2994, %v3075
        %v3145 = vadd.f32 %v2995, %v3078
        %v3146 = vadd.f32 %v2996, %v3081
        %v3147 = vadd.f32 %v2997, %v3084
        %v3148 = vadd.f32 %v2998, %v3087
        %v3149 = vadd.f32 %v2999, %v3090
        %v3150 = vadd.f32 %v3000, %v3093
        %v3151 = vadd.f32 %v3001, %v3096
        %v3152 = vadd.f32 %v3002, %v3099
        %v3153 = vadd.f32 %v3003, %v3102
        %v3154 = vadd.f32 %v3004, %v3105
        %v3155 = vadd.f32 %v3005, %v3108
        %v3156 = vadd.f32 %v3006, %v3111
        %v3157 = vadd.f32 %v3007, %v3114
        %v3158 = vadd.f32 %v3008, %v3117
        %v3159 = vadd.f32 %v3009, %v3120
        %v3160 = vadd.f32 %v3010, %v3123
        %v3161 = vadd.f32 %v3011, %v3126
        %v3162 = vadd.f32 %v3012, %v3129
        %v3163 = vmul.f32 %v476, %v1384
        %v3164 = vmul.f32 %v477, %v1386
        %v3165 = vmul.f32 %v478, %v1388
        %v3166 = vmul.f32 %v479, %v1390
        %v3167 = vmul.f32 %v480, %v1392
        %v3168 = vmul.f32 %v481, %v1394
        %v3169 = vmul.f32 %v482, %v1396
        %v3170 = vmul.f32 %v483, %v1398
        %v3171 = vmul.f32 %v484, %v1400
        %v3172 = vmul.f32 %v485, %v1402
        %v3173 = vmul.f32 %v486, %v1404
        %v3174 = vmul.f32 %v487, %v1406
        %v3175 = vmul.f32 %v488, %v1408
        %v3176 = vmul.f32 %v489, %v1410
        %v3177 = vmul.f32 %v490, %v1412
        %v3178 = vmul.f32 %v491, %v1414
        %v3179 = vmul.f32 %v492, %v1416
        %v3180 = vmul.f32 %v493, %v1418
        %v3181 = vmul.f32 %v494, %v1420
        %v3182 = vmul.f32 %v495, %v1422
        %v3183 = vmul.f32 %v496, %v1424
        %v3184 = vmul.f32 %v497, %v1426
        %v3185 = vmul.f32 %v498, %v1428
        %v3186 = vmul.f32 %v499, %v1430
        %v3187 = vmul.f32 %v500, %v1432
        %v3188 = vmul.f32 %v501, %v1434
        %v3189 = vmul.f32 %v502, %v1436
        %v3190 = vmul.f32 %v503, %v1438
        %v3191 = vmul.f32 %v504, %v1440
        %v3192 = vmul.f32 %v505, %v1442
        %v3193 = vmul.f32 %v1444, 0.0
        %v3194 = vmul.f32 %v1446, 0.0
        %s3195 = scalar_lea.vmem %s4, 256
        %v3196 = vld [vmem:[%s3195] sm:$0xff]
        %v3197 = vld [vmem:[%s3195 + $0x8] sm:$0xff]
        %v3198 = vld [vmem:[%s3195 + $0x10] sm:$0xff]
        %v3199 = vld [vmem:[%s3195 + $0x18] sm:$0xff]
        %v3232 = vrot.slane %v3163, 1
        %v3233 = vrot.slane %v3164, 1
        %v3234 = vsel %vm634, %v3232, %v3233
        %v3235 = vrot.slane %v3165, 1
        %v3236 = vsel %vm634, %v3233, %v3235
        %v3237 = vrot.slane %v3166, 1
        %v3238 = vsel %vm634, %v3235, %v3237
        %v3239 = vrot.slane %v3167, 1
        %v3240 = vsel %vm634, %v3237, %v3239
        %v3241 = vrot.slane %v3168, 1
        %v3242 = vsel %vm634, %v3239, %v3241
        %v3243 = vrot.slane %v3169, 1
        %v3244 = vsel %vm634, %v3241, %v3243
        %v3245 = vrot.slane %v3170, 1
        %v3246 = vsel %vm634, %v3243, %v3245
        %v3247 = vrot.slane %v3171, 1
        %v3248 = vsel %vm634, %v3245, %v3247
        %v3249 = vrot.slane %v3172, 1
        %v3250 = vsel %vm634, %v3247, %v3249
        %v3251 = vrot.slane %v3173, 1
        %v3252 = vsel %vm634, %v3249, %v3251
        %v3253 = vrot.slane %v3174, 1
        %v3254 = vsel %vm634, %v3251, %v3253
        %v3255 = vrot.slane %v3175, 1
        %v3256 = vsel %vm634, %v3253, %v3255
        %v3257 = vrot.slane %v3176, 1
        %v3258 = vsel %vm634, %v3255, %v3257
        %v3259 = vrot.slane %v3177, 1
        %v3260 = vsel %vm634, %v3257, %v3259
        %v3261 = vrot.slane %v3178, 1
        %v3262 = vsel %vm634, %v3259, %v3261
        %v3263 = vrot.slane %v3179, 1
        %v3264 = vsel %vm634, %v3261, %v3263
        %v3265 = vrot.slane %v3180, 1
        %v3266 = vsel %vm634, %v3263, %v3265
        %v3267 = vrot.slane %v3181, 1
        %v3268 = vsel %vm634, %v3265, %v3267
        %v3269 = vrot.slane %v3182, 1
        %v3270 = vsel %vm634, %v3267, %v3269
        %v3271 = vrot.slane %v3183, 1
        %v3272 = vsel %vm634, %v3269, %v3271
        %v3273 = vrot.slane %v3184, 1
        %v3274 = vsel %vm634, %v3271, %v3273
        %v3275 = vrot.slane %v3185, 1
        %v3276 = vsel %vm634, %v3273, %v3275
        %v3277 = vrot.slane %v3186, 1
        %v3278 = vsel %vm634, %v3275, %v3277
        %v3279 = vrot.slane %v3187, 1
        %v3280 = vsel %vm634, %v3277, %v3279
        %v3281 = vrot.slane %v3188, 1
        %v3282 = vsel %vm634, %v3279, %v3281
        %v3283 = vrot.slane %v3189, 1
        %v3284 = vsel %vm634, %v3281, %v3283
        %v3285 = vrot.slane %v3190, 1
        %v3286 = vsel %vm634, %v3283, %v3285
        %v3287 = vrot.slane %v3191, 1
        %v3288 = vsel %vm634, %v3285, %v3287
        %v3289 = vrot.slane %v3192, 1
        %v3290 = vsel %vm634, %v3287, %v3289
        %v3291 = vrot.slane %v3193, 1
        %v3292 = vsel %vm634, %v3289, %v3291
        %v3293 = vrot.slane %v3194, 1
        %v3294 = vsel %vm634, %v3291, %v3293
        %v3295 = vsel %vm634, %v3293, %v2457
        %v3296 = vsel %vm773, %v3234, 0
        %v3298 = vsel %vm773, %v3236, 0
        %v3300 = vsel %vm773, %v3238, 0
        %v3302 = vsel %vm773, %v3240, 0
        %v3304 = vsel %vm773, %v3242, 0
        %v3306 = vsel %vm773, %v3244, 0
        %v3308 = vsel %vm773, %v3246, 0
        %v3310 = vsel %vm773, %v3248, 0
        %v3312 = vsel %vm773, %v3250, 0
        %v3314 = vsel %vm773, %v3252, 0
        %v3316 = vsel %vm773, %v3254, 0
        %v3318 = vsel %vm773, %v3256, 0
        %v3320 = vsel %vm773, %v3258, 0
        %v3322 = vsel %vm773, %v3260, 0
        %v3324 = vsel %vm773, %v3262, 0
        %v3326 = vsel %vm773, %v3264, 0
        %v3328 = vsel %vm773, %v3266, 0
        %v3330 = vsel %vm773, %v3268, 0
        %v3332 = vsel %vm773, %v3270, 0
        %v3334 = vsel %vm773, %v3272, 0
        %v3336 = vsel %vm773, %v3274, 0
        %v3338 = vsel %vm773, %v3276, 0
        %v3340 = vsel %vm773, %v3278, 0
        %v3342 = vsel %vm773, %v3280, 0
        %v3344 = vsel %vm773, %v3282, 0
        %v3346 = vsel %vm773, %v3284, 0
        %v3348 = vsel %vm773, %v3286, 0
        %v3350 = vsel %vm773, %v3288, 0
        %v3352 = vsel %vm773, %v3290, 0
        %v3354 = vsel %vm773, %v3292, 0
        %v3356 = vsel %vm773, %v3294, 0
        %v3358 = vsel %vm773, %v3295, 0
        %3360 = vmatpush.msra.mxu0 0.0
        %3361 = vmatpush.msra.mxu0 0.0
        %3362 = vmatpush.msra.mxu0 0.0
        %3363 = vmatpush.msra.mxu0 0.0
        %3364 = vmatpush.msra.mxu0 0.0
        %3365 = vmatpush.msra.mxu0 0.0
        %3366 = vmatpush.msra.mxu0 0.0
        %3367 = vmatpush.msra.mxu0 0.0
        %3368 = vmatpush.msra.mxu0 0.0
        %3369 = vmatpush.msra.mxu0 0.0
        %3370 = vmatpush.msra.mxu0 0.0
        %3371 = vmatpush.msra.mxu0 0.0
        %3372 = vmatpush.msra.mxu0 %v3199
        %3373 = vmatpush.msra.mxu0 %v3198
        %3374 = vmatpush.msra.mxu0 %v3197
        %3375 = vmatpush.msra.mxu0 %v3196
        %3376 = vmatmul.f32.gmra.mxu0 %v3296
        %v3377 = vpop.f32.mrf.mxu0
        %v3378 = vadd.f32 0.0, %v3377
        %3379 = vmatmul.f32.gmra.mxu0 %v3298
        %v3380 = vpop.f32.mrf.mxu0
        %v3381 = vadd.f32 0.0, %v3380
        %3382 = vmatmul.f32.gmra.mxu0 %v3300
        %v3383 = vpop.f32.mrf.mxu0
        %v3384 = vadd.f32 0.0, %v3383
        %3385 = vmatmul.f32.gmra.mxu0 %v3302
        %v3386 = vpop.f32.mrf.mxu0
        %v3387 = vadd.f32 0.0, %v3386
        %3388 = vmatmul.f32.gmra.mxu0 %v3304
        %v3389 = vpop.f32.mrf.mxu0
        %v3390 = vadd.f32 0.0, %v3389
        %3391 = vmatmul.f32.gmra.mxu0 %v3306
        %v3392 = vpop.f32.mrf.mxu0
        %v3393 = vadd.f32 0.0, %v3392
        %3394 = vmatmul.f32.gmra.mxu0 %v3308
        %v3395 = vpop.f32.mrf.mxu0
        %v3396 = vadd.f32 0.0, %v3395
        %3397 = vmatmul.f32.gmra.mxu0 %v3310
        %v3398 = vpop.f32.mrf.mxu0
        %v3399 = vadd.f32 0.0, %v3398
        %3400 = vmatmul.f32.gmra.mxu0 %v3312
        %v3401 = vpop.f32.mrf.mxu0
        %v3402 = vadd.f32 0.0, %v3401
        %3403 = vmatmul.f32.gmra.mxu0 %v3314
        %v3404 = vpop.f32.mrf.mxu0
        %v3405 = vadd.f32 0.0, %v3404
        %3406 = vmatmul.f32.gmra.mxu0 %v3316
        %v3407 = vpop.f32.mrf.mxu0
        %v3408 = vadd.f32 0.0, %v3407
        %3409 = vmatmul.f32.gmra.mxu0 %v3318
        %v3410 = vpop.f32.mrf.mxu0
        %v3411 = vadd.f32 0.0, %v3410
        %3412 = vmatmul.f32.gmra.mxu0 %v3320
        %v3413 = vpop.f32.mrf.mxu0
        %v3414 = vadd.f32 0.0, %v3413
        %3415 = vmatmul.f32.gmra.mxu0 %v3322
        %v3416 = vpop.f32.mrf.mxu0
        %v3417 = vadd.f32 0.0, %v3416
        %3418 = vmatmul.f32.gmra.mxu0 %v3324
        %v3419 = vpop.f32.mrf.mxu0
        %v3420 = vadd.f32 0.0, %v3419
        %3421 = vmatmul.f32.gmra.mxu0 %v3326
        %v3422 = vpop.f32.mrf.mxu0
        %v3423 = vadd.f32 0.0, %v3422
        %3424 = vmatmul.f32.gmra.mxu0 %v3328
        %v3425 = vpop.f32.mrf.mxu0
        %v3426 = vadd.f32 0.0, %v3425
        %3427 = vmatmul.f32.gmra.mxu0 %v3330
        %v3428 = vpop.f32.mrf.mxu0
        %v3429 = vadd.f32 0.0, %v3428
        %3430 = vmatmul.f32.gmra.mxu0 %v3332
        %v3431 = vpop.f32.mrf.mxu0
        %v3432 = vadd.f32 0.0, %v3431
        %3433 = vmatmul.f32.gmra.mxu0 %v3334
        %v3434 = vpop.f32.mrf.mxu0
        %v3435 = vadd.f32 0.0, %v3434
        %3436 = vmatmul.f32.gmra.mxu0 %v3336
        %v3437 = vpop.f32.mrf.mxu0
        %v3438 = vadd.f32 0.0, %v3437
        %3439 = vmatmul.f32.gmra.mxu0 %v3338
        %v3440 = vpop.f32.mrf.mxu0
        %v3441 = vadd.f32 0.0, %v3440
        %3442 = vmatmul.f32.gmra.mxu0 %v3340
        %v3443 = vpop.f32.mrf.mxu0
        %v3444 = vadd.f32 0.0, %v3443
        %3445 = vmatmul.f32.gmra.mxu0 %v3342
        %v3446 = vpop.f32.mrf.mxu0
        %v3447 = vadd.f32 0.0, %v3446
        %3448 = vmatmul.f32.gmra.mxu0 %v3344
        %v3449 = vpop.f32.mrf.mxu0
        %v3450 = vadd.f32 0.0, %v3449
        %3451 = vmatmul.f32.gmra.mxu0 %v3346
        %v3452 = vpop.f32.mrf.mxu0
        %v3453 = vadd.f32 0.0, %v3452
        %3454 = vmatmul.f32.gmra.mxu0 %v3348
        %v3455 = vpop.f32.mrf.mxu0
        %v3456 = vadd.f32 0.0, %v3455
        %3457 = vmatmul.f32.gmra.mxu0 %v3350
        %v3458 = vpop.f32.mrf.mxu0
        %v3459 = vadd.f32 0.0, %v3458
        %3460 = vmatmul.f32.gmra.mxu0 %v3352
        %v3461 = vpop.f32.mrf.mxu0
        %v3462 = vadd.f32 0.0, %v3461
        %3463 = vmatmul.f32.gmra.mxu0 %v3354
        %v3464 = vpop.f32.mrf.mxu0
        %v3465 = vadd.f32 0.0, %v3464
        %3466 = vmatmul.f32.gmra.mxu0 %v3356
        %v3467 = vpop.f32.mrf.mxu0
        %v3468 = vadd.f32 0.0, %v3467
        %3469 = vmatmul.f32.gmra.mxu0 %v3358
        %v3470 = vpop.f32.mrf.mxu0
        %v3471 = vadd.f32 0.0, %v3470
        %3472 = vdwg.mxu0
        %v3473 = vadd.f32 %v3131, %v3378
        %v3474 = vadd.f32 %v3132, %v3381
        %v3475 = vadd.f32 %v3133, %v3384
        %v3476 = vadd.f32 %v3134, %v3387
        %v3477 = vadd.f32 %v3135, %v3390
        %v3478 = vadd.f32 %v3136, %v3393
        %v3479 = vadd.f32 %v3137, %v3396
        %v3480 = vadd.f32 %v3138, %v3399
        %v3481 = vadd.f32 %v3139, %v3402
        %v3482 = vadd.f32 %v3140, %v3405
        %v3483 = vadd.f32 %v3141, %v3408
        %v3484 = vadd.f32 %v3142, %v3411
        %v3485 = vadd.f32 %v3143, %v3414
        %v3486 = vadd.f32 %v3144, %v3417
        %v3487 = vadd.f32 %v3145, %v3420
        %v3488 = vadd.f32 %v3146, %v3423
        %v3489 = vadd.f32 %v3147, %v3426
        %v3490 = vadd.f32 %v3148, %v3429
        %v3491 = vadd.f32 %v3149, %v3432
        %v3492 = vadd.f32 %v3150, %v3435
        %v3493 = vadd.f32 %v3151, %v3438
        %v3494 = vadd.f32 %v3152, %v3441
        %v3495 = vadd.f32 %v3153, %v3444
        %v3496 = vadd.f32 %v3154, %v3447
        %v3497 = vadd.f32 %v3155, %v3450
        %v3498 = vadd.f32 %v3156, %v3453
        %v3499 = vadd.f32 %v3157, %v3456
        %v3500 = vadd.f32 %v3158, %v3459
        %v3501 = vadd.f32 %v3159, %v3462
        %v3502 = vadd.f32 %v3160, %v3465
        %v3503 = vadd.f32 %v3161, %v3468
        %v3504 = vadd.f32 %v3162, %v3471
        %v3505 = vld [vmem:[%s407] sm:$0xff]
        %v3506 = vld [vmem:[%s407 + $0x8] sm:$0xff]
        %v3507 = vld [vmem:[%s407 + $0x10] sm:$0xff]
        %v3508 = vld [vmem:[%s407 + $0x18] sm:$0xff]
        %v3509 = vld [vmem:[%s407 + $0x20] sm:$0xff]
        %v3510 = vld [vmem:[%s407 + $0x28] sm:$0xff]
        %v3511 = vld [vmem:[%s407 + $0x30] sm:$0xff]
        %v3512 = vld [vmem:[%s407 + $0x38] sm:$0xff]
        %v3513 = vld [vmem:[%s407 + $0x40] sm:$0xff]
        %v3514 = vld [vmem:[%s407 + $0x48] sm:$0xff]
        %v3515 = vld [vmem:[%s407 + $0x50] sm:$0xff]
        %v3516 = vld [vmem:[%s407 + $0x58] sm:$0xff]
        %v3517 = vld [vmem:[%s407 + $0x60] sm:$0xff]
        %v3518 = vld [vmem:[%s407 + $0x68] sm:$0xff]
        %v3519 = vld [vmem:[%s407 + $0x70] sm:$0xff]
        %v3520 = vld [vmem:[%s407 + $0x78] sm:$0xff]
        %v3521 = vld [vmem:[%s407 + $0x80] sm:$0xff]
        %v3522 = vld [vmem:[%s407 + $0x88] sm:$0xff]
        %v3523 = vld [vmem:[%s407 + $0x90] sm:$0xff]
        %v3524 = vld [vmem:[%s407 + $0x98] sm:$0xff]
        %v3525 = vld [vmem:[%s407 + $0xa0] sm:$0xff]
        %v3526 = vld [vmem:[%s407 + $0xa8] sm:$0xff]
        %v3527 = vld [vmem:[%s407 + $0xb0] sm:$0xff]
        %v3528 = vld [vmem:[%s407 + $0xb8] sm:$0xff]
        %v3529 = vld [vmem:[%s407 + $0xc0] sm:$0xff]
        %v3530 = vld [vmem:[%s407 + $0xc8] sm:$0xff]
        %v3531 = vld [vmem:[%s407 + $0xd0] sm:$0xff]
        %v3532 = vld [vmem:[%s407 + $0xd8] sm:$0xff]
        %v3533 = vld [vmem:[%s407 + $0xe0] sm:$0xff]
        %v3534 = vld [vmem:[%s407 + $0xe8] sm:$0xff]
        %v3535 = vld [vmem:[%s407 + $0xf0] sm:$0xff]
        %v3536 = vld [vmem:[%s407 + $0xf8] sm:$0xff]
        %v3537 = vmul.f32 %v3505, %v641
        %v3538 = vmul.f32 %v3506, %v643
        %v3539 = vmul.f32 %v3507, %v645
        %v3540 = vmul.f32 %v3508, %v647
        %v3541 = vmul.f32 %v3509, %v649
        %v3542 = vmul.f32 %v3510, %v651
        %v3543 = vmul.f32 %v3511, %v653
        %v3544 = vmul.f32 %v3512, %v655
        %v3545 = vmul.f32 %v3513, %v657
        %v3546 = vmul.f32 %v3514, %v659
        %v3547 = vmul.f32 %v3515, %v661
        %v3548 = vmul.f32 %v3516, %v663
        %v3549 = vmul.f32 %v3517, %v665
        %v3550 = vmul.f32 %v3518, %v667
        %v3551 = vmul.f32 %v3519, %v669
        %v3552 = vmul.f32 %v3520, %v671
        %v3553 = vmul.f32 %v3521, %v673
        %v3554 = vmul.f32 %v3522, %v675
        %v3555 = vmul.f32 %v3523, %v677
        %v3556 = vmul.f32 %v3524, %v679
        %v3557 = vmul.f32 %v3525, %v681
        %v3558 = vmul.f32 %v3526, %v683
        %v3559 = vmul.f32 %v3527, %v685
        %v3560 = vmul.f32 %v3528, %v687
        %v3561 = vmul.f32 %v3529, %v689
        %v3562 = vmul.f32 %v3530, %v691
        %v3563 = vmul.f32 %v3531, %v693
        %v3564 = vmul.f32 %v3532, %v695
        %v3565 = vmul.f32 %v3533, %v697
        %v3566 = vmul.f32 %v3534, %v696
        %v3567 = vld [vmem:[%s5] sm:$0xff]
        %v3568 = vld [vmem:[%s5 + $0x8] sm:$0xff]
        %v3599 = vrot.slane %v3537, 7
        %v3600 = vsel %vm1013, %v1017, %v3599
        %v3601 = vrot.slane %v3538, 7
        %v3602 = vsel %vm1013, %v3599, %v3601
        %v3603 = vrot.slane %v3539, 7
        %v3604 = vsel %vm1013, %v3601, %v3603
        %v3605 = vrot.slane %v3540, 7
        %v3606 = vsel %vm1013, %v3603, %v3605
        %v3607 = vrot.slane %v3541, 7
        %v3608 = vsel %vm1013, %v3605, %v3607
        %v3609 = vrot.slane %v3542, 7
        %v3610 = vsel %vm1013, %v3607, %v3609
        %v3611 = vrot.slane %v3543, 7
        %v3612 = vsel %vm1013, %v3609, %v3611
        %v3613 = vrot.slane %v3544, 7
        %v3614 = vsel %vm1013, %v3611, %v3613
        %v3615 = vrot.slane %v3545, 7
        %v3616 = vsel %vm1013, %v3613, %v3615
        %v3617 = vrot.slane %v3546, 7
        %v3618 = vsel %vm1013, %v3615, %v3617
        %v3619 = vrot.slane %v3547, 7
        %v3620 = vsel %vm1013, %v3617, %v3619
        %v3621 = vrot.slane %v3548, 7
        %v3622 = vsel %vm1013, %v3619, %v3621
        %v3623 = vrot.slane %v3549, 7
        %v3624 = vsel %vm1013, %v3621, %v3623
        %v3625 = vrot.slane %v3550, 7
        %v3626 = vsel %vm1013, %v3623, %v3625
        %v3627 = vrot.slane %v3551, 7
        %v3628 = vsel %vm1013, %v3625, %v3627
        %v3629 = vrot.slane %v3552, 7
        %v3630 = vsel %vm1013, %v3627, %v3629
        %v3631 = vrot.slane %v3553, 7
        %v3632 = vsel %vm1013, %v3629, %v3631
        %v3633 = vrot.slane %v3554, 7
        %v3634 = vsel %vm1013, %v3631, %v3633
        %v3635 = vrot.slane %v3555, 7
        %v3636 = vsel %vm1013, %v3633, %v3635
        %v3637 = vrot.slane %v3556, 7
        %v3638 = vsel %vm1013, %v3635, %v3637
        %v3639 = vrot.slane %v3557, 7
        %v3640 = vsel %vm1013, %v3637, %v3639
        %v3641 = vrot.slane %v3558, 7
        %v3642 = vsel %vm1013, %v3639, %v3641
        %v3643 = vrot.slane %v3559, 7
        %v3644 = vsel %vm1013, %v3641, %v3643
        %v3645 = vrot.slane %v3560, 7
        %v3646 = vsel %vm1013, %v3643, %v3645
        %v3647 = vrot.slane %v3561, 7
        %v3648 = vsel %vm1013, %v3645, %v3647
        %v3649 = vrot.slane %v3562, 7
        %v3650 = vsel %vm1013, %v3647, %v3649
        %v3651 = vrot.slane %v3563, 7
        %v3652 = vsel %vm1013, %v3649, %v3651
        %v3653 = vrot.slane %v3564, 7
        %v3654 = vsel %vm1013, %v3651, %v3653
        %v3655 = vrot.slane %v3565, 7
        %v3656 = vsel %vm1013, %v3653, %v3655
        %v3657 = vrot.slane %v3566, 7
        %v3658 = vsel %vm1013, %v3655, %v3657
        %vm3659 = vcmask 130048
        %v3660 = vsel %vm3659, %v1016, 0
        %v3662 = vsel %vm3659, %v1018, 0
        %v3664 = vsel %vm3659, %v3600, 0
        %v3666 = vsel %vm3659, %v3602, 0
        %v3668 = vsel %vm3659, %v3604, 0
        %v3670 = vsel %vm3659, %v3606, 0
        %v3672 = vsel %vm3659, %v3608, 0
        %v3674 = vsel %vm3659, %v3610, 0
        %v3676 = vsel %vm3659, %v3612, 0
        %v3678 = vsel %vm3659, %v3614, 0
        %v3680 = vsel %vm3659, %v3616, 0
        %v3682 = vsel %vm3659, %v3618, 0
        %v3684 = vsel %vm3659, %v3620, 0
        %v3686 = vsel %vm3659, %v3622, 0
        %v3688 = vsel %vm3659, %v3624, 0
        %v3690 = vsel %vm3659, %v3626, 0
        %v3692 = vsel %vm3659, %v3628, 0
        %v3694 = vsel %vm3659, %v3630, 0
        %v3696 = vsel %vm3659, %v3632, 0
        %v3698 = vsel %vm3659, %v3634, 0
        %v3700 = vsel %vm3659, %v3636, 0
        %v3702 = vsel %vm3659, %v3638, 0
        %v3704 = vsel %vm3659, %v3640, 0
        %v3706 = vsel %vm3659, %v3642, 0
        %v3708 = vsel %vm3659, %v3644, 0
        %v3710 = vsel %vm3659, %v3646, 0
        %v3712 = vsel %vm3659, %v3648, 0
        %v3714 = vsel %vm3659, %v3650, 0
        %v3716 = vsel %vm3659, %v3652, 0
        %v3718 = vsel %vm3659, %v3654, 0
        %v3720 = vsel %vm3659, %v3656, 0
        %v3722 = vsel %vm3659, %v3658, 0
        %3724 = vmatpush.msra.mxu0 0.0
        %3725 = vmatpush.msra.mxu0 0.0
        %3726 = vmatpush.msra.mxu0 0.0
        %3727 = vmatpush.msra.mxu0 0.0
        %3728 = vmatpush.msra.mxu0 0.0
        %3729 = vmatpush.msra.mxu0 0.0
        %3730 = vmatpush.msra.mxu0 0.0
        %3731 = vmatpush.msra.mxu0 0.0
        %3732 = vmatpush.msra.mxu0 0.0
        %3733 = vmatpush.msra.mxu0 0.0
        %3734 = vmatpush.msra.mxu0 0.0
        %3735 = vmatpush.msra.mxu0 0.0
        %3736 = vmatpush.msra.mxu0 0.0
        %3737 = vmatpush.msra.mxu0 0.0
        %3738 = vmatpush.msra.mxu0 %v3568
        %3739 = vmatpush.msra.mxu0 %v3567
        %3740 = vmatmul.f32.gmra.mxu0 %v3660
        %v3741 = vpop.f32.mrf.mxu0
        %v3742 = vadd.f32 0.0, %v3741
        %3743 = vmatmul.f32.gmra.mxu0 %v3662
        %v3744 = vpop.f32.mrf.mxu0
        %v3745 = vadd.f32 0.0, %v3744
        %3746 = vmatmul.f32.gmra.mxu0 %v3664
        %v3747 = vpop.f32.mrf.mxu0
        %v3748 = vadd.f32 0.0, %v3747
        %3749 = vmatmul.f32.gmra.mxu0 %v3666
        %v3750 = vpop.f32.mrf.mxu0
        %v3751 = vadd.f32 0.0, %v3750
        %3752 = vmatmul.f32.gmra.mxu0 %v3668
        %v3753 = vpop.f32.mrf.mxu0
        %v3754 = vadd.f32 0.0, %v3753
        %3755 = vmatmul.f32.gmra.mxu0 %v3670
        %v3756 = vpop.f32.mrf.mxu0
        %v3757 = vadd.f32 0.0, %v3756
        %3758 = vmatmul.f32.gmra.mxu0 %v3672
        %v3759 = vpop.f32.mrf.mxu0
        %v3760 = vadd.f32 0.0, %v3759
        %3761 = vmatmul.f32.gmra.mxu0 %v3674
        %v3762 = vpop.f32.mrf.mxu0
        %v3763 = vadd.f32 0.0, %v3762
        %3764 = vmatmul.f32.gmra.mxu0 %v3676
        %v3765 = vpop.f32.mrf.mxu0
        %v3766 = vadd.f32 0.0, %v3765
        %3767 = vmatmul.f32.gmra.mxu0 %v3678
        %v3768 = vpop.f32.mrf.mxu0
        %v3769 = vadd.f32 0.0, %v3768
        %3770 = vmatmul.f32.gmra.mxu0 %v3680
        %v3771 = vpop.f32.mrf.mxu0
        %v3772 = vadd.f32 0.0, %v3771
        %3773 = vmatmul.f32.gmra.mxu0 %v3682
        %v3774 = vpop.f32.mrf.mxu0
        %v3775 = vadd.f32 0.0, %v3774
        %3776 = vmatmul.f32.gmra.mxu0 %v3684
        %v3777 = vpop.f32.mrf.mxu0
        %v3778 = vadd.f32 0.0, %v3777
        %3779 = vmatmul.f32.gmra.mxu0 %v3686
        %v3780 = vpop.f32.mrf.mxu0
        %v3781 = vadd.f32 0.0, %v3780
        %3782 = vmatmul.f32.gmra.mxu0 %v3688
        %v3783 = vpop.f32.mrf.mxu0
        %v3784 = vadd.f32 0.0, %v3783
        %3785 = vmatmul.f32.gmra.mxu0 %v3690
        %v3786 = vpop.f32.mrf.mxu0
        %v3787 = vadd.f32 0.0, %v3786
        %3788 = vmatmul.f32.gmra.mxu0 %v3692
        %v3789 = vpop.f32.mrf.mxu0
        %v3790 = vadd.f32 0.0, %v3789
        %3791 = vmatmul.f32.gmra.mxu0 %v3694
        %v3792 = vpop.f32.mrf.mxu0
        %v3793 = vadd.f32 0.0, %v3792
        %3794 = vmatmul.f32.gmra.mxu0 %v3696
        %v3795 = vpop.f32.mrf.mxu0
        %v3796 = vadd.f32 0.0, %v3795
        %3797 = vmatmul.f32.gmra.mxu0 %v3698
        %v3798 = vpop.f32.mrf.mxu0
        %v3799 = vadd.f32 0.0, %v3798
        %3800 = vmatmul.f32.gmra.mxu0 %v3700
        %v3801 = vpop.f32.mrf.mxu0
        %v3802 = vadd.f32 0.0, %v3801
        %3803 = vmatmul.f32.gmra.mxu0 %v3702
        %v3804 = vpop.f32.mrf.mxu0
        %v3805 = vadd.f32 0.0, %v3804
        %3806 = vmatmul.f32.gmra.mxu0 %v3704
        %v3807 = vpop.f32.mrf.mxu0
        %v3808 = vadd.f32 0.0, %v3807
        %3809 = vmatmul.f32.gmra.mxu0 %v3706
        %v3810 = vpop.f32.mrf.mxu0
        %v3811 = vadd.f32 0.0, %v3810
        %3812 = vmatmul.f32.gmra.mxu0 %v3708
        %v3813 = vpop.f32.mrf.mxu0
        %v3814 = vadd.f32 0.0, %v3813
        %3815 = vmatmul.f32.gmra.mxu0 %v3710
        %v3816 = vpop.f32.mrf.mxu0
        %v3817 = vadd.f32 0.0, %v3816
        %3818 = vmatmul.f32.gmra.mxu0 %v3712
        %v3819 = vpop.f32.mrf.mxu0
        %v3820 = vadd.f32 0.0, %v3819
        %3821 = vmatmul.f32.gmra.mxu0 %v3714
        %v3822 = vpop.f32.mrf.mxu0
        %v3823 = vadd.f32 0.0, %v3822
        %3824 = vmatmul.f32.gmra.mxu0 %v3716
        %v3825 = vpop.f32.mrf.mxu0
        %v3826 = vadd.f32 0.0, %v3825
        %3827 = vmatmul.f32.gmra.mxu0 %v3718
        %v3828 = vpop.f32.mrf.mxu0
        %v3829 = vadd.f32 0.0, %v3828
        %3830 = vmatmul.f32.gmra.mxu0 %v3720
        %v3831 = vpop.f32.mrf.mxu0
        %v3832 = vadd.f32 0.0, %v3831
        %3833 = vmatmul.f32.gmra.mxu0 %v3722
        %v3834 = vpop.f32.mrf.mxu0
        %v3835 = vadd.f32 0.0, %v3834
        %3836 = vdwg.mxu0
        %v3837 = vadd.f32 %v3473, %v3742
        %v3838 = vadd.f32 %v3474, %v3745
        %v3839 = vadd.f32 %v3475, %v3748
        %v3840 = vadd.f32 %v3476, %v3751
        %v3841 = vadd.f32 %v3477, %v3754
        %v3842 = vadd.f32 %v3478, %v3757
        %v3843 = vadd.f32 %v3479, %v3760
        %v3844 = vadd.f32 %v3480, %v3763
        %v3845 = vadd.f32 %v3481, %v3766
        %v3846 = vadd.f32 %v3482, %v3769
        %v3847 = vadd.f32 %v3483, %v3772
        %v3848 = vadd.f32 %v3484, %v3775
        %v3849 = vadd.f32 %v3485, %v3778
        %v3850 = vadd.f32 %v3486, %v3781
        %v3851 = vadd.f32 %v3487, %v3784
        %v3852 = vadd.f32 %v3488, %v3787
        %v3853 = vadd.f32 %v3489, %v3790
        %v3854 = vadd.f32 %v3490, %v3793
        %v3855 = vadd.f32 %v3491, %v3796
        %v3856 = vadd.f32 %v3492, %v3799
        %v3857 = vadd.f32 %v3493, %v3802
        %v3858 = vadd.f32 %v3494, %v3805
        %v3859 = vadd.f32 %v3495, %v3808
        %v3860 = vadd.f32 %v3496, %v3811
        %v3861 = vadd.f32 %v3497, %v3814
        %v3862 = vadd.f32 %v3498, %v3817
        %v3863 = vadd.f32 %v3499, %v3820
        %v3864 = vadd.f32 %v3500, %v3823
        %v3865 = vadd.f32 %v3501, %v3826
        %v3866 = vadd.f32 %v3502, %v3829
        %v3867 = vadd.f32 %v3503, %v3832
        %v3868 = vadd.f32 %v3504, %v3835
        %s3869 = scalar_lea.vmem %s5, 16
        %v3870 = vld [vmem:[%s3869] sm:$0xff]
        %v3871 = vld [vmem:[%s3869 + $0x8] sm:$0xff]
        %v3872 = vsel %vm3659, 0.0, 0
        %v3875 = vsel %vm3659, %v3505, 0
        %v3878 = vsel %vm3659, %v3506, 0
        %v3881 = vsel %vm3659, %v3507, 0
        %v3884 = vsel %vm3659, %v3508, 0
        %v3887 = vsel %vm3659, %v3509, 0
        %v3890 = vsel %vm3659, %v3510, 0
        %v3893 = vsel %vm3659, %v3511, 0
        %v3896 = vsel %vm3659, %v3512, 0
        %v3899 = vsel %vm3659, %v3513, 0
        %v3902 = vsel %vm3659, %v3514, 0
        %v3905 = vsel %vm3659, %v3515, 0
        %v3908 = vsel %vm3659, %v3516, 0
        %v3911 = vsel %vm3659, %v3517, 0
        %v3914 = vsel %vm3659, %v3518, 0
        %v3917 = vsel %vm3659, %v3519, 0
        %v3920 = vsel %vm3659, %v3520, 0
        %v3923 = vsel %vm3659, %v3521, 0
        %v3926 = vsel %vm3659, %v3522, 0
        %v3929 = vsel %vm3659, %v3523, 0
        %v3932 = vsel %vm3659, %v3524, 0
        %v3935 = vsel %vm3659, %v3525, 0
        %v3938 = vsel %vm3659, %v3526, 0
        %v3941 = vsel %vm3659, %v3527, 0
        %v3944 = vsel %vm3659, %v3528, 0
        %v3947 = vsel %vm3659, %v3529, 0
        %v3950 = vsel %vm3659, %v3530, 0
        %v3953 = vsel %vm3659, %v3531, 0
        %v3956 = vsel %vm3659, %v3532, 0
        %v3959 = vsel %vm3659, %v3533, 0
        %v3962 = vsel %vm3659, %v3534, 0
        %3964 = vmatpush.msra.mxu0 0.0
        %3965 = vmatpush.msra.mxu0 0.0
        %3966 = vmatpush.msra.mxu0 0.0
        %3967 = vmatpush.msra.mxu0 0.0
        %3968 = vmatpush.msra.mxu0 0.0
        %3969 = vmatpush.msra.mxu0 0.0
        %3970 = vmatpush.msra.mxu0 0.0
        %3971 = vmatpush.msra.mxu0 0.0
        %3972 = vmatpush.msra.mxu0 0.0
        %3973 = vmatpush.msra.mxu0 0.0
        %3974 = vmatpush.msra.mxu0 0.0
        %3975 = vmatpush.msra.mxu0 0.0
        %3976 = vmatpush.msra.mxu0 0.0
        %3977 = vmatpush.msra.mxu0 0.0
        %3978 = vmatpush.msra.mxu0 %v3871
        %3979 = vmatpush.msra.mxu0 %v3870
        %3980 = vmatmul.f32.gmra.mxu0 %v3872
        %v3981 = vpop.f32.mrf.mxu0
        %v3982 = vadd.f32 0.0, %v3981
        %3983 = vmatmul.f32.gmra.mxu0 %v3872
        %v3984 = vpop.f32.mrf.mxu0
        %v3985 = vadd.f32 0.0, %v3984
        %3986 = vmatmul.f32.gmra.mxu0 %v3875
        %v3987 = vpop.f32.mrf.mxu0
        %v3988 = vadd.f32 0.0, %v3987
        %3989 = vmatmul.f32.gmra.mxu0 %v3878
        %v3990 = vpop.f32.mrf.mxu0
        %v3991 = vadd.f32 0.0, %v3990
        %3992 = vmatmul.f32.gmra.mxu0 %v3881
        %v3993 = vpop.f32.mrf.mxu0
        %v3994 = vadd.f32 0.0, %v3993
        %3995 = vmatmul.f32.gmra.mxu0 %v3884
        %v3996 = vpop.f32.mrf.mxu0
        %v3997 = vadd.f32 0.0, %v3996
        %3998 = vmatmul.f32.gmra.mxu0 %v3887
        %v3999 = vpop.f32.mrf.mxu0
        %v4000 = vadd.f32 0.0, %v3999
        %4001 = vmatmul.f32.gmra.mxu0 %v3890
        %v4002 = vpop.f32.mrf.mxu0
        %v4003 = vadd.f32 0.0, %v4002
        %4004 = vmatmul.f32.gmra.mxu0 %v3893
        %v4005 = vpop.f32.mrf.mxu0
        %v4006 = vadd.f32 0.0, %v4005
        %4007 = vmatmul.f32.gmra.mxu0 %v3896
        %v4008 = vpop.f32.mrf.mxu0
        %v4009 = vadd.f32 0.0, %v4008
        %4010 = vmatmul.f32.gmra.mxu0 %v3899
        %v4011 = vpop.f32.mrf.mxu0
        %v4012 = vadd.f32 0.0, %v4011
        %4013 = vmatmul.f32.gmra.mxu0 %v3902
        %v4014 = vpop.f32.mrf.mxu0
        %v4015 = vadd.f32 0.0, %v4014
        %4016 = vmatmul.f32.gmra.mxu0 %v3905
        %v4017 = vpop.f32.mrf.mxu0
        %v4018 = vadd.f32 0.0, %v4017
        %4019 = vmatmul.f32.gmra.mxu0 %v3908
        %v4020 = vpop.f32.mrf.mxu0
        %v4021 = vadd.f32 0.0, %v4020
        %4022 = vmatmul.f32.gmra.mxu0 %v3911
        %v4023 = vpop.f32.mrf.mxu0
        %v4024 = vadd.f32 0.0, %v4023
        %4025 = vmatmul.f32.gmra.mxu0 %v3914
        %v4026 = vpop.f32.mrf.mxu0
        %v4027 = vadd.f32 0.0, %v4026
        %4028 = vmatmul.f32.gmra.mxu0 %v3917
        %v4029 = vpop.f32.mrf.mxu0
        %v4030 = vadd.f32 0.0, %v4029
        %4031 = vmatmul.f32.gmra.mxu0 %v3920
        %v4032 = vpop.f32.mrf.mxu0
        %v4033 = vadd.f32 0.0, %v4032
        %4034 = vmatmul.f32.gmra.mxu0 %v3923
        %v4035 = vpop.f32.mrf.mxu0
        %v4036 = vadd.f32 0.0, %v4035
        %4037 = vmatmul.f32.gmra.mxu0 %v3926
        %v4038 = vpop.f32.mrf.mxu0
        %v4039 = vadd.f32 0.0, %v4038
        %4040 = vmatmul.f32.gmra.mxu0 %v3929
        %v4041 = vpop.f32.mrf.mxu0
        %v4042 = vadd.f32 0.0, %v4041
        %4043 = vmatmul.f32.gmra.mxu0 %v3932
        %v4044 = vpop.f32.mrf.mxu0
        %v4045 = vadd.f32 0.0, %v4044
        %4046 = vmatmul.f32.gmra.mxu0 %v3935
        %v4047 = vpop.f32.mrf.mxu0
        %v4048 = vadd.f32 0.0, %v4047
        %4049 = vmatmul.f32.gmra.mxu0 %v3938
        %v4050 = vpop.f32.mrf.mxu0
        %v4051 = vadd.f32 0.0, %v4050
        %4052 = vmatmul.f32.gmra.mxu0 %v3941
        %v4053 = vpop.f32.mrf.mxu0
        %v4054 = vadd.f32 0.0, %v4053
        %4055 = vmatmul.f32.gmra.mxu0 %v3944
        %v4056 = vpop.f32.mrf.mxu0
        %v4057 = vadd.f32 0.0, %v4056
        %4058 = vmatmul.f32.gmra.mxu0 %v3947
        %v4059 = vpop.f32.mrf.mxu0
        %v4060 = vadd.f32 0.0, %v4059
        %4061 = vmatmul.f32.gmra.mxu0 %v3950
        %v4062 = vpop.f32.mrf.mxu0
        %v4063 = vadd.f32 0.0, %v4062
        %4064 = vmatmul.f32.gmra.mxu0 %v3953
        %v4065 = vpop.f32.mrf.mxu0
        %v4066 = vadd.f32 0.0, %v4065
        %4067 = vmatmul.f32.gmra.mxu0 %v3956
        %v4068 = vpop.f32.mrf.mxu0
        %v4069 = vadd.f32 0.0, %v4068
        %4070 = vmatmul.f32.gmra.mxu0 %v3959
        %v4071 = vpop.f32.mrf.mxu0
        %v4072 = vadd.f32 0.0, %v4071
        %4073 = vmatmul.f32.gmra.mxu0 %v3962
        %v4074 = vpop.f32.mrf.mxu0
        %v4075 = vadd.f32 0.0, %v4074
        %4076 = vdwg.mxu0
        %v4077 = vadd.f32 %v3837, %v3982
        %v4078 = vadd.f32 %v3838, %v3985
        %v4079 = vadd.f32 %v3839, %v3988
        %v4080 = vadd.f32 %v3840, %v3991
        %v4081 = vadd.f32 %v3841, %v3994
        %v4082 = vadd.f32 %v3842, %v3997
        %v4083 = vadd.f32 %v3843, %v4000
        %v4084 = vadd.f32 %v3844, %v4003
        %v4085 = vadd.f32 %v3845, %v4006
        %v4086 = vadd.f32 %v3846, %v4009
        %v4087 = vadd.f32 %v3847, %v4012
        %v4088 = vadd.f32 %v3848, %v4015
        %v4089 = vadd.f32 %v3849, %v4018
        %v4090 = vadd.f32 %v3850, %v4021
        %v4091 = vadd.f32 %v3851, %v4024
        %v4092 = vadd.f32 %v3852, %v4027
        %v4093 = vadd.f32 %v3853, %v4030
        %v4094 = vadd.f32 %v3854, %v4033
        %v4095 = vadd.f32 %v3855, %v4036
        %v4096 = vadd.f32 %v3856, %v4039
        %v4097 = vadd.f32 %v3857, %v4042
        %v4098 = vadd.f32 %v3858, %v4045
        %v4099 = vadd.f32 %v3859, %v4048
        %v4100 = vadd.f32 %v3860, %v4051
        %v4101 = vadd.f32 %v3861, %v4054
        %v4102 = vadd.f32 %v3862, %v4057
        %v4103 = vadd.f32 %v3863, %v4060
        %v4104 = vadd.f32 %v3864, %v4063
        %v4105 = vadd.f32 %v3865, %v4066
        %v4106 = vadd.f32 %v3866, %v4069
        %v4107 = vadd.f32 %v3867, %v4072
        %v4108 = vadd.f32 %v3868, %v4075
        %v4109 = vmul.f32 %v3505, %v1388
        %v4110 = vmul.f32 %v3506, %v1390
        %v4111 = vmul.f32 %v3507, %v1392
        %v4112 = vmul.f32 %v3508, %v1394
        %v4113 = vmul.f32 %v3509, %v1396
        %v4114 = vmul.f32 %v3510, %v1398
        %v4115 = vmul.f32 %v3511, %v1400
        %v4116 = vmul.f32 %v3512, %v1402
        %v4117 = vmul.f32 %v3513, %v1404
        %v4118 = vmul.f32 %v3514, %v1406
        %v4119 = vmul.f32 %v3515, %v1408
        %v4120 = vmul.f32 %v3516, %v1410
        %v4121 = vmul.f32 %v3517, %v1412
        %v4122 = vmul.f32 %v3518, %v1414
        %v4123 = vmul.f32 %v3519, %v1416
        %v4124 = vmul.f32 %v3520, %v1418
        %v4125 = vmul.f32 %v3521, %v1420
        %v4126 = vmul.f32 %v3522, %v1422
        %v4127 = vmul.f32 %v3523, %v1424
        %v4128 = vmul.f32 %v3524, %v1426
        %v4129 = vmul.f32 %v3525, %v1428
        %v4130 = vmul.f32 %v3526, %v1430
        %v4131 = vmul.f32 %v3527, %v1432
        %v4132 = vmul.f32 %v3528, %v1434
        %v4133 = vmul.f32 %v3529, %v1436
        %v4134 = vmul.f32 %v3530, %v1438
        %v4135 = vmul.f32 %v3531, %v1440
        %v4136 = vmul.f32 %v3532, %v1442
        %v4137 = vmul.f32 %v3533, %v1444
        %v4138 = vmul.f32 %v3534, %v1446
        %v4139 = vmul.f32 %v3535, %v1445
        %s4140 = scalar_lea.vmem %s5, 32
        %v4141 = vld [vmem:[%s4140] sm:$0xff]
        %v4142 = vld [vmem:[%s4140 + $0x8] sm:$0xff]
        %v4174 = vrot.slane %v4109, 1
        %v4175 = vsel %vm634, %v1552, %v4174
        %v4176 = vrot.slane %v4110, 1
        %v4177 = vsel %vm634, %v4174, %v4176
        %v4178 = vrot.slane %v4111, 1
        %v4179 = vsel %vm634, %v4176, %v4178
        %v4180 = vrot.slane %v4112, 1
        %v4181 = vsel %vm634, %v4178, %v4180
        %v4182 = vrot.slane %v4113, 1
        %v4183 = vsel %vm634, %v4180, %v4182
        %v4184 = vrot.slane %v4114, 1
        %v4185 = vsel %vm634, %v4182, %v4184
        %v4186 = vrot.slane %v4115, 1
        %v4187 = vsel %vm634, %v4184, %v4186
        %v4188 = vrot.slane %v4116, 1
        %v4189 = vsel %vm634, %v4186, %v4188
        %v4190 = vrot.slane %v4117, 1
        %v4191 = vsel %vm634, %v4188, %v4190
        %v4192 = vrot.slane %v4118, 1
        %v4193 = vsel %vm634, %v4190, %v4192
        %v4194 = vrot.slane %v4119, 1
        %v4195 = vsel %vm634, %v4192, %v4194
        %v4196 = vrot.slane %v4120, 1
        %v4197 = vsel %vm634, %v4194, %v4196
        %v4198 = vrot.slane %v4121, 1
        %v4199 = vsel %vm634, %v4196, %v4198
        %v4200 = vrot.slane %v4122, 1
        %v4201 = vsel %vm634, %v4198, %v4200
        %v4202 = vrot.slane %v4123, 1
        %v4203 = vsel %vm634, %v4200, %v4202
        %v4204 = vrot.slane %v4124, 1
        %v4205 = vsel %vm634, %v4202, %v4204
        %v4206 = vrot.slane %v4125, 1
        %v4207 = vsel %vm634, %v4204, %v4206
        %v4208 = vrot.slane %v4126, 1
        %v4209 = vsel %vm634, %v4206, %v4208
        %v4210 = vrot.slane %v4127, 1
        %v4211 = vsel %vm634, %v4208, %v4210
        %v4212 = vrot.slane %v4128, 1
        %v4213 = vsel %vm634, %v4210, %v4212
        %v4214 = vrot.slane %v4129, 1
        %v4215 = vsel %vm634, %v4212, %v4214
        %v4216 = vrot.slane %v4130, 1
        %v4217 = vsel %vm634, %v4214, %v4216
        %v4218 = vrot.slane %v4131, 1
        %v4219 = vsel %vm634, %v4216, %v4218
        %v4220 = vrot.slane %v4132, 1
        %v4221 = vsel %vm634, %v4218, %v4220
        %v4222 = vrot.slane %v4133, 1
        %v4223 = vsel %vm634, %v4220, %v4222
        %v4224 = vrot.slane %v4134, 1
        %v4225 = vsel %vm634, %v4222, %v4224
        %v4226 = vrot.slane %v4135, 1
        %v4227 = vsel %vm634, %v4224, %v4226
        %v4228 = vrot.slane %v4136, 1
        %v4229 = vsel %vm634, %v4226, %v4228
        %v4230 = vrot.slane %v4137, 1
        %v4231 = vsel %vm634, %v4228, %v4230
        %v4232 = vrot.slane %v4138, 1
        %v4233 = vsel %vm634, %v4230, %v4232
        %v4234 = vrot.slane %v4139, 1
        %v4235 = vsel %vm634, %v4232, %v4234
        %v4236 = vsel %vm3659, %v1553, 0
        %v4238 = vsel %vm3659, %v4175, 0
        %v4240 = vsel %vm3659, %v4177, 0
        %v4242 = vsel %vm3659, %v4179, 0
        %v4244 = vsel %vm3659, %v4181, 0
        %v4246 = vsel %vm3659, %v4183, 0
        %v4248 = vsel %vm3659, %v4185, 0
        %v4250 = vsel %vm3659, %v4187, 0
        %v4252 = vsel %vm3659, %v4189, 0
        %v4254 = vsel %vm3659, %v4191, 0
        %v4256 = vsel %vm3659, %v4193, 0
        %v4258 = vsel %vm3659, %v4195, 0
        %v4260 = vsel %vm3659, %v4197, 0
        %v4262 = vsel %vm3659, %v4199, 0
        %v4264 = vsel %vm3659, %v4201, 0
        %v4266 = vsel %vm3659, %v4203, 0
        %v4268 = vsel %vm3659, %v4205, 0
        %v4270 = vsel %vm3659, %v4207, 0
        %v4272 = vsel %vm3659, %v4209, 0
        %v4274 = vsel %vm3659, %v4211, 0
        %v4276 = vsel %vm3659, %v4213, 0
        %v4278 = vsel %vm3659, %v4215, 0
        %v4280 = vsel %vm3659, %v4217, 0
        %v4282 = vsel %vm3659, %v4219, 0
        %v4284 = vsel %vm3659, %v4221, 0
        %v4286 = vsel %vm3659, %v4223, 0
        %v4288 = vsel %vm3659, %v4225, 0
        %v4290 = vsel %vm3659, %v4227, 0
        %v4292 = vsel %vm3659, %v4229, 0
        %v4294 = vsel %vm3659, %v4231, 0
        %v4296 = vsel %vm3659, %v4233, 0
        %v4298 = vsel %vm3659, %v4235, 0
        %4300 = vmatpush.msra.mxu0 0.0
        %4301 = vmatpush.msra.mxu0 0.0
        %4302 = vmatpush.msra.mxu0 0.0
        %4303 = vmatpush.msra.mxu0 0.0
        %4304 = vmatpush.msra.mxu0 0.0
        %4305 = vmatpush.msra.mxu0 0.0
        %4306 = vmatpush.msra.mxu0 0.0
        %4307 = vmatpush.msra.mxu0 0.0
        %4308 = vmatpush.msra.mxu0 0.0
        %4309 = vmatpush.msra.mxu0 0.0
        %4310 = vmatpush.msra.mxu0 0.0
        %4311 = vmatpush.msra.mxu0 0.0
        %4312 = vmatpush.msra.mxu0 0.0
        %4313 = vmatpush.msra.mxu0 0.0
        %4314 = vmatpush.msra.mxu0 %v4142
        %4315 = vmatpush.msra.mxu0 %v4141
        %4316 = vmatmul.f32.gmra.mxu0 %v4236
        %v4317 = vpop.f32.mrf.mxu0
        %v4318 = vadd.f32 0.0, %v4317
        %4319 = vmatmul.f32.gmra.mxu0 %v4238
        %v4320 = vpop.f32.mrf.mxu0
        %v4321 = vadd.f32 0.0, %v4320
        %4322 = vmatmul.f32.gmra.mxu0 %v4240
        %v4323 = vpop.f32.mrf.mxu0
        %v4324 = vadd.f32 0.0, %v4323
        %4325 = vmatmul.f32.gmra.mxu0 %v4242
        %v4326 = vpop.f32.mrf.mxu0
        %v4327 = vadd.f32 0.0, %v4326
        %4328 = vmatmul.f32.gmra.mxu0 %v4244
        %v4329 = vpop.f32.mrf.mxu0
        %v4330 = vadd.f32 0.0, %v4329
        %4331 = vmatmul.f32.gmra.mxu0 %v4246
        %v4332 = vpop.f32.mrf.mxu0
        %v4333 = vadd.f32 0.0, %v4332
        %4334 = vmatmul.f32.gmra.mxu0 %v4248
        %v4335 = vpop.f32.mrf.mxu0
        %v4336 = vadd.f32 0.0, %v4335
        %4337 = vmatmul.f32.gmra.mxu0 %v4250
        %v4338 = vpop.f32.mrf.mxu0
        %v4339 = vadd.f32 0.0, %v4338
        %4340 = vmatmul.f32.gmra.mxu0 %v4252
        %v4341 = vpop.f32.mrf.mxu0
        %v4342 = vadd.f32 0.0, %v4341
        %4343 = vmatmul.f32.gmra.mxu0 %v4254
        %v4344 = vpop.f32.mrf.mxu0
        %v4345 = vadd.f32 0.0, %v4344
        %4346 = vmatmul.f32.gmra.mxu0 %v4256
        %v4347 = vpop.f32.mrf.mxu0
        %v4348 = vadd.f32 0.0, %v4347
        %4349 = vmatmul.f32.gmra.mxu0 %v4258
        %v4350 = vpop.f32.mrf.mxu0
        %v4351 = vadd.f32 0.0, %v4350
        %4352 = vmatmul.f32.gmra.mxu0 %v4260
        %v4353 = vpop.f32.mrf.mxu0
        %v4354 = vadd.f32 0.0, %v4353
        %4355 = vmatmul.f32.gmra.mxu0 %v4262
        %v4356 = vpop.f32.mrf.mxu0
        %v4357 = vadd.f32 0.0, %v4356
        %4358 = vmatmul.f32.gmra.mxu0 %v4264
        %v4359 = vpop.f32.mrf.mxu0
        %v4360 = vadd.f32 0.0, %v4359
        %4361 = vmatmul.f32.gmra.mxu0 %v4266
        %v4362 = vpop.f32.mrf.mxu0
        %v4363 = vadd.f32 0.0, %v4362
        %4364 = vmatmul.f32.gmra.mxu0 %v4268
        %v4365 = vpop.f32.mrf.mxu0
        %v4366 = vadd.f32 0.0, %v4365
        %4367 = vmatmul.f32.gmra.mxu0 %v4270
        %v4368 = vpop.f32.mrf.mxu0
        %v4369 = vadd.f32 0.0, %v4368
        %4370 = vmatmul.f32.gmra.mxu0 %v4272
        %v4371 = vpop.f32.mrf.mxu0
        %v4372 = vadd.f32 0.0, %v4371
        %4373 = vmatmul.f32.gmra.mxu0 %v4274
        %v4374 = vpop.f32.mrf.mxu0
        %v4375 = vadd.f32 0.0, %v4374
        %4376 = vmatmul.f32.gmra.mxu0 %v4276
        %v4377 = vpop.f32.mrf.mxu0
        %v4378 = vadd.f32 0.0, %v4377
        %4379 = vmatmul.f32.gmra.mxu0 %v4278
        %v4380 = vpop.f32.mrf.mxu0
        %v4381 = vadd.f32 0.0, %v4380
        %4382 = vmatmul.f32.gmra.mxu0 %v4280
        %v4383 = vpop.f32.mrf.mxu0
        %v4384 = vadd.f32 0.0, %v4383
        %4385 = vmatmul.f32.gmra.mxu0 %v4282
        %v4386 = vpop.f32.mrf.mxu0
        %v4387 = vadd.f32 0.0, %v4386
        %4388 = vmatmul.f32.gmra.mxu0 %v4284
        %v4389 = vpop.f32.mrf.mxu0
        %v4390 = vadd.f32 0.0, %v4389
        %4391 = vmatmul.f32.gmra.mxu0 %v4286
        %v4392 = vpop.f32.mrf.mxu0
        %v4393 = vadd.f32 0.0, %v4392
        %4394 = vmatmul.f32.gmra.mxu0 %v4288
        %v4395 = vpop.f32.mrf.mxu0
        %v4396 = vadd.f32 0.0, %v4395
        %4397 = vmatmul.f32.gmra.mxu0 %v4290
        %v4398 = vpop.f32.mrf.mxu0
        %v4399 = vadd.f32 0.0, %v4398
        %4400 = vmatmul.f32.gmra.mxu0 %v4292
        %v4401 = vpop.f32.mrf.mxu0
        %v4402 = vadd.f32 0.0, %v4401
        %4403 = vmatmul.f32.gmra.mxu0 %v4294
        %v4404 = vpop.f32.mrf.mxu0
        %v4405 = vadd.f32 0.0, %v4404
        %4406 = vmatmul.f32.gmra.mxu0 %v4296
        %v4407 = vpop.f32.mrf.mxu0
        %v4408 = vadd.f32 0.0, %v4407
        %4409 = vmatmul.f32.gmra.mxu0 %v4298
        %v4410 = vpop.f32.mrf.mxu0
        %v4411 = vadd.f32 0.0, %v4410
        %4412 = vdwg.mxu0
        %v4413 = vadd.f32 %v4077, %v4318
        %v4414 = vadd.f32 %v4078, %v4321
        %v4415 = vadd.f32 %v4079, %v4324
        %v4416 = vadd.f32 %v4080, %v4327
        %v4417 = vadd.f32 %v4081, %v4330
        %v4418 = vadd.f32 %v4082, %v4333
        %v4419 = vadd.f32 %v4083, %v4336
        %v4420 = vadd.f32 %v4084, %v4339
        %v4421 = vadd.f32 %v4085, %v4342
        %v4422 = vadd.f32 %v4086, %v4345
        %v4423 = vadd.f32 %v4087, %v4348
        %v4424 = vadd.f32 %v4088, %v4351
        %v4425 = vadd.f32 %v4089, %v4354
        %v4426 = vadd.f32 %v4090, %v4357
        %v4427 = vadd.f32 %v4091, %v4360
        %v4428 = vadd.f32 %v4092, %v4363
        %v4429 = vadd.f32 %v4093, %v4366
        %v4430 = vadd.f32 %v4094, %v4369
        %v4431 = vadd.f32 %v4095, %v4372
        %v4432 = vadd.f32 %v4096, %v4375
        %v4433 = vadd.f32 %v4097, %v4378
        %v4434 = vadd.f32 %v4098, %v4381
        %v4435 = vadd.f32 %v4099, %v4384
        %v4436 = vadd.f32 %v4100, %v4387
        %v4437 = vadd.f32 %v4101, %v4390
        %v4438 = vadd.f32 %v4102, %v4393
        %v4439 = vadd.f32 %v4103, %v4396
        %v4440 = vadd.f32 %v4104, %v4399
        %v4441 = vadd.f32 %v4105, %v4402
        %v4442 = vadd.f32 %v4106, %v4405
        %v4443 = vadd.f32 %v4107, %v4408
        %v4444 = vadd.f32 %v4108, %v4411
        %v4445 = vmul.f32 %v3505, %v637
        %v4446 = vmul.f32 %v3506, %v639
        %v4447 = vmul.f32 %v3507, %v641
        %v4448 = vmul.f32 %v3508, %v643
        %v4449 = vmul.f32 %v3509, %v645
        %v4450 = vmul.f32 %v3510, %v647
        %v4451 = vmul.f32 %v3511, %v649
        %v4452 = vmul.f32 %v3512, %v651
        %v4453 = vmul.f32 %v3513, %v653
        %v4454 = vmul.f32 %v3514, %v655
        %v4455 = vmul.f32 %v3515, %v657
        %v4456 = vmul.f32 %v3516, %v659
        %v4457 = vmul.f32 %v3517, %v661
        %v4458 = vmul.f32 %v3518, %v663
        %v4459 = vmul.f32 %v3519, %v665
        %v4460 = vmul.f32 %v3520, %v667
        %v4461 = vmul.f32 %v3521, %v669
        %v4462 = vmul.f32 %v3522, %v671
        %v4463 = vmul.f32 %v3523, %v673
        %v4464 = vmul.f32 %v3524, %v675
        %v4465 = vmul.f32 %v3525, %v677
        %v4466 = vmul.f32 %v3526, %v679
        %v4467 = vmul.f32 %v3527, %v681
        %v4468 = vmul.f32 %v3528, %v683
        %v4469 = vmul.f32 %v3529, %v685
        %v4470 = vmul.f32 %v3530, %v687
        %v4471 = vmul.f32 %v3531, %v689
        %v4472 = vmul.f32 %v3532, %v691
        %v4473 = vmul.f32 %v3533, %v693
        %v4474 = vmul.f32 %v3534, %v695
        %v4475 = vmul.f32 %v3535, %v697
        %v4476 = vmul.f32 %v3536, %v696
        %s4477 = scalar_lea.vmem %s5, 48
        %v4478 = vld [vmem:[%s4477] sm:$0xff]
        %v4479 = vld [vmem:[%s4477 + $0x8] sm:$0xff]
        %v4512 = vrot.slane %v4445, 7
        %v4513 = vsel %vm1013, %v1014, %v4512
        %v4514 = vrot.slane %v4446, 7
        %v4515 = vsel %vm1013, %v4512, %v4514
        %v4516 = vrot.slane %v4447, 7
        %v4517 = vsel %vm1013, %v4514, %v4516
        %v4518 = vrot.slane %v4448, 7
        %v4519 = vsel %vm1013, %v4516, %v4518
        %v4520 = vrot.slane %v4449, 7
        %v4521 = vsel %vm1013, %v4518, %v4520
        %v4522 = vrot.slane %v4450, 7
        %v4523 = vsel %vm1013, %v4520, %v4522
        %v4524 = vrot.slane %v4451, 7
        %v4525 = vsel %vm1013, %v4522, %v4524
        %v4526 = vrot.slane %v4452, 7
        %v4527 = vsel %vm1013, %v4524, %v4526
        %v4528 = vrot.slane %v4453, 7
        %v4529 = vsel %vm1013, %v4526, %v4528
        %v4530 = vrot.slane %v4454, 7
        %v4531 = vsel %vm1013, %v4528, %v4530
        %v4532 = vrot.slane %v4455, 7
        %v4533 = vsel %vm1013, %v4530, %v4532
        %v4534 = vrot.slane %v4456, 7
        %v4535 = vsel %vm1013, %v4532, %v4534
        %v4536 = vrot.slane %v4457, 7
        %v4537 = vsel %vm1013, %v4534, %v4536
        %v4538 = vrot.slane %v4458, 7
        %v4539 = vsel %vm1013, %v4536, %v4538
        %v4540 = vrot.slane %v4459, 7
        %v4541 = vsel %vm1013, %v4538, %v4540
        %v4542 = vrot.slane %v4460, 7
        %v4543 = vsel %vm1013, %v4540, %v4542
        %v4544 = vrot.slane %v4461, 7
        %v4545 = vsel %vm1013, %v4542, %v4544
        %v4546 = vrot.slane %v4462, 7
        %v4547 = vsel %vm1013, %v4544, %v4546
        %v4548 = vrot.slane %v4463, 7
        %v4549 = vsel %vm1013, %v4546, %v4548
        %v4550 = vrot.slane %v4464, 7
        %v4551 = vsel %vm1013, %v4548, %v4550
        %v4552 = vrot.slane %v4465, 7
        %v4553 = vsel %vm1013, %v4550, %v4552
        %v4554 = vrot.slane %v4466, 7
        %v4555 = vsel %vm1013, %v4552, %v4554
        %v4556 = vrot.slane %v4467, 7
        %v4557 = vsel %vm1013, %v4554, %v4556
        %v4558 = vrot.slane %v4468, 7
        %v4559 = vsel %vm1013, %v4556, %v4558
        %v4560 = vrot.slane %v4469, 7
        %v4561 = vsel %vm1013, %v4558, %v4560
        %v4562 = vrot.slane %v4470, 7
        %v4563 = vsel %vm1013, %v4560, %v4562
        %v4564 = vrot.slane %v4471, 7
        %v4565 = vsel %vm1013, %v4562, %v4564
        %v4566 = vrot.slane %v4472, 7
        %v4567 = vsel %vm1013, %v4564, %v4566
        %v4568 = vrot.slane %v4473, 7
        %v4569 = vsel %vm1013, %v4566, %v4568
        %v4570 = vrot.slane %v4474, 7
        %v4571 = vsel %vm1013, %v4568, %v4570
        %v4572 = vrot.slane %v4475, 7
        %v4573 = vsel %vm1013, %v4570, %v4572
        %v4574 = vrot.slane %v4476, 7
        %v4575 = vsel %vm1013, %v4572, %v4574
        %v4576 = vsel %vm3659, %v4513, 0
        %v4578 = vsel %vm3659, %v4515, 0
        %v4580 = vsel %vm3659, %v4517, 0
        %v4582 = vsel %vm3659, %v4519, 0
        %v4584 = vsel %vm3659, %v4521, 0
        %v4586 = vsel %vm3659, %v4523, 0
        %v4588 = vsel %vm3659, %v4525, 0
        %v4590 = vsel %vm3659, %v4527, 0
        %v4592 = vsel %vm3659, %v4529, 0
        %v4594 = vsel %vm3659, %v4531, 0
        %v4596 = vsel %vm3659, %v4533, 0
        %v4598 = vsel %vm3659, %v4535, 0
        %v4600 = vsel %vm3659, %v4537, 0
        %v4602 = vsel %vm3659, %v4539, 0
        %v4604 = vsel %vm3659, %v4541, 0
        %v4606 = vsel %vm3659, %v4543, 0
        %v4608 = vsel %vm3659, %v4545, 0
        %v4610 = vsel %vm3659, %v4547, 0
        %v4612 = vsel %vm3659, %v4549, 0
        %v4614 = vsel %vm3659, %v4551, 0
        %v4616 = vsel %vm3659, %v4553, 0
        %v4618 = vsel %vm3659, %v4555, 0
        %v4620 = vsel %vm3659, %v4557, 0
        %v4622 = vsel %vm3659, %v4559, 0
        %v4624 = vsel %vm3659, %v4561, 0
        %v4626 = vsel %vm3659, %v4563, 0
        %v4628 = vsel %vm3659, %v4565, 0
        %v4630 = vsel %vm3659, %v4567, 0
        %v4632 = vsel %vm3659, %v4569, 0
        %v4634 = vsel %vm3659, %v4571, 0
        %v4636 = vsel %vm3659, %v4573, 0
        %v4638 = vsel %vm3659, %v4575, 0
        %4640 = vmatpush.msra.mxu0 0.0
        %4641 = vmatpush.msra.mxu0 0.0
        %4642 = vmatpush.msra.mxu0 0.0
        %4643 = vmatpush.msra.mxu0 0.0
        %4644 = vmatpush.msra.mxu0 0.0
        %4645 = vmatpush.msra.mxu0 0.0
        %4646 = vmatpush.msra.mxu0 0.0
        %4647 = vmatpush.msra.mxu0 0.0
        %4648 = vmatpush.msra.mxu0 0.0
        %4649 = vmatpush.msra.mxu0 0.0
        %4650 = vmatpush.msra.mxu0 0.0
        %4651 = vmatpush.msra.mxu0 0.0
        %4652 = vmatpush.msra.mxu0 0.0
        %4653 = vmatpush.msra.mxu0 0.0
        %4654 = vmatpush.msra.mxu0 %v4479
        %4655 = vmatpush.msra.mxu0 %v4478
        %4656 = vmatmul.f32.gmra.mxu0 %v4576
        %v4657 = vpop.f32.mrf.mxu0
        %v4658 = vadd.f32 0.0, %v4657
        %4659 = vmatmul.f32.gmra.mxu0 %v4578
        %v4660 = vpop.f32.mrf.mxu0
        %v4661 = vadd.f32 0.0, %v4660
        %4662 = vmatmul.f32.gmra.mxu0 %v4580
        %v4663 = vpop.f32.mrf.mxu0
        %v4664 = vadd.f32 0.0, %v4663
        %4665 = vmatmul.f32.gmra.mxu0 %v4582
        %v4666 = vpop.f32.mrf.mxu0
        %v4667 = vadd.f32 0.0, %v4666
        %4668 = vmatmul.f32.gmra.mxu0 %v4584
        %v4669 = vpop.f32.mrf.mxu0
        %v4670 = vadd.f32 0.0, %v4669
        %4671 = vmatmul.f32.gmra.mxu0 %v4586
        %v4672 = vpop.f32.mrf.mxu0
        %v4673 = vadd.f32 0.0, %v4672
        %4674 = vmatmul.f32.gmra.mxu0 %v4588
        %v4675 = vpop.f32.mrf.mxu0
        %v4676 = vadd.f32 0.0, %v4675
        %4677 = vmatmul.f32.gmra.mxu0 %v4590
        %v4678 = vpop.f32.mrf.mxu0
        %v4679 = vadd.f32 0.0, %v4678
        %4680 = vmatmul.f32.gmra.mxu0 %v4592
        %v4681 = vpop.f32.mrf.mxu0
        %v4682 = vadd.f32 0.0, %v4681
        %4683 = vmatmul.f32.gmra.mxu0 %v4594
        %v4684 = vpop.f32.mrf.mxu0
        %v4685 = vadd.f32 0.0, %v4684
        %4686 = vmatmul.f32.gmra.mxu0 %v4596
        %v4687 = vpop.f32.mrf.mxu0
        %v4688 = vadd.f32 0.0, %v4687
        %4689 = vmatmul.f32.gmra.mxu0 %v4598
        %v4690 = vpop.f32.mrf.mxu0
        %v4691 = vadd.f32 0.0, %v4690
        %4692 = vmatmul.f32.gmra.mxu0 %v4600
        %v4693 = vpop.f32.mrf.mxu0
        %v4694 = vadd.f32 0.0, %v4693
        %4695 = vmatmul.f32.gmra.mxu0 %v4602
        %v4696 = vpop.f32.mrf.mxu0
        %v4697 = vadd.f32 0.0, %v4696
        %4698 = vmatmul.f32.gmra.mxu0 %v4604
        %v4699 = vpop.f32.mrf.mxu0
        %v4700 = vadd.f32 0.0, %v4699
        %4701 = vmatmul.f32.gmra.mxu0 %v4606
        %v4702 = vpop.f32.mrf.mxu0
        %v4703 = vadd.f32 0.0, %v4702
        %4704 = vmatmul.f32.gmra.mxu0 %v4608
        %v4705 = vpop.f32.mrf.mxu0
        %v4706 = vadd.f32 0.0, %v4705
        %4707 = vmatmul.f32.gmra.mxu0 %v4610
        %v4708 = vpop.f32.mrf.mxu0
        %v4709 = vadd.f32 0.0, %v4708
        %4710 = vmatmul.f32.gmra.mxu0 %v4612
        %v4711 = vpop.f32.mrf.mxu0
        %v4712 = vadd.f32 0.0, %v4711
        %4713 = vmatmul.f32.gmra.mxu0 %v4614
        %v4714 = vpop.f32.mrf.mxu0
        %v4715 = vadd.f32 0.0, %v4714
        %4716 = vmatmul.f32.gmra.mxu0 %v4616
        %v4717 = vpop.f32.mrf.mxu0
        %v4718 = vadd.f32 0.0, %v4717
        %4719 = vmatmul.f32.gmra.mxu0 %v4618
        %v4720 = vpop.f32.mrf.mxu0
        %v4721 = vadd.f32 0.0, %v4720
        %4722 = vmatmul.f32.gmra.mxu0 %v4620
        %v4723 = vpop.f32.mrf.mxu0
        %v4724 = vadd.f32 0.0, %v4723
        %4725 = vmatmul.f32.gmra.mxu0 %v4622
        %v4726 = vpop.f32.mrf.mxu0
        %v4727 = vadd.f32 0.0, %v4726
        %4728 = vmatmul.f32.gmra.mxu0 %v4624
        %v4729 = vpop.f32.mrf.mxu0
        %v4730 = vadd.f32 0.0, %v4729
        %4731 = vmatmul.f32.gmra.mxu0 %v4626
        %v4732 = vpop.f32.mrf.mxu0
        %v4733 = vadd.f32 0.0, %v4732
        %4734 = vmatmul.f32.gmra.mxu0 %v4628
        %v4735 = vpop.f32.mrf.mxu0
        %v4736 = vadd.f32 0.0, %v4735
        %4737 = vmatmul.f32.gmra.mxu0 %v4630
        %v4738 = vpop.f32.mrf.mxu0
        %v4739 = vadd.f32 0.0, %v4738
        %4740 = vmatmul.f32.gmra.mxu0 %v4632
        %v4741 = vpop.f32.mrf.mxu0
        %v4742 = vadd.f32 0.0, %v4741
        %4743 = vmatmul.f32.gmra.mxu0 %v4634
        %v4744 = vpop.f32.mrf.mxu0
        %v4745 = vadd.f32 0.0, %v4744
        %4746 = vmatmul.f32.gmra.mxu0 %v4636
        %v4747 = vpop.f32.mrf.mxu0
        %v4748 = vadd.f32 0.0, %v4747
        %4749 = vmatmul.f32.gmra.mxu0 %v4638
        %v4750 = vpop.f32.mrf.mxu0
        %v4751 = vadd.f32 0.0, %v4750
        %4752 = vdwg.mxu0
        %v4753 = vadd.f32 %v4413, %v4658
        %v4754 = vadd.f32 %v4414, %v4661
        %v4755 = vadd.f32 %v4415, %v4664
        %v4756 = vadd.f32 %v4416, %v4667
        %v4757 = vadd.f32 %v4417, %v4670
        %v4758 = vadd.f32 %v4418, %v4673
        %v4759 = vadd.f32 %v4419, %v4676
        %v4760 = vadd.f32 %v4420, %v4679
        %v4761 = vadd.f32 %v4421, %v4682
        %v4762 = vadd.f32 %v4422, %v4685
        %v4763 = vadd.f32 %v4423, %v4688
        %v4764 = vadd.f32 %v4424, %v4691
        %v4765 = vadd.f32 %v4425, %v4694
        %v4766 = vadd.f32 %v4426, %v4697
        %v4767 = vadd.f32 %v4427, %v4700
        %v4768 = vadd.f32 %v4428, %v4703
        %v4769 = vadd.f32 %v4429, %v4706
        %v4770 = vadd.f32 %v4430, %v4709
        %v4771 = vadd.f32 %v4431, %v4712
        %v4772 = vadd.f32 %v4432, %v4715
        %v4773 = vadd.f32 %v4433, %v4718
        %v4774 = vadd.f32 %v4434, %v4721
        %v4775 = vadd.f32 %v4435, %v4724
        %v4776 = vadd.f32 %v4436, %v4727
        %v4777 = vadd.f32 %v4437, %v4730
        %v4778 = vadd.f32 %v4438, %v4733
        %v4779 = vadd.f32 %v4439, %v4736
        %v4780 = vadd.f32 %v4440, %v4739
        %v4781 = vadd.f32 %v4441, %v4742
        %v4782 = vadd.f32 %v4442, %v4745
        %v4783 = vadd.f32 %v4443, %v4748
        %v4784 = vadd.f32 %v4444, %v4751
        %s4785 = scalar_lea.vmem %s5, 64
        %v4786 = vld [vmem:[%s4785] sm:$0xff]
        %v4787 = vld [vmem:[%s4785 + $0x8] sm:$0xff]
        %v4789 = vsel %vm3659, %v3535, 0
        %v4792 = vsel %vm3659, %v3536, 0
        %4794 = vmatpush.msra.mxu0 0.0
        %4795 = vmatpush.msra.mxu0 0.0
        %4796 = vmatpush.msra.mxu0 0.0
        %4797 = vmatpush.msra.mxu0 0.0
        %4798 = vmatpush.msra.mxu0 0.0
        %4799 = vmatpush.msra.mxu0 0.0
        %4800 = vmatpush.msra.mxu0 0.0
        %4801 = vmatpush.msra.mxu0 0.0
        %4802 = vmatpush.msra.mxu0 0.0
        %4803 = vmatpush.msra.mxu0 0.0
        %4804 = vmatpush.msra.mxu0 0.0
        %4805 = vmatpush.msra.mxu0 0.0
        %4806 = vmatpush.msra.mxu0 0.0
        %4807 = vmatpush.msra.mxu0 0.0
        %4808 = vmatpush.msra.mxu0 %v4787
        %4809 = vmatpush.msra.mxu0 %v4786
        %4810 = vmatmul.f32.gmra.mxu0 %v3875
        %v4811 = vpop.f32.mrf.mxu0
        %v4812 = vadd.f32 0.0, %v4811
        %4813 = vmatmul.f32.gmra.mxu0 %v3878
        %v4814 = vpop.f32.mrf.mxu0
        %v4815 = vadd.f32 0.0, %v4814
        %4816 = vmatmul.f32.gmra.mxu0 %v3881
        %v4817 = vpop.f32.mrf.mxu0
        %v4818 = vadd.f32 0.0, %v4817
        %4819 = vmatmul.f32.gmra.mxu0 %v3884
        %v4820 = vpop.f32.mrf.mxu0
        %v4821 = vadd.f32 0.0, %v4820
        %4822 = vmatmul.f32.gmra.mxu0 %v3887
        %v4823 = vpop.f32.mrf.mxu0
        %v4824 = vadd.f32 0.0, %v4823
        %4825 = vmatmul.f32.gmra.mxu0 %v3890
        %v4826 = vpop.f32.mrf.mxu0
        %v4827 = vadd.f32 0.0, %v4826
        %4828 = vmatmul.f32.gmra.mxu0 %v3893
        %v4829 = vpop.f32.mrf.mxu0
        %v4830 = vadd.f32 0.0, %v4829
        %4831 = vmatmul.f32.gmra.mxu0 %v3896
        %v4832 = vpop.f32.mrf.mxu0
        %v4833 = vadd.f32 0.0, %v4832
        %4834 = vmatmul.f32.gmra.mxu0 %v3899
        %v4835 = vpop.f32.mrf.mxu0
        %v4836 = vadd.f32 0.0, %v4835
        %4837 = vmatmul.f32.gmra.mxu0 %v3902
        %v4838 = vpop.f32.mrf.mxu0
        %v4839 = vadd.f32 0.0, %v4838
        %4840 = vmatmul.f32.gmra.mxu0 %v3905
        %v4841 = vpop.f32.mrf.mxu0
        %v4842 = vadd.f32 0.0, %v4841
        %4843 = vmatmul.f32.gmra.mxu0 %v3908
        %v4844 = vpop.f32.mrf.mxu0
        %v4845 = vadd.f32 0.0, %v4844
        %4846 = vmatmul.f32.gmra.mxu0 %v3911
        %v4847 = vpop.f32.mrf.mxu0
        %v4848 = vadd.f32 0.0, %v4847
        %4849 = vmatmul.f32.gmra.mxu0 %v3914
        %v4850 = vpop.f32.mrf.mxu0
        %v4851 = vadd.f32 0.0, %v4850
        %4852 = vmatmul.f32.gmra.mxu0 %v3917
        %v4853 = vpop.f32.mrf.mxu0
        %v4854 = vadd.f32 0.0, %v4853
        %4855 = vmatmul.f32.gmra.mxu0 %v3920
        %v4856 = vpop.f32.mrf.mxu0
        %v4857 = vadd.f32 0.0, %v4856
        %4858 = vmatmul.f32.gmra.mxu0 %v3923
        %v4859 = vpop.f32.mrf.mxu0
        %v4860 = vadd.f32 0.0, %v4859
        %4861 = vmatmul.f32.gmra.mxu0 %v3926
        %v4862 = vpop.f32.mrf.mxu0
        %v4863 = vadd.f32 0.0, %v4862
        %4864 = vmatmul.f32.gmra.mxu0 %v3929
        %v4865 = vpop.f32.mrf.mxu0
        %v4866 = vadd.f32 0.0, %v4865
        %4867 = vmatmul.f32.gmra.mxu0 %v3932
        %v4868 = vpop.f32.mrf.mxu0
        %v4869 = vadd.f32 0.0, %v4868
        %4870 = vmatmul.f32.gmra.mxu0 %v3935
        %v4871 = vpop.f32.mrf.mxu0
        %v4872 = vadd.f32 0.0, %v4871
        %4873 = vmatmul.f32.gmra.mxu0 %v3938
        %v4874 = vpop.f32.mrf.mxu0
        %v4875 = vadd.f32 0.0, %v4874
        %4876 = vmatmul.f32.gmra.mxu0 %v3941
        %v4877 = vpop.f32.mrf.mxu0
        %v4878 = vadd.f32 0.0, %v4877
        %4879 = vmatmul.f32.gmra.mxu0 %v3944
        %v4880 = vpop.f32.mrf.mxu0
        %v4881 = vadd.f32 0.0, %v4880
        %4882 = vmatmul.f32.gmra.mxu0 %v3947
        %v4883 = vpop.f32.mrf.mxu0
        %v4884 = vadd.f32 0.0, %v4883
        %4885 = vmatmul.f32.gmra.mxu0 %v3950
        %v4886 = vpop.f32.mrf.mxu0
        %v4887 = vadd.f32 0.0, %v4886
        %4888 = vmatmul.f32.gmra.mxu0 %v3953
        %v4889 = vpop.f32.mrf.mxu0
        %v4890 = vadd.f32 0.0, %v4889
        %4891 = vmatmul.f32.gmra.mxu0 %v3956
        %v4892 = vpop.f32.mrf.mxu0
        %v4893 = vadd.f32 0.0, %v4892
        %4894 = vmatmul.f32.gmra.mxu0 %v3959
        %v4895 = vpop.f32.mrf.mxu0
        %v4896 = vadd.f32 0.0, %v4895
        %4897 = vmatmul.f32.gmra.mxu0 %v3962
        %v4898 = vpop.f32.mrf.mxu0
        %v4899 = vadd.f32 0.0, %v4898
        %4900 = vmatmul.f32.gmra.mxu0 %v4789
        %v4901 = vpop.f32.mrf.mxu0
        %v4902 = vadd.f32 0.0, %v4901
        %4903 = vmatmul.f32.gmra.mxu0 %v4792
        %v4904 = vpop.f32.mrf.mxu0
        %v4905 = vadd.f32 0.0, %v4904
        %4906 = vdwg.mxu0
        %v4907 = vadd.f32 %v4753, %v4812
        %v4908 = vadd.f32 %v4754, %v4815
        %v4909 = vadd.f32 %v4755, %v4818
        %v4910 = vadd.f32 %v4756, %v4821
        %v4911 = vadd.f32 %v4757, %v4824
        %v4912 = vadd.f32 %v4758, %v4827
        %v4913 = vadd.f32 %v4759, %v4830
        %v4914 = vadd.f32 %v4760, %v4833
        %v4915 = vadd.f32 %v4761, %v4836
        %v4916 = vadd.f32 %v4762, %v4839
        %v4917 = vadd.f32 %v4763, %v4842
        %v4918 = vadd.f32 %v4764, %v4845
        %v4919 = vadd.f32 %v4765, %v4848
        %v4920 = vadd.f32 %v4766, %v4851
        %v4921 = vadd.f32 %v4767, %v4854
        %v4922 = vadd.f32 %v4768, %v4857
        %v4923 = vadd.f32 %v4769, %v4860
        %v4924 = vadd.f32 %v4770, %v4863
        %v4925 = vadd.f32 %v4771, %v4866
        %v4926 = vadd.f32 %v4772, %v4869
        %v4927 = vadd.f32 %v4773, %v4872
        %v4928 = vadd.f32 %v4774, %v4875
        %v4929 = vadd.f32 %v4775, %v4878
        %v4930 = vadd.f32 %v4776, %v4881
        %v4931 = vadd.f32 %v4777, %v4884
        %v4932 = vadd.f32 %v4778, %v4887
        %v4933 = vadd.f32 %v4779, %v4890
        %v4934 = vadd.f32 %v4780, %v4893
        %v4935 = vadd.f32 %v4781, %v4896
        %v4936 = vadd.f32 %v4782, %v4899
        %v4937 = vadd.f32 %v4783, %v4902
        %v4938 = vadd.f32 %v4784, %v4905
        %v4939 = vmul.f32 %v3505, %v1384
        %v4940 = vmul.f32 %v3506, %v1386
        %v4941 = vmul.f32 %v3507, %v1388
        %v4942 = vmul.f32 %v3508, %v1390
        %v4943 = vmul.f32 %v3509, %v1392
        %v4944 = vmul.f32 %v3510, %v1394
        %v4945 = vmul.f32 %v3511, %v1396
        %v4946 = vmul.f32 %v3512, %v1398
        %v4947 = vmul.f32 %v3513, %v1400
        %v4948 = vmul.f32 %v3514, %v1402
        %v4949 = vmul.f32 %v3515, %v1404
        %v4950 = vmul.f32 %v3516, %v1406
        %v4951 = vmul.f32 %v3517, %v1408
        %v4952 = vmul.f32 %v3518, %v1410
        %v4953 = vmul.f32 %v3519, %v1412
        %v4954 = vmul.f32 %v3520, %v1414
        %v4955 = vmul.f32 %v3521, %v1416
        %v4956 = vmul.f32 %v3522, %v1418
        %v4957 = vmul.f32 %v3523, %v1420
        %v4958 = vmul.f32 %v3524, %v1422
        %v4959 = vmul.f32 %v3525, %v1424
        %v4960 = vmul.f32 %v3526, %v1426
        %v4961 = vmul.f32 %v3527, %v1428
        %v4962 = vmul.f32 %v3528, %v1430
        %v4963 = vmul.f32 %v3529, %v1432
        %v4964 = vmul.f32 %v3530, %v1434
        %v4965 = vmul.f32 %v3531, %v1436
        %v4966 = vmul.f32 %v3532, %v1438
        %v4967 = vmul.f32 %v3533, %v1440
        %v4968 = vmul.f32 %v3534, %v1442
        %v4969 = vmul.f32 %v3535, %v1444
        %v4970 = vmul.f32 %v3536, %v1446
        %s4971 = scalar_lea.vmem %s5, 80
        %v4972 = vld [vmem:[%s4971] sm:$0xff]
        %v4973 = vld [vmem:[%s4971 + $0x8] sm:$0xff]
        %v5006 = vrot.slane %v4939, 1
        %v5007 = vrot.slane %v4940, 1
        %v5008 = vsel %vm634, %v5006, %v5007
        %v5009 = vrot.slane %v4941, 1
        %v5010 = vsel %vm634, %v5007, %v5009
        %v5011 = vrot.slane %v4942, 1
        %v5012 = vsel %vm634, %v5009, %v5011
        %v5013 = vrot.slane %v4943, 1
        %v5014 = vsel %vm634, %v5011, %v5013
        %v5015 = vrot.slane %v4944, 1
        %v5016 = vsel %vm634, %v5013, %v5015
        %v5017 = vrot.slane %v4945, 1
        %v5018 = vsel %vm634, %v5015, %v5017
        %v5019 = vrot.slane %v4946, 1
        %v5020 = vsel %vm634, %v5017, %v5019
        %v5021 = vrot.slane %v4947, 1
        %v5022 = vsel %vm634, %v5019, %v5021
        %v5023 = vrot.slane %v4948, 1
        %v5024 = vsel %vm634, %v5021, %v5023
        %v5025 = vrot.slane %v4949, 1
        %v5026 = vsel %vm634, %v5023, %v5025
        %v5027 = vrot.slane %v4950, 1
        %v5028 = vsel %vm634, %v5025, %v5027
        %v5029 = vrot.slane %v4951, 1
        %v5030 = vsel %vm634, %v5027, %v5029
        %v5031 = vrot.slane %v4952, 1
        %v5032 = vsel %vm634, %v5029, %v5031
        %v5033 = vrot.slane %v4953, 1
        %v5034 = vsel %vm634, %v5031, %v5033
        %v5035 = vrot.slane %v4954, 1
        %v5036 = vsel %vm634, %v5033, %v5035
        %v5037 = vrot.slane %v4955, 1
        %v5038 = vsel %vm634, %v5035, %v5037
        %v5039 = vrot.slane %v4956, 1
        %v5040 = vsel %vm634, %v5037, %v5039
        %v5041 = vrot.slane %v4957, 1
        %v5042 = vsel %vm634, %v5039, %v5041
        %v5043 = vrot.slane %v4958, 1
        %v5044 = vsel %vm634, %v5041, %v5043
        %v5045 = vrot.slane %v4959, 1
        %v5046 = vsel %vm634, %v5043, %v5045
        %v5047 = vrot.slane %v4960, 1
        %v5048 = vsel %vm634, %v5045, %v5047
        %v5049 = vrot.slane %v4961, 1
        %v5050 = vsel %vm634, %v5047, %v5049
        %v5051 = vrot.slane %v4962, 1
        %v5052 = vsel %vm634, %v5049, %v5051
        %v5053 = vrot.slane %v4963, 1
        %v5054 = vsel %vm634, %v5051, %v5053
        %v5055 = vrot.slane %v4964, 1
        %v5056 = vsel %vm634, %v5053, %v5055
        %v5057 = vrot.slane %v4965, 1
        %v5058 = vsel %vm634, %v5055, %v5057
        %v5059 = vrot.slane %v4966, 1
        %v5060 = vsel %vm634, %v5057, %v5059
        %v5061 = vrot.slane %v4967, 1
        %v5062 = vsel %vm634, %v5059, %v5061
        %v5063 = vrot.slane %v4968, 1
        %v5064 = vsel %vm634, %v5061, %v5063
        %v5065 = vrot.slane %v4969, 1
        %v5066 = vsel %vm634, %v5063, %v5065
        %v5067 = vrot.slane %v4970, 1
        %v5068 = vsel %vm634, %v5065, %v5067
        %v5069 = vsel %vm634, %v5067, %v2457
        %v5070 = vsel %vm3659, %v5008, 0
        %v5072 = vsel %vm3659, %v5010, 0
        %v5074 = vsel %vm3659, %v5012, 0
        %v5076 = vsel %vm3659, %v5014, 0
        %v5078 = vsel %vm3659, %v5016, 0
        %v5080 = vsel %vm3659, %v5018, 0
        %v5082 = vsel %vm3659, %v5020, 0
        %v5084 = vsel %vm3659, %v5022, 0
        %v5086 = vsel %vm3659, %v5024, 0
        %v5088 = vsel %vm3659, %v5026, 0
        %v5090 = vsel %vm3659, %v5028, 0
        %v5092 = vsel %vm3659, %v5030, 0
        %v5094 = vsel %vm3659, %v5032, 0
        %v5096 = vsel %vm3659, %v5034, 0
        %v5098 = vsel %vm3659, %v5036, 0
        %v5100 = vsel %vm3659, %v5038, 0
        %v5102 = vsel %vm3659, %v5040, 0
        %v5104 = vsel %vm3659, %v5042, 0
        %v5106 = vsel %vm3659, %v5044, 0
        %v5108 = vsel %vm3659, %v5046, 0
        %v5110 = vsel %vm3659, %v5048, 0
        %v5112 = vsel %vm3659, %v5050, 0
        %v5114 = vsel %vm3659, %v5052, 0
        %v5116 = vsel %vm3659, %v5054, 0
        %v5118 = vsel %vm3659, %v5056, 0
        %v5120 = vsel %vm3659, %v5058, 0
        %v5122 = vsel %vm3659, %v5060, 0
        %v5124 = vsel %vm3659, %v5062, 0
        %v5126 = vsel %vm3659, %v5064, 0
        %v5128 = vsel %vm3659, %v5066, 0
        %v5130 = vsel %vm3659, %v5068, 0
        %v5132 = vsel %vm3659, %v5069, 0
        %5134 = vmatpush.msra.mxu0 0.0
        %5135 = vmatpush.msra.mxu0 0.0
        %5136 = vmatpush.msra.mxu0 0.0
        %5137 = vmatpush.msra.mxu0 0.0
        %5138 = vmatpush.msra.mxu0 0.0
        %5139 = vmatpush.msra.mxu0 0.0
        %5140 = vmatpush.msra.mxu0 0.0
        %5141 = vmatpush.msra.mxu0 0.0
        %5142 = vmatpush.msra.mxu0 0.0
        %5143 = vmatpush.msra.mxu0 0.0
        %5144 = vmatpush.msra.mxu0 0.0
        %5145 = vmatpush.msra.mxu0 0.0
        %5146 = vmatpush.msra.mxu0 0.0
        %5147 = vmatpush.msra.mxu0 0.0
        %5148 = vmatpush.msra.mxu0 %v4973
        %5149 = vmatpush.msra.mxu0 %v4972
        %5150 = vmatmul.f32.gmra.mxu0 %v5070
        %v5151 = vpop.f32.mrf.mxu0
        %v5152 = vadd.f32 0.0, %v5151
        %5153 = vmatmul.f32.gmra.mxu0 %v5072
        %v5154 = vpop.f32.mrf.mxu0
        %v5155 = vadd.f32 0.0, %v5154
        %5156 = vmatmul.f32.gmra.mxu0 %v5074
        %v5157 = vpop.f32.mrf.mxu0
        %v5158 = vadd.f32 0.0, %v5157
        %5159 = vmatmul.f32.gmra.mxu0 %v5076
        %v5160 = vpop.f32.mrf.mxu0
        %v5161 = vadd.f32 0.0, %v5160
        %5162 = vmatmul.f32.gmra.mxu0 %v5078
        %v5163 = vpop.f32.mrf.mxu0
        %v5164 = vadd.f32 0.0, %v5163
        %5165 = vmatmul.f32.gmra.mxu0 %v5080
        %v5166 = vpop.f32.mrf.mxu0
        %v5167 = vadd.f32 0.0, %v5166
        %5168 = vmatmul.f32.gmra.mxu0 %v5082
        %v5169 = vpop.f32.mrf.mxu0
        %v5170 = vadd.f32 0.0, %v5169
        %5171 = vmatmul.f32.gmra.mxu0 %v5084
        %v5172 = vpop.f32.mrf.mxu0
        %v5173 = vadd.f32 0.0, %v5172
        %5174 = vmatmul.f32.gmra.mxu0 %v5086
        %v5175 = vpop.f32.mrf.mxu0
        %v5176 = vadd.f32 0.0, %v5175
        %5177 = vmatmul.f32.gmra.mxu0 %v5088
        %v5178 = vpop.f32.mrf.mxu0
        %v5179 = vadd.f32 0.0, %v5178
        %5180 = vmatmul.f32.gmra.mxu0 %v5090
        %v5181 = vpop.f32.mrf.mxu0
        %v5182 = vadd.f32 0.0, %v5181
        %5183 = vmatmul.f32.gmra.mxu0 %v5092
        %v5184 = vpop.f32.mrf.mxu0
        %v5185 = vadd.f32 0.0, %v5184
        %5186 = vmatmul.f32.gmra.mxu0 %v5094
        %v5187 = vpop.f32.mrf.mxu0
        %v5188 = vadd.f32 0.0, %v5187
        %5189 = vmatmul.f32.gmra.mxu0 %v5096
        %v5190 = vpop.f32.mrf.mxu0
        %v5191 = vadd.f32 0.0, %v5190
        %5192 = vmatmul.f32.gmra.mxu0 %v5098
        %v5193 = vpop.f32.mrf.mxu0
        %v5194 = vadd.f32 0.0, %v5193
        %5195 = vmatmul.f32.gmra.mxu0 %v5100
        %v5196 = vpop.f32.mrf.mxu0
        %v5197 = vadd.f32 0.0, %v5196
        %5198 = vmatmul.f32.gmra.mxu0 %v5102
        %v5199 = vpop.f32.mrf.mxu0
        %v5200 = vadd.f32 0.0, %v5199
        %5201 = vmatmul.f32.gmra.mxu0 %v5104
        %v5202 = vpop.f32.mrf.mxu0
        %v5203 = vadd.f32 0.0, %v5202
        %5204 = vmatmul.f32.gmra.mxu0 %v5106
        %v5205 = vpop.f32.mrf.mxu0
        %v5206 = vadd.f32 0.0, %v5205
        %5207 = vmatmul.f32.gmra.mxu0 %v5108
        %v5208 = vpop.f32.mrf.mxu0
        %v5209 = vadd.f32 0.0, %v5208
        %5210 = vmatmul.f32.gmra.mxu0 %v5110
        %v5211 = vpop.f32.mrf.mxu0
        %v5212 = vadd.f32 0.0, %v5211
        %5213 = vmatmul.f32.gmra.mxu0 %v5112
        %v5214 = vpop.f32.mrf.mxu0
        %v5215 = vadd.f32 0.0, %v5214
        %5216 = vmatmul.f32.gmra.mxu0 %v5114
        %v5217 = vpop.f32.mrf.mxu0
        %v5218 = vadd.f32 0.0, %v5217
        %5219 = vmatmul.f32.gmra.mxu0 %v5116
        %v5220 = vpop.f32.mrf.mxu0
        %v5221 = vadd.f32 0.0, %v5220
        %5222 = vmatmul.f32.gmra.mxu0 %v5118
        %v5223 = vpop.f32.mrf.mxu0
        %v5224 = vadd.f32 0.0, %v5223
        %5225 = vmatmul.f32.gmra.mxu0 %v5120
        %v5226 = vpop.f32.mrf.mxu0
        %v5227 = vadd.f32 0.0, %v5226
        %5228 = vmatmul.f32.gmra.mxu0 %v5122
        %v5229 = vpop.f32.mrf.mxu0
        %v5230 = vadd.f32 0.0, %v5229
        %5231 = vmatmul.f32.gmra.mxu0 %v5124
        %v5232 = vpop.f32.mrf.mxu0
        %v5233 = vadd.f32 0.0, %v5232
        %5234 = vmatmul.f32.gmra.mxu0 %v5126
        %v5235 = vpop.f32.mrf.mxu0
        %v5236 = vadd.f32 0.0, %v5235
        %5237 = vmatmul.f32.gmra.mxu0 %v5128
        %v5238 = vpop.f32.mrf.mxu0
        %v5239 = vadd.f32 0.0, %v5238
        %5240 = vmatmul.f32.gmra.mxu0 %v5130
        %v5241 = vpop.f32.mrf.mxu0
        %v5242 = vadd.f32 0.0, %v5241
        %5243 = vmatmul.f32.gmra.mxu0 %v5132
        %v5244 = vpop.f32.mrf.mxu0
        %v5245 = vadd.f32 0.0, %v5244
        %5246 = vdwg.mxu0
        %v5247 = vadd.f32 %v4907, %v5152
        %v5248 = vadd.f32 %v4908, %v5155
        %v5249 = vadd.f32 %v4909, %v5158
        %v5250 = vadd.f32 %v4910, %v5161
        %v5251 = vadd.f32 %v4911, %v5164
        %v5252 = vadd.f32 %v4912, %v5167
        %v5253 = vadd.f32 %v4913, %v5170
        %v5254 = vadd.f32 %v4914, %v5173
        %v5255 = vadd.f32 %v4915, %v5176
        %v5256 = vadd.f32 %v4916, %v5179
        %v5257 = vadd.f32 %v4917, %v5182
        %v5258 = vadd.f32 %v4918, %v5185
        %v5259 = vadd.f32 %v4919, %v5188
        %v5260 = vadd.f32 %v4920, %v5191
        %v5261 = vadd.f32 %v4921, %v5194
        %v5262 = vadd.f32 %v4922, %v5197
        %v5263 = vadd.f32 %v4923, %v5200
        %v5264 = vadd.f32 %v4924, %v5203
        %v5265 = vadd.f32 %v4925, %v5206
        %v5266 = vadd.f32 %v4926, %v5209
        %v5267 = vadd.f32 %v4927, %v5212
        %v5268 = vadd.f32 %v4928, %v5215
        %v5269 = vadd.f32 %v4929, %v5218
        %v5270 = vadd.f32 %v4930, %v5221
        %v5271 = vadd.f32 %v4931, %v5224
        %v5272 = vadd.f32 %v4932, %v5227
        %v5273 = vadd.f32 %v4933, %v5230
        %v5274 = vadd.f32 %v4934, %v5233
        %v5275 = vadd.f32 %v4935, %v5236
        %v5276 = vadd.f32 %v4936, %v5239
        %v5277 = vadd.f32 %v4937, %v5242
        %v5278 = vadd.f32 %v4938, %v5245
        %v5279 = vmul.f32 %v3506, %v635
        %v5280 = vmul.f32 %v3507, %v637
        %v5281 = vmul.f32 %v3508, %v639
        %v5282 = vmul.f32 %v3509, %v641
        %v5283 = vmul.f32 %v3510, %v643
        %v5284 = vmul.f32 %v3511, %v645
        %v5285 = vmul.f32 %v3512, %v647
        %v5286 = vmul.f32 %v3513, %v649
        %v5287 = vmul.f32 %v3514, %v651
        %v5288 = vmul.f32 %v3515, %v653
        %v5289 = vmul.f32 %v3516, %v655
        %v5290 = vmul.f32 %v3517, %v657
        %v5291 = vmul.f32 %v3518, %v659
        %v5292 = vmul.f32 %v3519, %v661
        %v5293 = vmul.f32 %v3520, %v663
        %v5294 = vmul.f32 %v3521, %v665
        %v5295 = vmul.f32 %v3522, %v667
        %v5296 = vmul.f32 %v3523, %v669
        %v5297 = vmul.f32 %v3524, %v671
        %v5298 = vmul.f32 %v3525, %v673
        %v5299 = vmul.f32 %v3526, %v675
        %v5300 = vmul.f32 %v3527, %v677
        %v5301 = vmul.f32 %v3528, %v679
        %v5302 = vmul.f32 %v3529, %v681
        %v5303 = vmul.f32 %v3530, %v683
        %v5304 = vmul.f32 %v3531, %v685
        %v5305 = vmul.f32 %v3532, %v687
        %v5306 = vmul.f32 %v3533, %v689
        %v5307 = vmul.f32 %v3534, %v691
        %v5308 = vmul.f32 %v3535, %v693
        %v5309 = vmul.f32 %v3536, %v695
        %s5310 = scalar_lea.vmem %s5, 96
        %v5311 = vld [vmem:[%s5310] sm:$0xff]
        %v5312 = vld [vmem:[%s5310 + $0x8] sm:$0xff]
        %v5344 = vrot.slane %v5279, 7
        %v5345 = vrot.slane %v5280, 7
        %v5346 = vsel %vm1013, %v5344, %v5345
        %v5347 = vrot.slane %v5281, 7
        %v5348 = vsel %vm1013, %v5345, %v5347
        %v5349 = vrot.slane %v5282, 7
        %v5350 = vsel %vm1013, %v5347, %v5349
        %v5351 = vrot.slane %v5283, 7
        %v5352 = vsel %vm1013, %v5349, %v5351
        %v5353 = vrot.slane %v5284, 7
        %v5354 = vsel %vm1013, %v5351, %v5353
        %v5355 = vrot.slane %v5285, 7
        %v5356 = vsel %vm1013, %v5353, %v5355
        %v5357 = vrot.slane %v5286, 7
        %v5358 = vsel %vm1013, %v5355, %v5357
        %v5359 = vrot.slane %v5287, 7
        %v5360 = vsel %vm1013, %v5357, %v5359
        %v5361 = vrot.slane %v5288, 7
        %v5362 = vsel %vm1013, %v5359, %v5361
        %v5363 = vrot.slane %v5289, 7
        %v5364 = vsel %vm1013, %v5361, %v5363
        %v5365 = vrot.slane %v5290, 7
        %v5366 = vsel %vm1013, %v5363, %v5365
        %v5367 = vrot.slane %v5291, 7
        %v5368 = vsel %vm1013, %v5365, %v5367
        %v5369 = vrot.slane %v5292, 7
        %v5370 = vsel %vm1013, %v5367, %v5369
        %v5371 = vrot.slane %v5293, 7
        %v5372 = vsel %vm1013, %v5369, %v5371
        %v5373 = vrot.slane %v5294, 7
        %v5374 = vsel %vm1013, %v5371, %v5373
        %v5375 = vrot.slane %v5295, 7
        %v5376 = vsel %vm1013, %v5373, %v5375
        %v5377 = vrot.slane %v5296, 7
        %v5378 = vsel %vm1013, %v5375, %v5377
        %v5379 = vrot.slane %v5297, 7
        %v5380 = vsel %vm1013, %v5377, %v5379
        %v5381 = vrot.slane %v5298, 7
        %v5382 = vsel %vm1013, %v5379, %v5381
        %v5383 = vrot.slane %v5299, 7
        %v5384 = vsel %vm1013, %v5381, %v5383
        %v5385 = vrot.slane %v5300, 7
        %v5386 = vsel %vm1013, %v5383, %v5385
        %v5387 = vrot.slane %v5301, 7
        %v5388 = vsel %vm1013, %v5385, %v5387
        %v5389 = vrot.slane %v5302, 7
        %v5390 = vsel %vm1013, %v5387, %v5389
        %v5391 = vrot.slane %v5303, 7
        %v5392 = vsel %vm1013, %v5389, %v5391
        %v5393 = vrot.slane %v5304, 7
        %v5394 = vsel %vm1013, %v5391, %v5393
        %v5395 = vrot.slane %v5305, 7
        %v5396 = vsel %vm1013, %v5393, %v5395
        %v5397 = vrot.slane %v5306, 7
        %v5398 = vsel %vm1013, %v5395, %v5397
        %v5399 = vrot.slane %v5307, 7
        %v5400 = vsel %vm1013, %v5397, %v5399
        %v5401 = vrot.slane %v5308, 7
        %v5402 = vsel %vm1013, %v5399, %v5401
        %v5403 = vrot.slane %v5309, 7
        %v5404 = vsel %vm1013, %v5401, %v5403
        %v5405 = vsel %vm1013, %v5403, %v2800
        %v5406 = vsel %vm3659, %v5346, 0
        %v5408 = vsel %vm3659, %v5348, 0
        %v5410 = vsel %vm3659, %v5350, 0
        %v5412 = vsel %vm3659, %v5352, 0
        %v5414 = vsel %vm3659, %v5354, 0
        %v5416 = vsel %vm3659, %v5356, 0
        %v5418 = vsel %vm3659, %v5358, 0
        %v5420 = vsel %vm3659, %v5360, 0
        %v5422 = vsel %vm3659, %v5362, 0
        %v5424 = vsel %vm3659, %v5364, 0
        %v5426 = vsel %vm3659, %v5366, 0
        %v5428 = vsel %vm3659, %v5368, 0
        %v5430 = vsel %vm3659, %v5370, 0
        %v5432 = vsel %vm3659, %v5372, 0
        %v5434 = vsel %vm3659, %v5374, 0
        %v5436 = vsel %vm3659, %v5376, 0
        %v5438 = vsel %vm3659, %v5378, 0
        %v5440 = vsel %vm3659, %v5380, 0
        %v5442 = vsel %vm3659, %v5382, 0
        %v5444 = vsel %vm3659, %v5384, 0
        %v5446 = vsel %vm3659, %v5386, 0
        %v5448 = vsel %vm3659, %v5388, 0
        %v5450 = vsel %vm3659, %v5390, 0
        %v5452 = vsel %vm3659, %v5392, 0
        %v5454 = vsel %vm3659, %v5394, 0
        %v5456 = vsel %vm3659, %v5396, 0
        %v5458 = vsel %vm3659, %v5398, 0
        %v5460 = vsel %vm3659, %v5400, 0
        %v5462 = vsel %vm3659, %v5402, 0
        %v5464 = vsel %vm3659, %v5404, 0
        %v5466 = vsel %vm3659, %v5405, 0
        %v5468 = vsel %vm3659, %v2803, 0
        %5470 = vmatpush.msra.mxu0 0.0
        %5471 = vmatpush.msra.mxu0 0.0
        %5472 = vmatpush.msra.mxu0 0.0
        %5473 = vmatpush.msra.mxu0 0.0
        %5474 = vmatpush.msra.mxu0 0.0
        %5475 = vmatpush.msra.mxu0 0.0
        %5476 = vmatpush.msra.mxu0 0.0
        %5477 = vmatpush.msra.mxu0 0.0
        %5478 = vmatpush.msra.mxu0 0.0
        %5479 = vmatpush.msra.mxu0 0.0
        %5480 = vmatpush.msra.mxu0 0.0
        %5481 = vmatpush.msra.mxu0 0.0
        %5482 = vmatpush.msra.mxu0 0.0
        %5483 = vmatpush.msra.mxu0 0.0
        %5484 = vmatpush.msra.mxu0 %v5312
        %5485 = vmatpush.msra.mxu0 %v5311
        %5486 = vmatmul.f32.gmra.mxu0 %v5406
        %v5487 = vpop.f32.mrf.mxu0
        %v5488 = vadd.f32 0.0, %v5487
        %5489 = vmatmul.f32.gmra.mxu0 %v5408
        %v5490 = vpop.f32.mrf.mxu0
        %v5491 = vadd.f32 0.0, %v5490
        %5492 = vmatmul.f32.gmra.mxu0 %v5410
        %v5493 = vpop.f32.mrf.mxu0
        %v5494 = vadd.f32 0.0, %v5493
        %5495 = vmatmul.f32.gmra.mxu0 %v5412
        %v5496 = vpop.f32.mrf.mxu0
        %v5497 = vadd.f32 0.0, %v5496
        %5498 = vmatmul.f32.gmra.mxu0 %v5414
        %v5499 = vpop.f32.mrf.mxu0
        %v5500 = vadd.f32 0.0, %v5499
        %5501 = vmatmul.f32.gmra.mxu0 %v5416
        %v5502 = vpop.f32.mrf.mxu0
        %v5503 = vadd.f32 0.0, %v5502
        %5504 = vmatmul.f32.gmra.mxu0 %v5418
        %v5505 = vpop.f32.mrf.mxu0
        %v5506 = vadd.f32 0.0, %v5505
        %5507 = vmatmul.f32.gmra.mxu0 %v5420
        %v5508 = vpop.f32.mrf.mxu0
        %v5509 = vadd.f32 0.0, %v5508
        %5510 = vmatmul.f32.gmra.mxu0 %v5422
        %v5511 = vpop.f32.mrf.mxu0
        %v5512 = vadd.f32 0.0, %v5511
        %5513 = vmatmul.f32.gmra.mxu0 %v5424
        %v5514 = vpop.f32.mrf.mxu0
        %v5515 = vadd.f32 0.0, %v5514
        %5516 = vmatmul.f32.gmra.mxu0 %v5426
        %v5517 = vpop.f32.mrf.mxu0
        %v5518 = vadd.f32 0.0, %v5517
        %5519 = vmatmul.f32.gmra.mxu0 %v5428
        %v5520 = vpop.f32.mrf.mxu0
        %v5521 = vadd.f32 0.0, %v5520
        %5522 = vmatmul.f32.gmra.mxu0 %v5430
        %v5523 = vpop.f32.mrf.mxu0
        %v5524 = vadd.f32 0.0, %v5523
        %5525 = vmatmul.f32.gmra.mxu0 %v5432
        %v5526 = vpop.f32.mrf.mxu0
        %v5527 = vadd.f32 0.0, %v5526
        %5528 = vmatmul.f32.gmra.mxu0 %v5434
        %v5529 = vpop.f32.mrf.mxu0
        %v5530 = vadd.f32 0.0, %v5529
        %5531 = vmatmul.f32.gmra.mxu0 %v5436
        %v5532 = vpop.f32.mrf.mxu0
        %v5533 = vadd.f32 0.0, %v5532
        %5534 = vmatmul.f32.gmra.mxu0 %v5438
        %v5535 = vpop.f32.mrf.mxu0
        %v5536 = vadd.f32 0.0, %v5535
        %5537 = vmatmul.f32.gmra.mxu0 %v5440
        %v5538 = vpop.f32.mrf.mxu0
        %v5539 = vadd.f32 0.0, %v5538
        %5540 = vmatmul.f32.gmra.mxu0 %v5442
        %v5541 = vpop.f32.mrf.mxu0
        %v5542 = vadd.f32 0.0, %v5541
        %5543 = vmatmul.f32.gmra.mxu0 %v5444
        %v5544 = vpop.f32.mrf.mxu0
        %v5545 = vadd.f32 0.0, %v5544
        %5546 = vmatmul.f32.gmra.mxu0 %v5446
        %v5547 = vpop.f32.mrf.mxu0
        %v5548 = vadd.f32 0.0, %v5547
        %5549 = vmatmul.f32.gmra.mxu0 %v5448
        %v5550 = vpop.f32.mrf.mxu0
        %v5551 = vadd.f32 0.0, %v5550
        %5552 = vmatmul.f32.gmra.mxu0 %v5450
        %v5553 = vpop.f32.mrf.mxu0
        %v5554 = vadd.f32 0.0, %v5553
        %5555 = vmatmul.f32.gmra.mxu0 %v5452
        %v5556 = vpop.f32.mrf.mxu0
        %v5557 = vadd.f32 0.0, %v5556
        %5558 = vmatmul.f32.gmra.mxu0 %v5454
        %v5559 = vpop.f32.mrf.mxu0
        %v5560 = vadd.f32 0.0, %v5559
        %5561 = vmatmul.f32.gmra.mxu0 %v5456
        %v5562 = vpop.f32.mrf.mxu0
        %v5563 = vadd.f32 0.0, %v5562
        %5564 = vmatmul.f32.gmra.mxu0 %v5458
        %v5565 = vpop.f32.mrf.mxu0
        %v5566 = vadd.f32 0.0, %v5565
        %5567 = vmatmul.f32.gmra.mxu0 %v5460
        %v5568 = vpop.f32.mrf.mxu0
        %v5569 = vadd.f32 0.0, %v5568
        %5570 = vmatmul.f32.gmra.mxu0 %v5462
        %v5571 = vpop.f32.mrf.mxu0
        %v5572 = vadd.f32 0.0, %v5571
        %5573 = vmatmul.f32.gmra.mxu0 %v5464
        %v5574 = vpop.f32.mrf.mxu0
        %v5575 = vadd.f32 0.0, %v5574
        %5576 = vmatmul.f32.gmra.mxu0 %v5466
        %v5577 = vpop.f32.mrf.mxu0
        %v5578 = vadd.f32 0.0, %v5577
        %5579 = vmatmul.f32.gmra.mxu0 %v5468
        %v5580 = vpop.f32.mrf.mxu0
        %v5581 = vadd.f32 0.0, %v5580
        %5582 = vdwg.mxu0
        %v5583 = vadd.f32 %v5247, %v5488
        %v5584 = vadd.f32 %v5248, %v5491
        %v5585 = vadd.f32 %v5249, %v5494
        %v5586 = vadd.f32 %v5250, %v5497
        %v5587 = vadd.f32 %v5251, %v5500
        %v5588 = vadd.f32 %v5252, %v5503
        %v5589 = vadd.f32 %v5253, %v5506
        %v5590 = vadd.f32 %v5254, %v5509
        %v5591 = vadd.f32 %v5255, %v5512
        %v5592 = vadd.f32 %v5256, %v5515
        %v5593 = vadd.f32 %v5257, %v5518
        %v5594 = vadd.f32 %v5258, %v5521
        %v5595 = vadd.f32 %v5259, %v5524
        %v5596 = vadd.f32 %v5260, %v5527
        %v5597 = vadd.f32 %v5261, %v5530
        %v5598 = vadd.f32 %v5262, %v5533
        %v5599 = vadd.f32 %v5263, %v5536
        %v5600 = vadd.f32 %v5264, %v5539
        %v5601 = vadd.f32 %v5265, %v5542
        %v5602 = vadd.f32 %v5266, %v5545
        %v5603 = vadd.f32 %v5267, %v5548
        %v5604 = vadd.f32 %v5268, %v5551
        %v5605 = vadd.f32 %v5269, %v5554
        %v5606 = vadd.f32 %v5270, %v5557
        %v5607 = vadd.f32 %v5271, %v5560
        %v5608 = vadd.f32 %v5272, %v5563
        %v5609 = vadd.f32 %v5273, %v5566
        %v5610 = vadd.f32 %v5274, %v5569
        %v5611 = vadd.f32 %v5275, %v5572
        %v5612 = vadd.f32 %v5276, %v5575
        %v5613 = vadd.f32 %v5277, %v5578
        %v5614 = vadd.f32 %v5278, %v5581
        %s5615 = scalar_lea.vmem %s5, 112
        %v5616 = vld [vmem:[%s5615] sm:$0xff]
        %v5617 = vld [vmem:[%s5615 + $0x8] sm:$0xff]
        %5618 = vmatpush.msra.mxu0 0.0
        %5619 = vmatpush.msra.mxu0 0.0
        %5620 = vmatpush.msra.mxu0 0.0
        %5621 = vmatpush.msra.mxu0 0.0
        %5622 = vmatpush.msra.mxu0 0.0
        %5623 = vmatpush.msra.mxu0 0.0
        %5624 = vmatpush.msra.mxu0 0.0
        %5625 = vmatpush.msra.mxu0 0.0
        %5626 = vmatpush.msra.mxu0 0.0
        %5627 = vmatpush.msra.mxu0 0.0
        %5628 = vmatpush.msra.mxu0 0.0
        %5629 = vmatpush.msra.mxu0 0.0
        %5630 = vmatpush.msra.mxu0 0.0
        %5631 = vmatpush.msra.mxu0 0.0
        %5632 = vmatpush.msra.mxu0 %v5617
        %5633 = vmatpush.msra.mxu0 %v5616
        %5634 = vmatmul.f32.gmra.mxu0 %v3881
        %v5635 = vpop.f32.mrf.mxu0
        %v5636 = vadd.f32 0.0, %v5635
        %5637 = vmatmul.f32.gmra.mxu0 %v3884
        %v5638 = vpop.f32.mrf.mxu0
        %v5639 = vadd.f32 0.0, %v5638
        %5640 = vmatmul.f32.gmra.mxu0 %v3887
        %v5641 = vpop.f32.mrf.mxu0
        %v5642 = vadd.f32 0.0, %v5641
        %5643 = vmatmul.f32.gmra.mxu0 %v3890
        %v5644 = vpop.f32.mrf.mxu0
        %v5645 = vadd.f32 0.0, %v5644
        %5646 = vmatmul.f32.gmra.mxu0 %v3893
        %v5647 = vpop.f32.mrf.mxu0
        %v5648 = vadd.f32 0.0, %v5647
        %5649 = vmatmul.f32.gmra.mxu0 %v3896
        %v5650 = vpop.f32.mrf.mxu0
        %v5651 = vadd.f32 0.0, %v5650
        %5652 = vmatmul.f32.gmra.mxu0 %v3899
        %v5653 = vpop.f32.mrf.mxu0
        %v5654 = vadd.f32 0.0, %v5653
        %5655 = vmatmul.f32.gmra.mxu0 %v3902
        %v5656 = vpop.f32.mrf.mxu0
        %v5657 = vadd.f32 0.0, %v5656
        %5658 = vmatmul.f32.gmra.mxu0 %v3905
        %v5659 = vpop.f32.mrf.mxu0
        %v5660 = vadd.f32 0.0, %v5659
        %5661 = vmatmul.f32.gmra.mxu0 %v3908
        %v5662 = vpop.f32.mrf.mxu0
        %v5663 = vadd.f32 0.0, %v5662
        %5664 = vmatmul.f32.gmra.mxu0 %v3911
        %v5665 = vpop.f32.mrf.mxu0
        %v5666 = vadd.f32 0.0, %v5665
        %5667 = vmatmul.f32.gmra.mxu0 %v3914
        %v5668 = vpop.f32.mrf.mxu0
        %v5669 = vadd.f32 0.0, %v5668
        %5670 = vmatmul.f32.gmra.mxu0 %v3917
        %v5671 = vpop.f32.mrf.mxu0
        %v5672 = vadd.f32 0.0, %v5671
        %5673 = vmatmul.f32.gmra.mxu0 %v3920
        %v5674 = vpop.f32.mrf.mxu0
        %v5675 = vadd.f32 0.0, %v5674
        %5676 = vmatmul.f32.gmra.mxu0 %v3923
        %v5677 = vpop.f32.mrf.mxu0
        %v5678 = vadd.f32 0.0, %v5677
        %5679 = vmatmul.f32.gmra.mxu0 %v3926
        %v5680 = vpop.f32.mrf.mxu0
        %v5681 = vadd.f32 0.0, %v5680
        %5682 = vmatmul.f32.gmra.mxu0 %v3929
        %v5683 = vpop.f32.mrf.mxu0
        %v5684 = vadd.f32 0.0, %v5683
        %5685 = vmatmul.f32.gmra.mxu0 %v3932
        %v5686 = vpop.f32.mrf.mxu0
        %v5687 = vadd.f32 0.0, %v5686
        %5688 = vmatmul.f32.gmra.mxu0 %v3935
        %v5689 = vpop.f32.mrf.mxu0
        %v5690 = vadd.f32 0.0, %v5689
        %5691 = vmatmul.f32.gmra.mxu0 %v3938
        %v5692 = vpop.f32.mrf.mxu0
        %v5693 = vadd.f32 0.0, %v5692
        %5694 = vmatmul.f32.gmra.mxu0 %v3941
        %v5695 = vpop.f32.mrf.mxu0
        %v5696 = vadd.f32 0.0, %v5695
        %5697 = vmatmul.f32.gmra.mxu0 %v3944
        %v5698 = vpop.f32.mrf.mxu0
        %v5699 = vadd.f32 0.0, %v5698
        %5700 = vmatmul.f32.gmra.mxu0 %v3947
        %v5701 = vpop.f32.mrf.mxu0
        %v5702 = vadd.f32 0.0, %v5701
        %5703 = vmatmul.f32.gmra.mxu0 %v3950
        %v5704 = vpop.f32.mrf.mxu0
        %v5705 = vadd.f32 0.0, %v5704
        %5706 = vmatmul.f32.gmra.mxu0 %v3953
        %v5707 = vpop.f32.mrf.mxu0
        %v5708 = vadd.f32 0.0, %v5707
        %5709 = vmatmul.f32.gmra.mxu0 %v3956
        %v5710 = vpop.f32.mrf.mxu0
        %v5711 = vadd.f32 0.0, %v5710
        %5712 = vmatmul.f32.gmra.mxu0 %v3959
        %v5713 = vpop.f32.mrf.mxu0
        %v5714 = vadd.f32 0.0, %v5713
        %5715 = vmatmul.f32.gmra.mxu0 %v3962
        %v5716 = vpop.f32.mrf.mxu0
        %v5717 = vadd.f32 0.0, %v5716
        %5718 = vmatmul.f32.gmra.mxu0 %v4789
        %v5719 = vpop.f32.mrf.mxu0
        %v5720 = vadd.f32 0.0, %v5719
        %5721 = vmatmul.f32.gmra.mxu0 %v4792
        %v5722 = vpop.f32.mrf.mxu0
        %v5723 = vadd.f32 0.0, %v5722
        %5724 = vmatmul.f32.gmra.mxu0 %v3872
        %v5725 = vpop.f32.mrf.mxu0
        %v5726 = vadd.f32 0.0, %v5725
        %5727 = vmatmul.f32.gmra.mxu0 %v3872
        %v5728 = vpop.f32.mrf.mxu0
        %v5729 = vadd.f32 0.0, %v5728
        %5730 = vdwg.mxu0
        %v5731 = vadd.f32 %v5583, %v5636
        %v5732 = vadd.f32 %v5584, %v5639
        %v5733 = vadd.f32 %v5585, %v5642
        %v5734 = vadd.f32 %v5586, %v5645
        %v5735 = vadd.f32 %v5587, %v5648
        %v5736 = vadd.f32 %v5588, %v5651
        %v5737 = vadd.f32 %v5589, %v5654
        %v5738 = vadd.f32 %v5590, %v5657
        %v5739 = vadd.f32 %v5591, %v5660
        %v5740 = vadd.f32 %v5592, %v5663
        %v5741 = vadd.f32 %v5593, %v5666
        %v5742 = vadd.f32 %v5594, %v5669
        %v5743 = vadd.f32 %v5595, %v5672
        %v5744 = vadd.f32 %v5596, %v5675
        %v5745 = vadd.f32 %v5597, %v5678
        %v5746 = vadd.f32 %v5598, %v5681
        %v5747 = vadd.f32 %v5599, %v5684
        %v5748 = vadd.f32 %v5600, %v5687
        %v5749 = vadd.f32 %v5601, %v5690
        %v5750 = vadd.f32 %v5602, %v5693
        %v5751 = vadd.f32 %v5603, %v5696
        %v5752 = vadd.f32 %v5604, %v5699
        %v5753 = vadd.f32 %v5605, %v5702
        %v5754 = vadd.f32 %v5606, %v5705
        %v5755 = vadd.f32 %v5607, %v5708
        %v5756 = vadd.f32 %v5608, %v5711
        %v5757 = vadd.f32 %v5609, %v5714
        %v5758 = vadd.f32 %v5610, %v5717
        %v5759 = vadd.f32 %v5611, %v5720
        %v5760 = vadd.f32 %v5612, %v5723
        %v5761 = vadd.f32 %v5613, %v5726
        %v5762 = vadd.f32 %v5614, %v5729
        %v5763 = vmul.f32 %v3507, %v1384
        %v5764 = vmul.f32 %v3508, %v1386
        %v5765 = vmul.f32 %v3509, %v1388
        %v5766 = vmul.f32 %v3510, %v1390
        %v5767 = vmul.f32 %v3511, %v1392
        %v5768 = vmul.f32 %v3512, %v1394
        %v5769 = vmul.f32 %v3513, %v1396
        %v5770 = vmul.f32 %v3514, %v1398
        %v5771 = vmul.f32 %v3515, %v1400
        %v5772 = vmul.f32 %v3516, %v1402
        %v5773 = vmul.f32 %v3517, %v1404
        %v5774 = vmul.f32 %v3518, %v1406
        %v5775 = vmul.f32 %v3519, %v1408
        %v5776 = vmul.f32 %v3520, %v1410
        %v5777 = vmul.f32 %v3521, %v1412
        %v5778 = vmul.f32 %v3522, %v1414
        %v5779 = vmul.f32 %v3523, %v1416
        %v5780 = vmul.f32 %v3524, %v1418
        %v5781 = vmul.f32 %v3525, %v1420
        %v5782 = vmul.f32 %v3526, %v1422
        %v5783 = vmul.f32 %v3527, %v1424
        %v5784 = vmul.f32 %v3528, %v1426
        %v5785 = vmul.f32 %v3529, %v1428
        %v5786 = vmul.f32 %v3530, %v1430
        %v5787 = vmul.f32 %v3531, %v1432
        %v5788 = vmul.f32 %v3532, %v1434
        %v5789 = vmul.f32 %v3533, %v1436
        %v5790 = vmul.f32 %v3534, %v1438
        %v5791 = vmul.f32 %v3535, %v1440
        %v5792 = vmul.f32 %v3536, %v1442
        %s5793 = scalar_lea.vmem %s5, 128
        %v5794 = vld [vmem:[%s5793] sm:$0xff]
        %v5795 = vld [vmem:[%s5793 + $0x8] sm:$0xff]
        %v5826 = vrot.slane %v5763, 1
        %v5827 = vrot.slane %v5764, 1
        %v5828 = vsel %vm634, %v5826, %v5827
        %v5829 = vrot.slane %v5765, 1
        %v5830 = vsel %vm634, %v5827, %v5829
        %v5831 = vrot.slane %v5766, 1
        %v5832 = vsel %vm634, %v5829, %v5831
        %v5833 = vrot.slane %v5767, 1
        %v5834 = vsel %vm634, %v5831, %v5833
        %v5835 = vrot.slane %v5768, 1
        %v5836 = vsel %vm634, %v5833, %v5835
        %v5837 = vrot.slane %v5769, 1
        %v5838 = vsel %vm634, %v5835, %v5837
        %v5839 = vrot.slane %v5770, 1
        %v5840 = vsel %vm634, %v5837, %v5839
        %v5841 = vrot.slane %v5771, 1
        %v5842 = vsel %vm634, %v5839, %v5841
        %v5843 = vrot.slane %v5772, 1
        %v5844 = vsel %vm634, %v5841, %v5843
        %v5845 = vrot.slane %v5773, 1
        %v5846 = vsel %vm634, %v5843, %v5845
        %v5847 = vrot.slane %v5774, 1
        %v5848 = vsel %vm634, %v5845, %v5847
        %v5849 = vrot.slane %v5775, 1
        %v5850 = vsel %vm634, %v5847, %v5849
        %v5851 = vrot.slane %v5776, 1
        %v5852 = vsel %vm634, %v5849, %v5851
        %v5853 = vrot.slane %v5777, 1
        %v5854 = vsel %vm634, %v5851, %v5853
        %v5855 = vrot.slane %v5778, 1
        %v5856 = vsel %vm634, %v5853, %v5855
        %v5857 = vrot.slane %v5779, 1
        %v5858 = vsel %vm634, %v5855, %v5857
        %v5859 = vrot.slane %v5780, 1
        %v5860 = vsel %vm634, %v5857, %v5859
        %v5861 = vrot.slane %v5781, 1
        %v5862 = vsel %vm634, %v5859, %v5861
        %v5863 = vrot.slane %v5782, 1
        %v5864 = vsel %vm634, %v5861, %v5863
        %v5865 = vrot.slane %v5783, 1
        %v5866 = vsel %vm634, %v5863, %v5865
        %v5867 = vrot.slane %v5784, 1
        %v5868 = vsel %vm634, %v5865, %v5867
        %v5869 = vrot.slane %v5785, 1
        %v5870 = vsel %vm634, %v5867, %v5869
        %v5871 = vrot.slane %v5786, 1
        %v5872 = vsel %vm634, %v5869, %v5871
        %v5873 = vrot.slane %v5787, 1
        %v5874 = vsel %vm634, %v5871, %v5873
        %v5875 = vrot.slane %v5788, 1
        %v5876 = vsel %vm634, %v5873, %v5875
        %v5877 = vrot.slane %v5789, 1
        %v5878 = vsel %vm634, %v5875, %v5877
        %v5879 = vrot.slane %v5790, 1
        %v5880 = vsel %vm634, %v5877, %v5879
        %v5881 = vrot.slane %v5791, 1
        %v5882 = vsel %vm634, %v5879, %v5881
        %v5883 = vrot.slane %v5792, 1
        %v5884 = vsel %vm634, %v5881, %v5883
        %v5885 = vsel %vm634, %v5883, %v3291
        %v5886 = vsel %vm3659, %v5828, 0
        %v5888 = vsel %vm3659, %v5830, 0
        %v5890 = vsel %vm3659, %v5832, 0
        %v5892 = vsel %vm3659, %v5834, 0
        %v5894 = vsel %vm3659, %v5836, 0
        %v5896 = vsel %vm3659, %v5838, 0
        %v5898 = vsel %vm3659, %v5840, 0
        %v5900 = vsel %vm3659, %v5842, 0
        %v5902 = vsel %vm3659, %v5844, 0
        %v5904 = vsel %vm3659, %v5846, 0
        %v5906 = vsel %vm3659, %v5848, 0
        %v5908 = vsel %vm3659, %v5850, 0
        %v5910 = vsel %vm3659, %v5852, 0
        %v5912 = vsel %vm3659, %v5854, 0
        %v5914 = vsel %vm3659, %v5856, 0
        %v5916 = vsel %vm3659, %v5858, 0
        %v5918 = vsel %vm3659, %v5860, 0
        %v5920 = vsel %vm3659, %v5862, 0
        %v5922 = vsel %vm3659, %v5864, 0
        %v5924 = vsel %vm3659, %v5866, 0
        %v5926 = vsel %vm3659, %v5868, 0
        %v5928 = vsel %vm3659, %v5870, 0
        %v5930 = vsel %vm3659, %v5872, 0
        %v5932 = vsel %vm3659, %v5874, 0
        %v5934 = vsel %vm3659, %v5876, 0
        %v5936 = vsel %vm3659, %v5878, 0
        %v5938 = vsel %vm3659, %v5880, 0
        %v5940 = vsel %vm3659, %v5882, 0
        %v5942 = vsel %vm3659, %v5884, 0
        %v5944 = vsel %vm3659, %v5885, 0
        %v5946 = vsel %vm3659, %v3294, 0
        %v5948 = vsel %vm3659, %v3295, 0
        %5950 = vmatpush.msra.mxu0 0.0
        %5951 = vmatpush.msra.mxu0 0.0
        %5952 = vmatpush.msra.mxu0 0.0
        %5953 = vmatpush.msra.mxu0 0.0
        %5954 = vmatpush.msra.mxu0 0.0
        %5955 = vmatpush.msra.mxu0 0.0
        %5956 = vmatpush.msra.mxu0 0.0
        %5957 = vmatpush.msra.mxu0 0.0
        %5958 = vmatpush.msra.mxu0 0.0
        %5959 = vmatpush.msra.mxu0 0.0
        %5960 = vmatpush.msra.mxu0 0.0
        %5961 = vmatpush.msra.mxu0 0.0
        %5962 = vmatpush.msra.mxu0 0.0
        %5963 = vmatpush.msra.mxu0 0.0
        %5964 = vmatpush.msra.mxu0 %v5795
        %5965 = vmatpush.msra.mxu0 %v5794
        %5966 = vmatmul.f32.gmra.mxu0 %v5886
        %v5967 = vpop.f32.mrf.mxu0
        %v5968 = vadd.f32 0.0, %v5967
        %5969 = vmatmul.f32.gmra.mxu0 %v5888
        %v5970 = vpop.f32.mrf.mxu0
        %v5971 = vadd.f32 0.0, %v5970
        %5972 = vmatmul.f32.gmra.mxu0 %v5890
        %v5973 = vpop.f32.mrf.mxu0
        %v5974 = vadd.f32 0.0, %v5973
        %5975 = vmatmul.f32.gmra.mxu0 %v5892
        %v5976 = vpop.f32.mrf.mxu0
        %v5977 = vadd.f32 0.0, %v5976
        %5978 = vmatmul.f32.gmra.mxu0 %v5894
        %v5979 = vpop.f32.mrf.mxu0
        %v5980 = vadd.f32 0.0, %v5979
        %5981 = vmatmul.f32.gmra.mxu0 %v5896
        %v5982 = vpop.f32.mrf.mxu0
        %v5983 = vadd.f32 0.0, %v5982
        %5984 = vmatmul.f32.gmra.mxu0 %v5898
        %v5985 = vpop.f32.mrf.mxu0
        %v5986 = vadd.f32 0.0, %v5985
        %5987 = vmatmul.f32.gmra.mxu0 %v5900
        %v5988 = vpop.f32.mrf.mxu0
        %v5989 = vadd.f32 0.0, %v5988
        %5990 = vmatmul.f32.gmra.mxu0 %v5902
        %v5991 = vpop.f32.mrf.mxu0
        %v5992 = vadd.f32 0.0, %v5991
        %5993 = vmatmul.f32.gmra.mxu0 %v5904
        %v5994 = vpop.f32.mrf.mxu0
        %v5995 = vadd.f32 0.0, %v5994
        %5996 = vmatmul.f32.gmra.mxu0 %v5906
        %v5997 = vpop.f32.mrf.mxu0
        %v5998 = vadd.f32 0.0, %v5997
        %5999 = vmatmul.f32.gmra.mxu0 %v5908
        %v6000 = vpop.f32.mrf.mxu0
        %v6001 = vadd.f32 0.0, %v6000
        %6002 = vmatmul.f32.gmra.mxu0 %v5910
        %v6003 = vpop.f32.mrf.mxu0
        %v6004 = vadd.f32 0.0, %v6003
        %6005 = vmatmul.f32.gmra.mxu0 %v5912
        %v6006 = vpop.f32.mrf.mxu0
        %v6007 = vadd.f32 0.0, %v6006
        %6008 = vmatmul.f32.gmra.mxu0 %v5914
        %v6009 = vpop.f32.mrf.mxu0
        %v6010 = vadd.f32 0.0, %v6009
        %6011 = vmatmul.f32.gmra.mxu0 %v5916
        %v6012 = vpop.f32.mrf.mxu0
        %v6013 = vadd.f32 0.0, %v6012
        %6014 = vmatmul.f32.gmra.mxu0 %v5918
        %v6015 = vpop.f32.mrf.mxu0
        %v6016 = vadd.f32 0.0, %v6015
        %6017 = vmatmul.f32.gmra.mxu0 %v5920
        %v6018 = vpop.f32.mrf.mxu0
        %v6019 = vadd.f32 0.0, %v6018
        %6020 = vmatmul.f32.gmra.mxu0 %v5922
        %v6021 = vpop.f32.mrf.mxu0
        %v6022 = vadd.f32 0.0, %v6021
        %6023 = vmatmul.f32.gmra.mxu0 %v5924
        %v6024 = vpop.f32.mrf.mxu0
        %v6025 = vadd.f32 0.0, %v6024
        %6026 = vmatmul.f32.gmra.mxu0 %v5926
        %v6027 = vpop.f32.mrf.mxu0
        %v6028 = vadd.f32 0.0, %v6027
        %6029 = vmatmul.f32.gmra.mxu0 %v5928
        %v6030 = vpop.f32.mrf.mxu0
        %v6031 = vadd.f32 0.0, %v6030
        %6032 = vmatmul.f32.gmra.mxu0 %v5930
        %v6033 = vpop.f32.mrf.mxu0
        %v6034 = vadd.f32 0.0, %v6033
        %6035 = vmatmul.f32.gmra.mxu0 %v5932
        %v6036 = vpop.f32.mrf.mxu0
        %v6037 = vadd.f32 0.0, %v6036
        %6038 = vmatmul.f32.gmra.mxu0 %v5934
        %v6039 = vpop.f32.mrf.mxu0
        %v6040 = vadd.f32 0.0, %v6039
        %6041 = vmatmul.f32.gmra.mxu0 %v5936
        %v6042 = vpop.f32.mrf.mxu0
        %v6043 = vadd.f32 0.0, %v6042
        %6044 = vmatmul.f32.gmra.mxu0 %v5938
        %v6045 = vpop.f32.mrf.mxu0
        %v6046 = vadd.f32 0.0, %v6045
        %6047 = vmatmul.f32.gmra.mxu0 %v5940
        %v6048 = vpop.f32.mrf.mxu0
        %v6049 = vadd.f32 0.0, %v6048
        %6050 = vmatmul.f32.gmra.mxu0 %v5942
        %v6051 = vpop.f32.mrf.mxu0
        %v6052 = vadd.f32 0.0, %v6051
        %6053 = vmatmul.f32.gmra.mxu0 %v5944
        %v6054 = vpop.f32.mrf.mxu0
        %v6055 = vadd.f32 0.0, %v6054
        %6056 = vmatmul.f32.gmra.mxu0 %v5946
        %v6057 = vpop.f32.mrf.mxu0
        %v6058 = vadd.f32 0.0, %v6057
        %6059 = vmatmul.f32.gmra.mxu0 %v5948
        %v6060 = vpop.f32.mrf.mxu0
        %v6061 = vadd.f32 0.0, %v6060
        %6062 = vdwg.mxu0
        %v6063 = vadd.f32 %v5731, %v5968
        %v6064 = vadd.f32 %v5732, %v5971
        %v6065 = vadd.f32 %v5733, %v5974
        %v6066 = vadd.f32 %v5734, %v5977
        %v6067 = vadd.f32 %v5735, %v5980
        %v6068 = vadd.f32 %v5736, %v5983
        %v6069 = vadd.f32 %v5737, %v5986
        %v6070 = vadd.f32 %v5738, %v5989
        %v6071 = vadd.f32 %v5739, %v5992
        %v6072 = vadd.f32 %v5740, %v5995
        %v6073 = vadd.f32 %v5741, %v5998
        %v6074 = vadd.f32 %v5742, %v6001
        %v6075 = vadd.f32 %v5743, %v6004
        %v6076 = vadd.f32 %v5744, %v6007
        %v6077 = vadd.f32 %v5745, %v6010
        %v6078 = vadd.f32 %v5746, %v6013
        %v6079 = vadd.f32 %v5747, %v6016
        %v6080 = vadd.f32 %v5748, %v6019
        %v6081 = vadd.f32 %v5749, %v6022
        %v6082 = vadd.f32 %v5750, %v6025
        %v6083 = vadd.f32 %v5751, %v6028
        %v6084 = vadd.f32 %v5752, %v6031
        %v6085 = vadd.f32 %v5753, %v6034
        %v6086 = vadd.f32 %v5754, %v6037
        %v6087 = vadd.f32 %v5755, %v6040
        %v6088 = vadd.f32 %v5756, %v6043
        %v6089 = vadd.f32 %v5757, %v6046
        %v6090 = vadd.f32 %v5758, %v6049
        %v6091 = vadd.f32 %v5759, %v6052
        %v6092 = vadd.f32 %v5760, %v6055
        %v6093 = vadd.f32 %v5761, %v6058
        %v6094 = vadd.f32 %v5762, %v6061
        %v6095 = vld [vmem:[%s6] sm:$0x1]
        %v6097 = vperm.slane %v6095, 0
        %v6099 = vmul.f32 %v6063, %v6097
        %v6100 = vmul.f32 %v6064, %v6097
        %v6101 = vmul.f32 %v6065, %v6097
        %v6102 = vmul.f32 %v6066, %v6097
        %v6103 = vmul.f32 %v6067, %v6097
        %v6104 = vmul.f32 %v6068, %v6097
        %v6105 = vmul.f32 %v6069, %v6097
        %v6106 = vmul.f32 %v6070, %v6097
        %v6107 = vmul.f32 %v6071, %v6097
        %v6108 = vmul.f32 %v6072, %v6097
        %v6109 = vmul.f32 %v6073, %v6097
        %v6110 = vmul.f32 %v6074, %v6097
        %v6111 = vmul.f32 %v6075, %v6097
        %v6112 = vmul.f32 %v6076, %v6097
        %v6113 = vmul.f32 %v6077, %v6097
        %v6114 = vmul.f32 %v6078, %v6097
        %v6115 = vmul.f32 %v6079, %v6097
        %v6116 = vmul.f32 %v6080, %v6097
        %v6117 = vmul.f32 %v6081, %v6097
        %v6118 = vmul.f32 %v6082, %v6097
        %v6119 = vmul.f32 %v6083, %v6097
        %v6120 = vmul.f32 %v6084, %v6097
        %v6121 = vmul.f32 %v6085, %v6097
        %v6122 = vmul.f32 %v6086, %v6097
        %v6123 = vmul.f32 %v6087, %v6097
        %v6124 = vmul.f32 %v6088, %v6097
        %v6125 = vmul.f32 %v6089, %v6097
        %v6126 = vmul.f32 %v6090, %v6097
        %v6127 = vmul.f32 %v6091, %v6097
        %v6128 = vmul.f32 %v6092, %v6097
        %v6129 = vmul.f32 %v6093, %v6097
        %v6130 = vmul.f32 %v6094, %v6097
        %v6131 = vld [vmem:[%s7] sm:$0x1]
        %v6133 = vperm.slane %v6131, 0
        %v6135 = vadd.f32 %v6099, %v6133
        %v6136 = vadd.f32 %v6100, %v6133
        %v6137 = vadd.f32 %v6101, %v6133
        %v6138 = vadd.f32 %v6102, %v6133
        %v6139 = vadd.f32 %v6103, %v6133
        %v6140 = vadd.f32 %v6104, %v6133
        %v6141 = vadd.f32 %v6105, %v6133
        %v6142 = vadd.f32 %v6106, %v6133
        %v6143 = vadd.f32 %v6107, %v6133
        %v6144 = vadd.f32 %v6108, %v6133
        %v6145 = vadd.f32 %v6109, %v6133
        %v6146 = vadd.f32 %v6110, %v6133
        %v6147 = vadd.f32 %v6111, %v6133
        %v6148 = vadd.f32 %v6112, %v6133
        %v6149 = vadd.f32 %v6113, %v6133
        %v6150 = vadd.f32 %v6114, %v6133
        %v6151 = vadd.f32 %v6115, %v6133
        %v6152 = vadd.f32 %v6116, %v6133
        %v6153 = vadd.f32 %v6117, %v6133
        %v6154 = vadd.f32 %v6118, %v6133
        %v6155 = vadd.f32 %v6119, %v6133
        %v6156 = vadd.f32 %v6120, %v6133
        %v6157 = vadd.f32 %v6121, %v6133
        %v6158 = vadd.f32 %v6122, %v6133
        %v6159 = vadd.f32 %v6123, %v6133
        %v6160 = vadd.f32 %v6124, %v6133
        %v6161 = vadd.f32 %v6125, %v6133
        %v6162 = vadd.f32 %v6126, %v6133
        %v6163 = vadd.f32 %v6127, %v6133
        %v6164 = vadd.f32 %v6128, %v6133
        %v6165 = vadd.f32 %v6129, %v6133
        %v6166 = vadd.f32 %v6130, %v6133
        %v6167 = vmax.f32 %v6135, 0.0
        %v6168 = vmax.f32 %v6136, 0.0
        %v6169 = vmax.f32 %v6137, 0.0
        %v6170 = vmax.f32 %v6138, 0.0
        %v6171 = vmax.f32 %v6139, 0.0
        %v6172 = vmax.f32 %v6140, 0.0
        %v6173 = vmax.f32 %v6141, 0.0
        %v6174 = vmax.f32 %v6142, 0.0
        %v6175 = vmax.f32 %v6143, 0.0
        %v6176 = vmax.f32 %v6144, 0.0
        %v6177 = vmax.f32 %v6145, 0.0
        %v6178 = vmax.f32 %v6146, 0.0
        %v6179 = vmax.f32 %v6147, 0.0
        %v6180 = vmax.f32 %v6148, 0.0
        %v6181 = vmax.f32 %v6149, 0.0
        %v6182 = vmax.f32 %v6150, 0.0
        %v6183 = vmax.f32 %v6151, 0.0
        %v6184 = vmax.f32 %v6152, 0.0
        %v6185 = vmax.f32 %v6153, 0.0
        %v6186 = vmax.f32 %v6154, 0.0
        %v6187 = vmax.f32 %v6155, 0.0
        %v6188 = vmax.f32 %v6156, 0.0
        %v6189 = vmax.f32 %v6157, 0.0
        %v6190 = vmax.f32 %v6158, 0.0
        %v6191 = vmax.f32 %v6159, 0.0
        %v6192 = vmax.f32 %v6160, 0.0
        %v6193 = vmax.f32 %v6161, 0.0
        %v6194 = vmax.f32 %v6162, 0.0
        %v6195 = vmax.f32 %v6163, 0.0
        %v6196 = vmax.f32 %v6164, 0.0
        %v6197 = vmax.f32 %v6165, 0.0
        %v6198 = vmax.f32 %v6166, 0.0
        %v6199 = vld [vmem:[%s8] sm:$0xff]
        %v6200 = vld [vmem:[%s8 + $0x8] sm:$0xff]
        %v6201 = vld [vmem:[%s8 + $0x10] sm:$0xff]
        %v6202 = vld [vmem:[%s8 + $0x18] sm:$0xff]
        %v6204 = vsel %vm773, %v6167, 0
        %v6207 = vsel %vm773, %v6168, 0
        %v6210 = vsel %vm773, %v6169, 0
        %v6213 = vsel %vm773, %v6170, 0
        %v6216 = vsel %vm773, %v6171, 0
        %v6219 = vsel %vm773, %v6172, 0
        %v6222 = vsel %vm773, %v6173, 0
        %v6225 = vsel %vm773, %v6174, 0
        %v6228 = vsel %vm773, %v6175, 0
        %v6231 = vsel %vm773, %v6176, 0
        %v6234 = vsel %vm773, %v6177, 0
        %v6237 = vsel %vm773, %v6178, 0
        %v6240 = vsel %vm773, %v6179, 0
        %v6243 = vsel %vm773, %v6180, 0
        %v6246 = vsel %vm773, %v6181, 0
        %v6249 = vsel %vm773, %v6182, 0
        %v6252 = vsel %vm773, %v6183, 0
        %v6255 = vsel %vm773, %v6184, 0
        %v6258 = vsel %vm773, %v6185, 0
        %v6261 = vsel %vm773, %v6186, 0
        %v6264 = vsel %vm773, %v6187, 0
        %v6267 = vsel %vm773, %v6188, 0
        %v6270 = vsel %vm773, %v6189, 0
        %v6273 = vsel %vm773, %v6190, 0
        %v6276 = vsel %vm773, %v6191, 0
        %v6279 = vsel %vm773, %v6192, 0
        %v6282 = vsel %vm773, %v6193, 0
        %v6285 = vsel %vm773, %v6194, 0
        %v6288 = vsel %vm773, %v6195, 0
        %v6291 = vsel %vm773, %v6196, 0
        %v6294 = vsel %vm773, %v6197, 0
        %v6297 = vsel %vm773, %v6198, 0
        %6299 = vmatpush.msra.mxu0 0.0
        %6300 = vmatpush.msra.mxu0 0.0
        %6301 = vmatpush.msra.mxu0 0.0
        %6302 = vmatpush.msra.mxu0 0.0
        %6303 = vmatpush.msra.mxu0 0.0
        %6304 = vmatpush.msra.mxu0 0.0
        %6305 = vmatpush.msra.mxu0 0.0
        %6306 = vmatpush.msra.mxu0 0.0
        %6307 = vmatpush.msra.mxu0 0.0
        %6308 = vmatpush.msra.mxu0 0.0
        %6309 = vmatpush.msra.mxu0 0.0
        %6310 = vmatpush.msra.mxu0 0.0
        %6311 = vmatpush.msra.mxu0 %v6202
        %6312 = vmatpush.msra.mxu0 %v6201
        %6313 = vmatpush.msra.mxu0 %v6200
        %6314 = vmatpush.msra.mxu0 %v6199
        %6315 = vmatmul.f32.gmra.mxu0 %v6204
        %v6316 = vpop.f32.mrf.mxu0
        %v6317 = vadd.f32 0.0, %v6316
        %6318 = vmatmul.f32.gmra.mxu0 %v6207
        %v6319 = vpop.f32.mrf.mxu0
        %v6320 = vadd.f32 0.0, %v6319
        %6321 = vmatmul.f32.gmra.mxu0 %v6210
        %v6322 = vpop.f32.mrf.mxu0
        %v6323 = vadd.f32 0.0, %v6322
        %6324 = vmatmul.f32.gmra.mxu0 %v6213
        %v6325 = vpop.f32.mrf.mxu0
        %v6326 = vadd.f32 0.0, %v6325
        %6327 = vmatmul.f32.gmra.mxu0 %v6216
        %v6328 = vpop.f32.mrf.mxu0
        %v6329 = vadd.f32 0.0, %v6328
        %6330 = vmatmul.f32.gmra.mxu0 %v6219
        %v6331 = vpop.f32.mrf.mxu0
        %v6332 = vadd.f32 0.0, %v6331
        %6333 = vmatmul.f32.gmra.mxu0 %v6222
        %v6334 = vpop.f32.mrf.mxu0
        %v6335 = vadd.f32 0.0, %v6334
        %6336 = vmatmul.f32.gmra.mxu0 %v6225
        %v6337 = vpop.f32.mrf.mxu0
        %v6338 = vadd.f32 0.0, %v6337
        %6339 = vmatmul.f32.gmra.mxu0 %v6228
        %v6340 = vpop.f32.mrf.mxu0
        %v6341 = vadd.f32 0.0, %v6340
        %6342 = vmatmul.f32.gmra.mxu0 %v6231
        %v6343 = vpop.f32.mrf.mxu0
        %v6344 = vadd.f32 0.0, %v6343
        %6345 = vmatmul.f32.gmra.mxu0 %v6234
        %v6346 = vpop.f32.mrf.mxu0
        %v6347 = vadd.f32 0.0, %v6346
        %6348 = vmatmul.f32.gmra.mxu0 %v6237
        %v6349 = vpop.f32.mrf.mxu0
        %v6350 = vadd.f32 0.0, %v6349
        %6351 = vmatmul.f32.gmra.mxu0 %v6240
        %v6352 = vpop.f32.mrf.mxu0
        %v6353 = vadd.f32 0.0, %v6352
        %6354 = vmatmul.f32.gmra.mxu0 %v6243
        %v6355 = vpop.f32.mrf.mxu0
        %v6356 = vadd.f32 0.0, %v6355
        %6357 = vmatmul.f32.gmra.mxu0 %v6246
        %v6358 = vpop.f32.mrf.mxu0
        %v6359 = vadd.f32 0.0, %v6358
        %6360 = vmatmul.f32.gmra.mxu0 %v6249
        %v6361 = vpop.f32.mrf.mxu0
        %v6362 = vadd.f32 0.0, %v6361
        %6363 = vmatmul.f32.gmra.mxu0 %v6252
        %v6364 = vpop.f32.mrf.mxu0
        %v6365 = vadd.f32 0.0, %v6364
        %6366 = vmatmul.f32.gmra.mxu0 %v6255
        %v6367 = vpop.f32.mrf.mxu0
        %v6368 = vadd.f32 0.0, %v6367
        %6369 = vmatmul.f32.gmra.mxu0 %v6258
        %v6370 = vpop.f32.mrf.mxu0
        %v6371 = vadd.f32 0.0, %v6370
        %6372 = vmatmul.f32.gmra.mxu0 %v6261
        %v6373 = vpop.f32.mrf.mxu0
        %v6374 = vadd.f32 0.0, %v6373
        %6375 = vmatmul.f32.gmra.mxu0 %v6264
        %v6376 = vpop.f32.mrf.mxu0
        %v6377 = vadd.f32 0.0, %v6376
        %6378 = vmatmul.f32.gmra.mxu0 %v6267
        %v6379 = vpop.f32.mrf.mxu0
        %v6380 = vadd.f32 0.0, %v6379
        %6381 = vmatmul.f32.gmra.mxu0 %v6270
        %v6382 = vpop.f32.mrf.mxu0
        %v6383 = vadd.f32 0.0, %v6382
        %6384 = vmatmul.f32.gmra.mxu0 %v6273
        %v6385 = vpop.f32.mrf.mxu0
        %v6386 = vadd.f32 0.0, %v6385
        %6387 = vmatmul.f32.gmra.mxu0 %v6276
        %v6388 = vpop.f32.mrf.mxu0
        %v6389 = vadd.f32 0.0, %v6388
        %6390 = vmatmul.f32.gmra.mxu0 %v6279
        %v6391 = vpop.f32.mrf.mxu0
        %v6392 = vadd.f32 0.0, %v6391
        %6393 = vmatmul.f32.gmra.mxu0 %v6282
        %v6394 = vpop.f32.mrf.mxu0
        %v6395 = vadd.f32 0.0, %v6394
        %6396 = vmatmul.f32.gmra.mxu0 %v6285
        %v6397 = vpop.f32.mrf.mxu0
        %v6398 = vadd.f32 0.0, %v6397
        %6399 = vmatmul.f32.gmra.mxu0 %v6288
        %v6400 = vpop.f32.mrf.mxu0
        %v6401 = vadd.f32 0.0, %v6400
        %6402 = vmatmul.f32.gmra.mxu0 %v6291
        %v6403 = vpop.f32.mrf.mxu0
        %v6404 = vadd.f32 0.0, %v6403
        %6405 = vmatmul.f32.gmra.mxu0 %v6294
        %v6406 = vpop.f32.mrf.mxu0
        %v6407 = vadd.f32 0.0, %v6406
        %6408 = vmatmul.f32.gmra.mxu0 %v6297
        %v6409 = vpop.f32.mrf.mxu0
        %v6410 = vadd.f32 0.0, %v6409
        %6411 = vdwg.mxu0
        %v6412 = vld [vmem:[%s9] sm:$0x1]
        %v6414 = vperm.slane %v6412, 0
        %v6416 = vmul.f32 %v6317, %v6414
        %v6417 = vmul.f32 %v6320, %v6414
        %v6418 = vmul.f32 %v6323, %v6414
        %v6419 = vmul.f32 %v6326, %v6414
        %v6420 = vmul.f32 %v6329, %v6414
        %v6421 = vmul.f32 %v6332, %v6414
        %v6422 = vmul.f32 %v6335, %v6414
        %v6423 = vmul.f32 %v6338, %v6414
        %v6424 = vmul.f32 %v6341, %v6414
        %v6425 = vmul.f32 %v6344, %v6414
        %v6426 = vmul.f32 %v6347, %v6414
        %v6427 = vmul.f32 %v6350, %v6414
        %v6428 = vmul.f32 %v6353, %v6414
        %v6429 = vmul.f32 %v6356, %v6414
        %v6430 = vmul.f32 %v6359, %v6414
        %v6431 = vmul.f32 %v6362, %v6414
        %v6432 = vmul.f32 %v6365, %v6414
        %v6433 = vmul.f32 %v6368, %v6414
        %v6434 = vmul.f32 %v6371, %v6414
        %v6435 = vmul.f32 %v6374, %v6414
        %v6436 = vmul.f32 %v6377, %v6414
        %v6437 = vmul.f32 %v6380, %v6414
        %v6438 = vmul.f32 %v6383, %v6414
        %v6439 = vmul.f32 %v6386, %v6414
        %v6440 = vmul.f32 %v6389, %v6414
        %v6441 = vmul.f32 %v6392, %v6414
        %v6442 = vmul.f32 %v6395, %v6414
        %v6443 = vmul.f32 %v6398, %v6414
        %v6444 = vmul.f32 %v6401, %v6414
        %v6445 = vmul.f32 %v6404, %v6414
        %v6446 = vmul.f32 %v6407, %v6414
        %v6447 = vmul.f32 %v6410, %v6414
        %v6448 = vld [vmem:[%s10] sm:$0x1]
        %v6450 = vperm.slane %v6448, 0
        %v6452 = vadd.f32 %v6416, %v6450
        %v6453 = vadd.f32 %v6417, %v6450
        %v6454 = vadd.f32 %v6418, %v6450
        %v6455 = vadd.f32 %v6419, %v6450
        %v6456 = vadd.f32 %v6420, %v6450
        %v6457 = vadd.f32 %v6421, %v6450
        %v6458 = vadd.f32 %v6422, %v6450
        %v6459 = vadd.f32 %v6423, %v6450
        %v6460 = vadd.f32 %v6424, %v6450
        %v6461 = vadd.f32 %v6425, %v6450
        %v6462 = vadd.f32 %v6426, %v6450
        %v6463 = vadd.f32 %v6427, %v6450
        %v6464 = vadd.f32 %v6428, %v6450
        %v6465 = vadd.f32 %v6429, %v6450
        %v6466 = vadd.f32 %v6430, %v6450
        %v6467 = vadd.f32 %v6431, %v6450
        %v6468 = vadd.f32 %v6432, %v6450
        %v6469 = vadd.f32 %v6433, %v6450
        %v6470 = vadd.f32 %v6434, %v6450
        %v6471 = vadd.f32 %v6435, %v6450
        %v6472 = vadd.f32 %v6436, %v6450
        %v6473 = vadd.f32 %v6437, %v6450
        %v6474 = vadd.f32 %v6438, %v6450
        %v6475 = vadd.f32 %v6439, %v6450
        %v6476 = vadd.f32 %v6440, %v6450
        %v6477 = vadd.f32 %v6441, %v6450
        %v6478 = vadd.f32 %v6442, %v6450
        %v6479 = vadd.f32 %v6443, %v6450
        %v6480 = vadd.f32 %v6444, %v6450
        %v6481 = vadd.f32 %v6445, %v6450
        %v6482 = vadd.f32 %v6446, %v6450
        %v6483 = vadd.f32 %v6447, %v6450
        %v6484 = vmax.f32 %v6452, 0.0
        %v6485 = vmax.f32 %v6453, 0.0
        %v6486 = vmax.f32 %v6454, 0.0
        %v6487 = vmax.f32 %v6455, 0.0
        %v6488 = vmax.f32 %v6456, 0.0
        %v6489 = vmax.f32 %v6457, 0.0
        %v6490 = vmax.f32 %v6458, 0.0
        %v6491 = vmax.f32 %v6459, 0.0
        %v6492 = vmax.f32 %v6460, 0.0
        %v6493 = vmax.f32 %v6461, 0.0
        %v6494 = vmax.f32 %v6462, 0.0
        %v6495 = vmax.f32 %v6463, 0.0
        %v6496 = vmax.f32 %v6464, 0.0
        %v6497 = vmax.f32 %v6465, 0.0
        %v6498 = vmax.f32 %v6466, 0.0
        %v6499 = vmax.f32 %v6467, 0.0
        %v6500 = vmax.f32 %v6468, 0.0
        %v6501 = vmax.f32 %v6469, 0.0
        %v6502 = vmax.f32 %v6470, 0.0
        %v6503 = vmax.f32 %v6471, 0.0
        %v6504 = vmax.f32 %v6472, 0.0
        %v6505 = vmax.f32 %v6473, 0.0
        %v6506 = vmax.f32 %v6474, 0.0
        %v6507 = vmax.f32 %v6475, 0.0
        %v6508 = vmax.f32 %v6476, 0.0
        %v6509 = vmax.f32 %v6477, 0.0
        %v6510 = vmax.f32 %v6478, 0.0
        %v6511 = vmax.f32 %v6479, 0.0
        %v6512 = vmax.f32 %v6480, 0.0
        %v6513 = vmax.f32 %v6481, 0.0
        %v6514 = vmax.f32 %v6482, 0.0
        %v6515 = vmax.f32 %v6483, 0.0
        %6516 = vst.msk [vmem:[%s396] sm:$0xff] %vm773, %v6484
        %6517 = vst.msk [vmem:[%s396 + $0x8] sm:$0xff] %vm773, %v6485
        %6518 = vst.msk [vmem:[%s396 + $0x10] sm:$0xff] %vm773, %v6486
        %6519 = vst.msk [vmem:[%s396 + $0x18] sm:$0xff] %vm773, %v6487
        %6520 = vst.msk [vmem:[%s396 + $0x20] sm:$0xff] %vm773, %v6488
        %6521 = vst.msk [vmem:[%s396 + $0x28] sm:$0xff] %vm773, %v6489
        %6522 = vst.msk [vmem:[%s396 + $0x30] sm:$0xff] %vm773, %v6490
        %6523 = vst.msk [vmem:[%s396 + $0x38] sm:$0xff] %vm773, %v6491
        %6524 = vst.msk [vmem:[%s396 + $0x40] sm:$0xff] %vm773, %v6492
        %6525 = vst.msk [vmem:[%s396 + $0x48] sm:$0xff] %vm773, %v6493
        %6526 = vst.msk [vmem:[%s396 + $0x50] sm:$0xff] %vm773, %v6494
        %6527 = vst.msk [vmem:[%s396 + $0x58] sm:$0xff] %vm773, %v6495
        %6528 = vst.msk [vmem:[%s396 + $0x60] sm:$0xff] %vm773, %v6496
        %6529 = vst.msk [vmem:[%s396 + $0x68] sm:$0xff] %vm773, %v6497
        %6530 = vst.msk [vmem:[%s396 + $0x70] sm:$0xff] %vm773, %v6498
        %6531 = vst.msk [vmem:[%s396 + $0x78] sm:$0xff] %vm773, %v6499
        %6532 = vst.msk [vmem:[%s396 + $0x80] sm:$0xff] %vm773, %v6500
        %6533 = vst.msk [vmem:[%s396 + $0x88] sm:$0xff] %vm773, %v6501
        %6534 = vst.msk [vmem:[%s396 + $0x90] sm:$0xff] %vm773, %v6502
        %6535 = vst.msk [vmem:[%s396 + $0x98] sm:$0xff] %vm773, %v6503
        %6536 = vst.msk [vmem:[%s396 + $0xa0] sm:$0xff] %vm773, %v6504
        %6537 = vst.msk [vmem:[%s396 + $0xa8] sm:$0xff] %vm773, %v6505
        %6538 = vst.msk [vmem:[%s396 + $0xb0] sm:$0xff] %vm773, %v6506
        %6539 = vst.msk [vmem:[%s396 + $0xb8] sm:$0xff] %vm773, %v6507
        %6540 = vst.msk [vmem:[%s396 + $0xc0] sm:$0xff] %vm773, %v6508
        %6541 = vst.msk [vmem:[%s396 + $0xc8] sm:$0xff] %vm773, %v6509
        %6542 = vst.msk [vmem:[%s396 + $0xd0] sm:$0xff] %vm773, %v6510
        %6543 = vst.msk [vmem:[%s396 + $0xd8] sm:$0xff] %vm773, %v6511
        %6544 = vst.msk [vmem:[%s396 + $0xe0] sm:$0xff] %vm773, %v6512
        %6545 = vst.msk [vmem:[%s396 + $0xe8] sm:$0xff] %vm773, %v6513
        %6546 = vst.msk [vmem:[%s396 + $0xf0] sm:$0xff] %vm773, %v6514
        %6547 = vst.msk [vmem:[%s396 + $0xf8] sm:$0xff] %vm773, %v6515
        %s6548 = sand.u32 %s274, 1
        %s6549 = scalar_lea.sflag [#allocation3], %s6548
        %s6550 = sand.u32 %s274, 1
        %s6551 = smul.addr %s6550, 256
        %s6552 = scalar_lea.vmem [#allocation2], %s6551
        // Predicated region
        $region65: #{_lambda_.1} parent=63 // pred_check
          %p6553 = pneg %p284
        $region66: #{_lambda_.1} parent=63 // pred_check_branch
          %6555 = sbr.rel (%p6553) target = $region68
        $region67: #{_lambda_.1} parent=63 // pred_region
          %s6556 = smul.u32 32, %s25
          %6558 = vsyncadd %s6549, 0
          %s6559 = smul.addr %s6556, 8
          %s6560 = scalar_lea.hbm %s11, %s6559
          %s6561 = sshll.u32 %s6552, 4
          %s6562 = int_to_ptr.vmem [resolvable:$true] %s6561
          %s6563 = sshll.u32 %s6560, 4
          %s6564 = int_to_ptr.hbm [resolvable:$true] %s6563
          %6569 = dma.vmem_to_hbm [thread:$0]  %s6562, 4096, %s6564, %s6549, 128, 128, 8
        $region68: #{_lambda_.1} parent=63 // pred_fallthru
          _
      $region64: #{_lambda_.1} parent=5 // pred_fallthru
        _
      %p6570 = scmp.le.s32.totalorder 2, %s20
      // Predicated region
      $region69: #{_lambda_.1} parent=5 // pred_check
        %p6571 = pneg %p6570
      $region70: #{_lambda_.1} parent=5 // pred_check_branch
        %6573 = sbr.rel (%p6571) target = $region72
      $region71: #{_lambda_.1} parent=5 // pred_region
        %s6574 = ssub.s32 %s20, 2
        // Predicated region
        $region73: #{_lambda_.1} parent=71 // pred_check
          %p6575 = pneg %p290
        $region74: #{_lambda_.1} parent=71 // pred_check_branch
          %6577 = sbr.rel (%p6575) target = $region76
        $region75: #{_lambda_.1} parent=71 // pred_region
          %s6578 = sand.u32 %s275, 1
          %s6579 = scalar_lea.sflag [#allocation3], %s6578
          %s6580 = sand.u32 %s275, 1
          %s6581 = smul.addr %s6580, 256
          %s6582 = scalar_lea.vmem [#allocation2], %s6581
          %6584 = dma.done %s6579, 4096
        $region76: #{_lambda_.1} parent=71 // pred_fallthru
          _
      $region72: #{_lambda_.1} parent=5 // pred_fallthru
        _
    $region6: #{_lambda_.1} parent=1 // loop_footer
      %s24 = sadd.s32 1, %s20
    $region7: #{_lambda_.1} parent=1 // loop_footer_branch
      %19 = sbr.rel target = $region3
    $region8: #{_lambda_.1} parent=1 // loop_exit
      _
    %6585 = vsyncpa [#allocation3], 1
    %s6586 = scalar_lea.sflag [#allocation3], 1
    %6587 = vsyncpa %s6586, 1

</llo_original>
